<compile_context>
chip_gen: v7x
topology: tpu7x:2x2x1
jax: 0.10.0
libtpu: 0.0.40
codegen_flags: <defaults>
</compile_context>

<pallas_src>
import functools

import jax
import jax.numpy as jnp
from jax.experimental import pallas as pl
from jax.experimental.pallas import tpu as pltpu

# ----- model hyper-parameters (small test sizes, same structure as NeRF) -----
D = 8                 # number of linear_x layers
W = 32                # hidden width
INPUT_CH_X = 16       # positional-encoded xyz channels
INPUT_CH_D = 8        # positional-encoded view-dir channels
SKIPS = (4,)          # skip connection after layer 4
W_HALF = W // 2

G = 4                 # samples lane-packed per row (block-diagonal weights)
SLAB_W = 128          # lane width of every packed weight block / bias row
MAX_TILE_N = 2048     # samples per grid step (upper bound; main tuning knob)

N = 2000              # number of sample points (deliberately not tile-aligned)

assert G * W == SLAB_W, "packed hidden width must equal one vreg lane width"


# --------------------------------------------------------------------------- #
# Host-side parameter packing
# --------------------------------------------------------------------------- #
def _block_diag(w, g=G):
    """(r, c) -> (g*r, g*c) block-diagonal replication."""
    r, c = w.shape
    out = jnp.zeros((g * r, g * c), w.dtype)
    for k in range(g):
        out = out.at[k * r:(k + 1) * r, k * c:(k + 1) * c].set(w)
    return out


def _place(w, row_off=0):
    """Embed block-diag(w) into a zero (128, 128) tile at the given row offset."""
    bd = _block_diag(w)
    blk = jnp.zeros((SLAB_W, SLAB_W), jnp.float32)
    return blk.at[row_off:row_off + bd.shape[0], :bd.shape[1]].set(bd)


def pack_params(params):
    """Pack all weights into ONE bf16 slab of (14*128, 128) uniform blocks and
    all biases into ONE f32 slab of (16, 128) rows.

    Weight block order (each block is a full 128x128 tile, K = packed x/act):
      0: W0       (x lanes 0..63 -> hidden)
      1..8: hidden layers 1..7; the skip layer 5 is split into
            W5A (x lanes 0..63 -> hidden) and W5B (prev hidden -> hidden)
      9: Wfeat    (hidden -> feature)
     10: Wd1      (feature -> hd),  11: Wd2 (x lanes 64..95 (=in_d) -> hd)
     12: Wc1      (hd -> [rgb,sigma]), 13: Wc2 (hidden -> [rgb,sigma])
    Bias rows: b0..b7, bfeat, bd, bc (lanes G-tiled, zero padded to 128).
    """
    idx = 0
    wx, bx = [], []
    for _ in range(D):
        wx.append(params[idx]); bx.append(params[idx + 1]); idx += 2
    w_feat, b_feat, w_dens, b_dens, w_d, b_d, w_col, b_col = params[idx:idx + 8]

    blocks = [_place(wx[0])]                                  # W0
    for i in range(1, D):
        if (i - 1) in SKIPS:
            blocks.append(_place(wx[i][:INPUT_CH_X, :]))      # WiA: input_x part
            blocks.append(_place(wx[i][INPUT_CH_X:, :]))      # WiB: hidden part
        else:
            blocks.append(_place(wx[i]))
    blocks.append(_place(w_feat))                             # Wfeat
    blocks.append(_place(w_d[:W, :]))                         # Wd1: feature part
    blocks.append(_place(w_d[W:, :], row_off=G * INPUT_CH_X)) # Wd2: in_d lanes 64..95
    # fused (color, density) head: out4 = hd @ C1 + out @ C2 + bc
    c1 = jnp.zeros((W_HALF, 4), jnp.float32).at[:, :3].set(w_col)   # color cols
    c2 = jnp.zeros((W, 4), jnp.float32).at[:, 3:].set(w_dens)       # density col
    blocks.append(_place(c1))                                 # Wc1
    blocks.append(_place(c2))                                 # Wc2

    w_slab = jnp.concatenate(blocks, axis=0).astype(jnp.bfloat16)   # (14*128, 128)

    biases = bx + [b_feat, b_d, jnp.concatenate([b_col, b_dens], axis=1)]
    brows = []
    for b in biases:
        bp = jnp.tile(b, (1, G))                              # (1, G*out)
        brows.append(jnp.pad(bp, ((0, 0), (0, SLAB_W - bp.shape[1]))))
    n_b = len(brows)
    n_b_pad = ((n_b + 7) // 8) * 8
    if n_b_pad != n_b:
        brows.append(jnp.zeros((n_b_pad - n_b, SLAB_W), jnp.float32))
    b_slab = jnp.concatenate(brows, axis=0)                   # (16, 128) f32

    return w_slab, b_slab


# --------------------------------------------------------------------------- #
# Kernel — every matmul is (m_tile, 128) @ (128, 128) bf16 with f32 accum
# --------------------------------------------------------------------------- #
def nerf_kernel(x_ref, w_ref, b_ref, o_ref):
    dot = functools.partial(jnp.dot, preferred_element_type=jnp.float32)

    def w_(k):                       # k-th 128x128 bf16 weight block (static slice)
        return w_ref[k * SLAB_W:(k + 1) * SLAB_W, :]

    def b_(j):                       # j-th 128-lane f32 bias row
        return b_ref[j:j + 1, :]

    def bf16(a):
        return a.astype(jnp.bfloat16)

    x = x_ref[...]                                            # (M, 128) bf16

    out = jnp.maximum(dot(x, w_(0)) + b_(0), 0.0)             # (M, 128) f32
    blk = 1
    for i in range(1, D):
        if (i - 1) in SKIPS:
            # layer consumes cat([input_x, prev]) -> split matmul; the x part
            # reads the full packed row (non-x lanes hit zero weight rows).
            h = dot(x, w_(blk)) + dot(bf16(out), w_(blk + 1)) + b_(i)
            blk += 2
        else:
            h = dot(bf16(out), w_(blk)) + b_(i)
            blk += 1
        out = jnp.maximum(h, 0.0)

    out_b = bf16(out)
    feature = dot(out_b, w_(blk)) + b_(D); blk += 1           # (M, 128) f32
    hd = jnp.maximum(
        dot(bf16(feature), w_(blk)) + dot(x, w_(blk + 1)) + b_(D + 1), 0.0)
    blk += 2

    # fused (color, density): per-sample lanes are [r, g, b, sigma], lanes 16..127 zero
    o_ref[...] = dot(bf16(hd), w_(blk)) + dot(out_b, w_(blk + 1)) + b_(D + 2)


# --------------------------------------------------------------------------- #
# Wrapper
# --------------------------------------------------------------------------- #
def nerf_pallas(x, params, max_tile_n=MAX_TILE_N):
    n, c_in = x.shape
    assert c_in == INPUT_CH_X + INPUT_CH_D

    # Adaptive tile: as big as possible to amortize MXU fill/drain + per-step
    # overhead, but keep >= 2 grid steps so v7x's two TensorCores both get work.
    granule = 8 * G
    half = ((n + 1) // 2 + granule - 1) // granule * granule
    tile_n = max(granule, min(max_tile_n, half))
    num_tiles = (n + tile_n - 1) // tile_n
    n_pad = num_tiles * tile_n
    if n_pad != n:
        x = jnp.pad(x, ((0, n_pad - n), (0, 0)))

    # Lane-pack G consecutive samples per row (pure row-major reshapes):
    #   row = [x_0..x_{G-1} (64 lanes) | d_0..d_{G-1} (32 lanes) | zero pad]
    xg = x[:, :INPUT_CH_X].reshape(n_pad // G, G * INPUT_CH_X)
    dg = x[:, INPUT_CH_X:].reshape(n_pad // G, G * INPUT_CH_D)
    pad = jnp.zeros((n_pad // G, SLAB_W - G * (INPUT_CH_X + INPUT_CH_D)), x.dtype)
    x_packed = jnp.concatenate([xg, dg, pad], axis=-1).astype(jnp.bfloat16)

    w_slab, b_slab = pack_params(params)
    m_tile = tile_n // G

    out_packed = pl.pallas_call(
        nerf_kernel,
        out_shape=jax.ShapeDtypeStruct((n_pad // G, SLAB_W), jnp.float32),
        grid_spec=pltpu.PrefetchScalarGridSpec(
            num_scalar_prefetch=0,
            grid=(num_tiles,),
            in_specs=[
                pl.BlockSpec((m_tile, SLAB_W), lambda i: (i, 0)),
                pl.BlockSpec(w_slab.shape, lambda i: (0, 0)),   # resident slab
                pl.BlockSpec(b_slab.shape, lambda i: (0, 0)),   # resident slab
            ],
            out_specs=pl.BlockSpec((m_tile, SLAB_W), lambda i: (i, 0)),
        ),
        compiler_params=pltpu.CompilerParams(
            dimension_semantics=("parallel",),
        ),
    )(x_packed, w_slab, b_slab)

    # unpack: lanes 0..15 hold [r,g,b,sigma] x G samples -> (n_pad, 4), drop pad
    return out_packed[:, :G * 4].reshape(n_pad, 4)[:n]


# --------------------------------------------------------------------------- #
# Reference + params
# --------------------------------------------------------------------------- #
def init_params(key):
    """Deterministic synthetic params. Weights stored (in, out); biases (1, out)."""
    params = []
    keys = jax.random.split(key, 2 * D + 8)
    k = 0

    def linear(kw, kb, fan_in, fan_out):
        scale = 1.0 / jnp.sqrt(jnp.float32(fan_in))
        w = jax.random.normal(kw, (fan_in, fan_out), jnp.float32) * scale
        b = jax.random.normal(kb, (1, fan_out), jnp.float32) * 0.01
        return w, b

    in_dims = [INPUT_CH_X] + [
        (W + INPUT_CH_X) if (i in SKIPS) else W for i in range(D - 1)
    ]
    for i in range(D):
        w, b = linear(keys[k], keys[k + 1], in_dims[i], W); k += 2
        params += [w, b]

    w, b = linear(keys[k], keys[k + 1], W, W); k += 2                 # linear_feat
    params += [w, b]
    w, b = linear(keys[k], keys[k + 1], W, 1); k += 2                 # linear_density
    params += [w, b]
    w, b = linear(keys[k], keys[k + 1], W + INPUT_CH_D, W_HALF); k += 2  # linear_d
    params += [w, b]
    w, b = linear(keys[k], keys[k + 1], W_HALF, 3); k += 2            # linear_color
    params += [w, b]
    return params


def nerf_reference(x, params):
    """Pure-JAX f32 reference matching the PyTorch forward exactly."""
    idx = 0
    wx, bx = [], []
    for _ in range(D):
        wx.append(params[idx]); bx.append(params[idx + 1]); idx += 2
    w_feat, b_feat, w_dens, b_dens, w_d, b_d, w_col, b_col = params[idx:idx + 8]

    input_x = x[:, :INPUT_CH_X]
    input_d = x[:, INPUT_CH_X:]

    out = input_x
    for i in range(D):
        out = out @ wx[i] + bx[i]
        out = jnp.maximum(out, 0.0)
        if i in SKIPS:
            out = jnp.concatenate([input_x, out], axis=-1)

    density = out @ w_dens + b_dens
    feature = out @ w_feat + b_feat
    h = jnp.concatenate([feature, input_d], axis=-1)
    h = jnp.maximum(h @ w_d + b_d, 0.0)
    color = h @ w_col + b_col
    return jnp.concatenate([color, density], axis=-1)


if __name__ == "__main__":
    key = jax.random.PRNGKey(0)
    kx, kp = jax.random.split(key)

    x = jax.random.normal(kx, (N, INPUT_CH_X + INPUT_CH_D), jnp.float32)
    params = init_params(kp)

    result = jax.block_until_ready(nerf_pallas(x, params))
    expected = nerf_reference(x, params)

    assert result.shape == (N, 4)
    # bf16 MXU operands (f32 accumulation) over a 12-matmul chain: relaxed tol.
    err = float(jnp.max(jnp.abs(result - expected)))
    assert jnp.allclose(result, expected, atol=1e-1, rtol=1e-1), err
    print("KERNEL_OK")
</pallas_src>

<mosaic_0001>
module attributes {stable_mosaic.version = 11 : i64} {
  func.func @nerf_kernel(%arg0: i32, %arg1: memref<256x128xbf16, #tpu.memory_space<vmem>>, %arg2: memref<1792x128xbf16, #tpu.memory_space<vmem>>, %arg3: memref<16x128xf32, #tpu.memory_space<vmem>>, %arg4: memref<256x128xf32, #tpu.memory_space<vmem>>) attributes {dimension_semantics = [#tpu.dimension_semantics<parallel>], iteration_bounds = array<i64: 2>, scalar_prefetch = 0 : i64, scratch_operands = 0 : i64, tpu.core_type = #tpu.core_type<tc>, window_params = [{transform_indices = @transform_0, window_bounds = array<i64: 256, 128>}, {pipeline_mode = #tpu.pipeline_mode<synchronous>, transform_indices = @transform_1, window_bounds = array<i64: 1792, 128>}, {pipeline_mode = #tpu.pipeline_mode<synchronous>, transform_indices = @transform_2, window_bounds = array<i64: 16, 128>}, {transform_indices = @transform_3, window_bounds = array<i64: 256, 128>}]} {
    %c0 = arith.constant 0 : index
    %c0_0 = arith.constant 0 : index
    %0 = vector.load %arg1[%c0, %c0_0] : memref<256x128xbf16, #tpu.memory_space<vmem>>, vector<256x128xbf16>
    %c0_1 = arith.constant 0 : index
    %c0_2 = arith.constant 0 : index
    %1 = vector.load %arg2[%c0_1, %c0_2] : memref<1792x128xbf16, #tpu.memory_space<vmem>>, vector<128x128xbf16>
    %cst = arith.constant dense<0.000000e+00> : vector<256x128xf32>
    %2 = tpu.matmul %0, %1, %cst {dimension_numbers = #tpu.dot_dimension_numbers<[1], [0], [0], [1], [0, 0, 1, 1], [], []>} : vector<256x128xbf16>, vector<128x128xbf16>, vector<256x128xf32> -> vector<256x128xf32>
    %c0_3 = arith.constant 0 : index
    %c0_4 = arith.constant 0 : index
    %3 = vector.load %arg3[%c0_3, %c0_4] : memref<16x128xf32, #tpu.memory_space<vmem>>, vector<1x128xf32>
    %4 = vector.broadcast %3 : vector<1x128xf32> to vector<256x128xf32>
    %5 = arith.addf %2, %4 : vector<256x128xf32>
    %cst_5 = arith.constant 0.000000e+00 : f32
    %6 = vector.broadcast %cst_5 : f32 to vector<256x128xf32>
    %7 = arith.maximumf %5, %6 : vector<256x128xf32>
    %8 = arith.truncf %7 : vector<256x128xf32> to vector<256x128xbf16>
    %c128 = arith.constant 128 : index
    %c0_6 = arith.constant 0 : index
    %9 = vector.load %arg2[%c128, %c0_6] : memref<1792x128xbf16, #tpu.memory_space<vmem>>, vector<128x128xbf16>
    %cst_7 = arith.constant dense<0.000000e+00> : vector<256x128xf32>
    %10 = tpu.matmul %8, %9, %cst_7 {dimension_numbers = #tpu.dot_dimension_numbers<[1], [0], [0], [1], [0, 0, 1, 1], [], []>} : vector<256x128xbf16>, vector<128x128xbf16>, vector<256x128xf32> -> vector<256x128xf32>
    %c1 = arith.constant 1 : index
    %c0_8 = arith.constant 0 : index
    %11 = vector.load %arg3[%c1, %c0_8] : memref<16x128xf32, #tpu.memory_space<vmem>>, vector<1x128xf32>
    %12 = vector.broadcast %11 : vector<1x128xf32> to vector<256x128xf32>
    %13 = arith.addf %10, %12 : vector<256x128xf32>
    %cst_9 = arith.constant 0.000000e+00 : f32
    %14 = vector.broadcast %cst_9 : f32 to vector<256x128xf32>
    %15 = arith.maximumf %13, %14 : vector<256x128xf32>
    %16 = arith.truncf %15 : vector<256x128xf32> to vector<256x128xbf16>
    %c256 = arith.constant 256 : index
    %c0_10 = arith.constant 0 : index
    %17 = vector.load %arg2[%c256, %c0_10] : memref<1792x128xbf16, #tpu.memory_space<vmem>>, vector<128x128xbf16>
    %cst_11 = arith.constant dense<0.000000e+00> : vector<256x128xf32>
    %18 = tpu.matmul %16, %17, %cst_11 {dimension_numbers = #tpu.dot_dimension_numbers<[1], [0], [0], [1], [0, 0, 1, 1], [], []>} : vector<256x128xbf16>, vector<128x128xbf16>, vector<256x128xf32> -> vector<256x128xf32>
    %c2 = arith.constant 2 : index
    %c0_12 = arith.constant 0 : index
    %19 = vector.load %arg3[%c2, %c0_12] : memref<16x128xf32, #tpu.memory_space<vmem>>, vector<1x128xf32>
    %20 = vector.broadcast %19 : vector<1x128xf32> to vector<256x128xf32>
    %21 = arith.addf %18, %20 : vector<256x128xf32>
    %cst_13 = arith.constant 0.000000e+00 : f32
    %22 = vector.broadcast %cst_13 : f32 to vector<256x128xf32>
    %23 = arith.maximumf %21, %22 : vector<256x128xf32>
    %24 = arith.truncf %23 : vector<256x128xf32> to vector<256x128xbf16>
    %c384 = arith.constant 384 : index
    %c0_14 = arith.constant 0 : index
    %25 = vector.load %arg2[%c384, %c0_14] : memref<1792x128xbf16, #tpu.memory_space<vmem>>, vector<128x128xbf16>
    %cst_15 = arith.constant dense<0.000000e+00> : vector<256x128xf32>
    %26 = tpu.matmul %24, %25, %cst_15 {dimension_numbers = #tpu.dot_dimension_numbers<[1], [0], [0], [1], [0, 0, 1, 1], [], []>} : vector<256x128xbf16>, vector<128x128xbf16>, vector<256x128xf32> -> vector<256x128xf32>
    %c3 = arith.constant 3 : index
    %c0_16 = arith.constant 0 : index
    %27 = vector.load %arg3[%c3, %c0_16] : memref<16x128xf32, #tpu.memory_space<vmem>>, vector<1x128xf32>
    %28 = vector.broadcast %27 : vector<1x128xf32> to vector<256x128xf32>
    %29 = arith.addf %26, %28 : vector<256x128xf32>
    %cst_17 = arith.constant 0.000000e+00 : f32
    %30 = vector.broadcast %cst_17 : f32 to vector<256x128xf32>
    %31 = arith.maximumf %29, %30 : vector<256x128xf32>
    %32 = arith.truncf %31 : vector<256x128xf32> to vector<256x128xbf16>
    %c512 = arith.constant 512 : index
    %c0_18 = arith.constant 0 : index
    %33 = vector.load %arg2[%c512, %c0_18] : memref<1792x128xbf16, #tpu.memory_space<vmem>>, vector<128x128xbf16>
    %cst_19 = arith.constant dense<0.000000e+00> : vector<256x128xf32>
    %34 = tpu.matmul %32, %33, %cst_19 {dimension_numbers = #tpu.dot_dimension_numbers<[1], [0], [0], [1], [0, 0, 1, 1], [], []>} : vector<256x128xbf16>, vector<128x128xbf16>, vector<256x128xf32> -> vector<256x128xf32>
    %c4 = arith.constant 4 : index
    %c0_20 = arith.constant 0 : index
    %35 = vector.load %arg3[%c4, %c0_20] : memref<16x128xf32, #tpu.memory_space<vmem>>, vector<1x128xf32>
    %36 = vector.broadcast %35 : vector<1x128xf32> to vector<256x128xf32>
    %37 = arith.addf %34, %36 : vector<256x128xf32>
    %cst_21 = arith.constant 0.000000e+00 : f32
    %38 = vector.broadcast %cst_21 : f32 to vector<256x128xf32>
    %39 = arith.maximumf %37, %38 : vector<256x128xf32>
    %c640 = arith.constant 640 : index
    %c0_22 = arith.constant 0 : index
    %40 = vector.load %arg2[%c640, %c0_22] : memref<1792x128xbf16, #tpu.memory_space<vmem>>, vector<128x128xbf16>
    %cst_23 = arith.constant dense<0.000000e+00> : vector<256x128xf32>
    %41 = tpu.matmul %0, %40, %cst_23 {dimension_numbers = #tpu.dot_dimension_numbers<[1], [0], [0], [1], [0, 0, 1, 1], [], []>} : vector<256x128xbf16>, vector<128x128xbf16>, vector<256x128xf32> -> vector<256x128xf32>
    %42 = arith.truncf %39 : vector<256x128xf32> to vector<256x128xbf16>
    %c768 = arith.constant 768 : index
    %c0_24 = arith.constant 0 : index
    %43 = vector.load %arg2[%c768, %c0_24] : memref<1792x128xbf16, #tpu.memory_space<vmem>>, vector<128x128xbf16>
    %cst_25 = arith.constant dense<0.000000e+00> : vector<256x128xf32>
    %44 = tpu.matmul %42, %43, %cst_25 {dimension_numbers = #tpu.dot_dimension_numbers<[1], [0], [0], [1], [0, 0, 1, 1], [], []>} : vector<256x128xbf16>, vector<128x128xbf16>, vector<256x128xf32> -> vector<256x128xf32>
    %45 = arith.addf %41, %44 : vector<256x128xf32>
    %c5 = arith.constant 5 : index
    %c0_26 = arith.constant 0 : index
    %46 = vector.load %arg3[%c5, %c0_26] : memref<16x128xf32, #tpu.memory_space<vmem>>, vector<1x128xf32>
    %47 = vector.broadcast %46 : vector<1x128xf32> to vector<256x128xf32>
    %48 = arith.addf %45, %47 : vector<256x128xf32>
    %cst_27 = arith.constant 0.000000e+00 : f32
    %49 = vector.broadcast %cst_27 : f32 to vector<256x128xf32>
    %50 = arith.maximumf %48, %49 : vector<256x128xf32>
    %51 = arith.truncf %50 : vector<256x128xf32> to vector<256x128xbf16>
    %c896 = arith.constant 896 : index
    %c0_28 = arith.constant 0 : index
    %52 = vector.load %arg2[%c896, %c0_28] : memref<1792x128xbf16, #tpu.memory_space<vmem>>, vector<128x128xbf16>
    %cst_29 = arith.constant dense<0.000000e+00> : vector<256x128xf32>
    %53 = tpu.matmul %51, %52, %cst_29 {dimension_numbers = #tpu.dot_dimension_numbers<[1], [0], [0], [1], [0, 0, 1, 1], [], []>} : vector<256x128xbf16>, vector<128x128xbf16>, vector<256x128xf32> -> vector<256x128xf32>
    %c6 = arith.constant 6 : index
    %c0_30 = arith.constant 0 : index
    %54 = vector.load %arg3[%c6, %c0_30] : memref<16x128xf32, #tpu.memory_space<vmem>>, vector<1x128xf32>
    %55 = vector.broadcast %54 : vector<1x128xf32> to vector<256x128xf32>
    %56 = arith.addf %53, %55 : vector<256x128xf32>
    %cst_31 = arith.constant 0.000000e+00 : f32
    %57 = vector.broadcast %cst_31 : f32 to vector<256x128xf32>
    %58 = arith.maximumf %56, %57 : vector<256x128xf32>
    %59 = arith.truncf %58 : vector<256x128xf32> to vector<256x128xbf16>
    %c1024 = arith.constant 1024 : index
    %c0_32 = arith.constant 0 : index
    %60 = vector.load %arg2[%c1024, %c0_32] : memref<1792x128xbf16, #tpu.memory_space<vmem>>, vector<128x128xbf16>
    %cst_33 = arith.constant dense<0.000000e+00> : vector<256x128xf32>
    %61 = tpu.matmul %59, %60, %cst_33 {dimension_numbers = #tpu.dot_dimension_numbers<[1], [0], [0], [1], [0, 0, 1, 1], [], []>} : vector<256x128xbf16>, vector<128x128xbf16>, vector<256x128xf32> -> vector<256x128xf32>
    %c7 = arith.constant 7 : index
    %c0_34 = arith.constant 0 : index
    %62 = vector.load %arg3[%c7, %c0_34] : memref<16x128xf32, #tpu.memory_space<vmem>>, vector<1x128xf32>
    %63 = vector.broadcast %62 : vector<1x128xf32> to vector<256x128xf32>
    %64 = arith.addf %61, %63 : vector<256x128xf32>
    %cst_35 = arith.constant 0.000000e+00 : f32
    %65 = vector.broadcast %cst_35 : f32 to vector<256x128xf32>
    %66 = arith.maximumf %64, %65 : vector<256x128xf32>
    %67 = arith.truncf %66 : vector<256x128xf32> to vector<256x128xbf16>
    %c1152 = arith.constant 1152 : index
    %c0_36 = arith.constant 0 : index
    %68 = vector.load %arg2[%c1152, %c0_36] : memref<1792x128xbf16, #tpu.memory_space<vmem>>, vector<128x128xbf16>
    %cst_37 = arith.constant dense<0.000000e+00> : vector<256x128xf32>
    %69 = tpu.matmul %67, %68, %cst_37 {dimension_numbers = #tpu.dot_dimension_numbers<[1], [0], [0], [1], [0, 0, 1, 1], [], []>} : vector<256x128xbf16>, vector<128x128xbf16>, vector<256x128xf32> -> vector<256x128xf32>
    %c8 = arith.constant 8 : index
    %c0_38 = arith.constant 0 : index
    %70 = vector.load %arg3[%c8, %c0_38] : memref<16x128xf32, #tpu.memory_space<vmem>>, vector<1x128xf32>
    %71 = vector.broadcast %70 : vector<1x128xf32> to vector<256x128xf32>
    %72 = arith.addf %69, %71 : vector<256x128xf32>
    %73 = arith.truncf %72 : vector<256x128xf32> to vector<256x128xbf16>
    %c1280 = arith.constant 1280 : index
    %c0_39 = arith.constant 0 : index
    %74 = vector.load %arg2[%c1280, %c0_39] : memref<1792x128xbf16, #tpu.memory_space<vmem>>, vector<128x128xbf16>
    %cst_40 = arith.constant dense<0.000000e+00> : vector<256x128xf32>
    %75 = tpu.matmul %73, %74, %cst_40 {dimension_numbers = #tpu.dot_dimension_numbers<[1], [0], [0], [1], [0, 0, 1, 1], [], []>} : vector<256x128xbf16>, vector<128x128xbf16>, vector<256x128xf32> -> vector<256x128xf32>
    %c1408 = arith.constant 1408 : index
    %c0_41 = arith.constant 0 : index
    %76 = vector.load %arg2[%c1408, %c0_41] : memref<1792x128xbf16, #tpu.memory_space<vmem>>, vector<128x128xbf16>
    %cst_42 = arith.constant dense<0.000000e+00> : vector<256x128xf32>
    %77 = tpu.matmul %0, %76, %cst_42 {dimension_numbers = #tpu.dot_dimension_numbers<[1], [0], [0], [1], [0, 0, 1, 1], [], []>} : vector<256x128xbf16>, vector<128x128xbf16>, vector<256x128xf32> -> vector<256x128xf32>
    %78 = arith.addf %75, %77 : vector<256x128xf32>
    %c9 = arith.constant 9 : index
    %c0_43 = arith.constant 0 : index
    %79 = vector.load %arg3[%c9, %c0_43] : memref<16x128xf32, #tpu.memory_space<vmem>>, vector<1x128xf32>
    %80 = vector.broadcast %79 : vector<1x128xf32> to vector<256x128xf32>
    %81 = arith.addf %78, %80 : vector<256x128xf32>
    %cst_44 = arith.constant 0.000000e+00 : f32
    %82 = vector.broadcast %cst_44 : f32 to vector<256x128xf32>
    %83 = arith.maximumf %81, %82 : vector<256x128xf32>
    %84 = arith.truncf %83 : vector<256x128xf32> to vector<256x128xbf16>
    %c1536 = arith.constant 1536 : index
    %c0_45 = arith.constant 0 : index
    %85 = vector.load %arg2[%c1536, %c0_45] : memref<1792x128xbf16, #tpu.memory_space<vmem>>, vector<128x128xbf16>
    %cst_46 = arith.constant dense<0.000000e+00> : vector<256x128xf32>
    %86 = tpu.matmul %84, %85, %cst_46 {dimension_numbers = #tpu.dot_dimension_numbers<[1], [0], [0], [1], [0, 0, 1, 1], [], []>} : vector<256x128xbf16>, vector<128x128xbf16>, vector<256x128xf32> -> vector<256x128xf32>
    %c1664 = arith.constant 1664 : index
    %c0_47 = arith.constant 0 : index
    %87 = vector.load %arg2[%c1664, %c0_47] : memref<1792x128xbf16, #tpu.memory_space<vmem>>, vector<128x128xbf16>
    %cst_48 = arith.constant dense<0.000000e+00> : vector<256x128xf32>
    %88 = tpu.matmul %67, %87, %cst_48 {dimension_numbers = #tpu.dot_dimension_numbers<[1], [0], [0], [1], [0, 0, 1, 1], [], []>} : vector<256x128xbf16>, vector<128x128xbf16>, vector<256x128xf32> -> vector<256x128xf32>
    %89 = arith.addf %86, %88 : vector<256x128xf32>
    %c10 = arith.constant 10 : index
    %c0_49 = arith.constant 0 : index
    %90 = vector.load %arg3[%c10, %c0_49] : memref<16x128xf32, #tpu.memory_space<vmem>>, vector<1x128xf32>
    %91 = vector.broadcast %90 : vector<1x128xf32> to vector<256x128xf32>
    %92 = arith.addf %89, %91 : vector<256x128xf32>
    %c0_50 = arith.constant 0 : index
    %c0_51 = arith.constant 0 : index
    %93 = vector.load %arg4[%c0_50, %c0_51] : memref<256x128xf32, #tpu.memory_space<vmem>>, vector<256x128xf32>
    tpu.vector_store %arg4[%c0_50, %c0_51], %92 {strides = array<i32>} : memref<256x128xf32, #tpu.memory_space<vmem>>, vector<256x128xf32>,
    return
  }
  func.func @transform_0(%arg0: i32) -> (i32, i32) {
    %c0_i32 = arith.constant 0 : i32
    %c0_i32_0 = arith.constant 0 : i32
    return %arg0, %c0_i32 : i32, i32
  }
  func.func @transform_1(%arg0: i32) -> (i32, i32) {
    %c0_i32 = arith.constant 0 : i32
    %c0_i32_0 = arith.constant 0 : i32
    %c0_i32_1 = arith.constant 0 : i32
    return %c0_i32, %c0_i32_0 : i32, i32
  }
  func.func @transform_2(%arg0: i32) -> (i32, i32) {
    %c0_i32 = arith.constant 0 : i32
    %c0_i32_0 = arith.constant 0 : i32
    %c0_i32_1 = arith.constant 0 : i32
    return %c0_i32, %c0_i32_0 : i32, i32
  }
  func.func @transform_3(%arg0: i32) -> (i32, i32) {
    %c0_i32 = arith.constant 0 : i32
    %c0_i32_0 = arith.constant 0 : i32
    return %arg0, %c0_i32 : i32, i32
  }
}

</mosaic_0001>

<llo_original>
// kernel: tpu_custom_call.1
$region0: #{tpu_custom_call.1}
  #allocation0 [shape = 'u32[]', space=smem, size = 0x4, offset = 0x4, fixed_abs, tag = 'smem constant byte address 0x4 - core index']
  #allocation1 [shape = 'u32[144,128]{1,0:T(1,128)}', space=vmem, size = 0x12000, scoped, tag = 'internal scratch']
  %s0 = inlined_call_operand.hbm [shape: bf16[512,128], index: 0, kind: input, shape index: {}]
  %s1 = inlined_call_operand.hbm [shape: bf16[1792,128], index: 1, kind: input, shape index: {}]
  %s2 = inlined_call_operand.hbm [shape: f32[16,128], index: 2, kind: input, shape index: {}]
  %s3 = inlined_call_operand.hbm [shape: f32[512,128], index: 3, kind: output, shape index: {}]
  %s4 = sld [smem:[#allocation0]]
  $region57: #{tpu_custom_call.1} parent=0
    _
  %s6 = ssub.s32 1, %s4
  %s7 = scalar_select 0, %s6, %s4
  $region1: #{tpu_custom_call.1} parent=0
    #allocation2 [shape = 'u8[131072]{0}', space=vmem, size = 0x20000, scoped, tag = 'input window, operand 0']
    #allocation3 [shape = 's32[2]{0}', space=sflag, size = 0x8, scoped, tag = 'scoped memory for tpu_custom_call.1']
    #allocation4 [shape = 's32[2]{0}', space=sflag, size = 0x8, scoped, tag = 'scoped memory for tpu_custom_call.1']
    #allocation5 [shape = 'u8[458752]{0}', space=vmem, size = 0x70000, scoped, tag = 'input window, operand 1, single buffered']
    #allocation6 [shape = 's32[1]{0}', space=sflag, size = 0x4, scoped, tag = 'scoped memory for tpu_custom_call.1']
    #allocation7 [shape = 'u8[8192]{0}', space=vmem, size = 0x2000, scoped, tag = 'input window, operand 2, single buffered']
    #allocation8 [shape = 'u8[262144]{0}', space=vmem, size = 0x40000, scoped, tag = 'output window, operand 0']
    %8 = vsyncpa [#allocation3], 0
    %s9 = scalar_lea.sflag [#allocation3], 1
    %10 = vsyncpa %s9, 0
    %11 = vsyncpa [#allocation6], 0
    %12 = vsyncpa [#allocation4], 0
    %s13 = scalar_lea.sflag [#allocation4], 1
    %14 = vsyncpa %s13, 0
    loop: start=0, step=1, limit=4
    $region2: #{tpu_custom_call.1} parent=1 // loop_pre_header
      _
    $region3: #{tpu_custom_call.1} parent=1 // loop_header
      %s16 = sphi 0, %s20
      %p17 = scmp.ge.s32.totalorder %s16, 4
      %s26 = sphi 0, %s28
      %s29 = sphi 0, %s26
      %s30 = sphi 0, %s29
      %s46 = sphi 0, %s30
      %s50 = sphi 0, %s50
      %s52 = sphi 0, %s50
      %s53 = sphi 0, %s52
      %s67 = sphi 0, %s53
      %s71 = sphi 0, %s71
      %s73 = sphi 0, %s71
      %s74 = sphi 0, %s73
      %s88 = sphi 0, %s74
      %s94 = sphi 0, %s96
      %s97 = sphi 0, %s94
      %s98 = sphi 0, %s97
      %s114 = sphi 0, %s98
    $region4: #{tpu_custom_call.1} parent=1 // loop_header_branch
      %19 = sbr.rel (%p17) target = $region8
    $region5: #{tpu_custom_call.1} parent=1 // loop_body
      %s21 = ssub.s32 %s16, 1
      %s22 = ssub.s32 %s16, 2
      %s23 = sadd.s32 %s16, 1
      %s24 = ssub.s32 %s16, %s23
      %p25 = scmp.eq.s32.totalorder %s24, 0
      %s27 = sadd.s32 %s26, 1
      %s28 = scalar_select %p25, %s26, %s27
      %p31 = pneg %p25
      %p32 = scmp.eq.s32.totalorder %s16, 1
      %p33 = por %p31, %p32
      %p34 = scmp.ne.s32.totalorder %s26, %s29
      %p35 = scmp.eq.s32.totalorder %s16, 0
      %p36 = por %p34, %p35
      %p37 = scmp.ne.s32.totalorder %s26, %s29
      %p38 = scmp.eq.s32.totalorder %s21, 1
      %p39 = por %p37, %p38
      %p40 = scmp.ne.s32.totalorder %s29, %s30
      %p41 = scmp.eq.s32.totalorder %s21, 0
      %p42 = por %p40, %p41
      %p43 = scmp.ne.s32.totalorder %s29, %s30
      %p44 = scmp.eq.s32.totalorder %s22, 1
      %p45 = por %p43, %p44
      %p47 = scmp.ne.s32.totalorder %s30, %s46
      %p48 = scmp.eq.s32.totalorder %s22, 0
      %p49 = por %p47, %p48
      %s51 = sadd.s32 %s50, 1
      %p54 = scmp.eq.s32.totalorder %s16, 1
      %p55 = scmp.ne.s32.totalorder %s50, %s52
      %p56 = scmp.eq.s32.totalorder %s16, 0
      %p57 = por %p55, %p56
      %p58 = scmp.ne.s32.totalorder %s50, %s52
      %p59 = scmp.eq.s32.totalorder %s21, 1
      %p60 = por %p58, %p59
      %p61 = scmp.ne.s32.totalorder %s52, %s53
      %p62 = scmp.eq.s32.totalorder %s21, 0
      %p63 = por %p61, %p62
      %p64 = scmp.ne.s32.totalorder %s52, %s53
      %p65 = scmp.eq.s32.totalorder %s22, 1
      %p66 = por %p64, %p65
      %p68 = scmp.ne.s32.totalorder %s53, %s67
      %p69 = scmp.eq.s32.totalorder %s22, 0
      %p70 = por %p68, %p69
      %s72 = sadd.s32 %s71, 1
      %p75 = scmp.eq.s32.totalorder %s16, 1
      %p76 = scmp.ne.s32.totalorder %s71, %s73
      %p77 = scmp.eq.s32.totalorder %s16, 0
      %p78 = por %p76, %p77
      %p79 = scmp.ne.s32.totalorder %s71, %s73
      %p80 = scmp.eq.s32.totalorder %s21, 1
      %p81 = por %p79, %p80
      %p82 = scmp.ne.s32.totalorder %s73, %s74
      %p83 = scmp.eq.s32.totalorder %s21, 0
      %p84 = por %p82, %p83
      %p85 = scmp.ne.s32.totalorder %s73, %s74
      %p86 = scmp.eq.s32.totalorder %s22, 1
      %p87 = por %p85, %p86
      %p89 = scmp.ne.s32.totalorder %s74, %s88
      %p90 = scmp.eq.s32.totalorder %s22, 0
      %p91 = por %p89, %p90
      %s92 = ssub.s32 %s16, %s23
      %p93 = scmp.eq.s32.totalorder %s92, 0
      %s95 = sadd.s32 %s94, 1
      %s96 = scalar_select %p93, %s94, %s95
      %p99 = pneg %p93
      %p100 = scmp.eq.s32.totalorder %s16, 1
      %p101 = por %p99, %p100
      %p102 = scmp.ne.s32.totalorder %s94, %s97
      %p103 = scmp.eq.s32.totalorder %s16, 0
      %p104 = por %p102, %p103
      %p105 = scmp.ne.s32.totalorder %s94, %s97
      %p106 = scmp.eq.s32.totalorder %s21, 1
      %p107 = por %p105, %p106
      %p108 = scmp.ne.s32.totalorder %s97, %s98
      %p109 = scmp.eq.s32.totalorder %s21, 0
      %p110 = por %p108, %p109
      %p111 = scmp.ne.s32.totalorder %s97, %s98
      %p112 = scmp.eq.s32.totalorder %s22, 1
      %p113 = por %p111, %p112
      %p115 = scmp.ne.s32.totalorder %s98, %s114
      %p116 = scmp.eq.s32.totalorder %s22, 0
      %p117 = por %p115, %p116
      %p118 = scmp.le.s32.totalorder 1, %s16
      %p119 = scmp.lt.s32.totalorder %s16, 3
      %p120 = pnand %p118, %p119
      %p121 = pneg %p120
      // Predicated region
      $region9: #{tpu_custom_call.1} parent=5 // pred_check
        _
      $region10: #{tpu_custom_call.1} parent=5 // pred_check_branch
        %123 = sbr.rel (%p120) target = $region12
      $region11: #{tpu_custom_call.1} parent=5 // pred_region
        %s124 = ssub.s32 %s16, 1
        // Predicated region
        $region13: #{tpu_custom_call.1} parent=11 // pred_check
          %p125 = pneg %p63
        $region14: #{tpu_custom_call.1} parent=11 // pred_check_branch
          %127 = sbr.rel (%p125) target = $region16
        $region15: #{tpu_custom_call.1} parent=11 // pred_region
          %s129 = ssub.s32 14336, 14336
          %130 = vsyncadd [#allocation6], %s129
          %s131 = sshll.u32 [#allocation5], 4
          %s132 = int_to_ptr.vmem [resolvable:$true] %s131
          %137 = dma.hbm_to_vmem [thread:$0]  %s1, 14336, %s132, [#allocation6], 64, 64, 4
        $region16: #{tpu_custom_call.1} parent=11 // pred_fallthru
          _
        // Predicated region
        $region17: #{tpu_custom_call.1} parent=11 // pred_check
          %p138 = pneg %p84
        $region18: #{tpu_custom_call.1} parent=11 // pred_check_branch
          %140 = sbr.rel (%p138) target = $region20
        $region19: #{tpu_custom_call.1} parent=11 // pred_region
          %s142 = ssub.s32 256, 256
          %143 = vsyncadd [#allocation6], %s142
          %s144 = sshll.u32 [#allocation7], 4
          %s145 = int_to_ptr.vmem [resolvable:$true] %s144
          %150 = dma.hbm_to_vmem [thread:$0]  %s2, 256, %s145, [#allocation6], 128, 128, 8
        $region20: #{tpu_custom_call.1} parent=11 // pred_fallthru
          _
      $region12: #{tpu_custom_call.1} parent=5 // pred_fallthru
        _
      %p151 = scmp.lt.s32.totalorder %s16, 2
      // Predicated region
      $region21: #{tpu_custom_call.1} parent=5 // pred_check
        %p152 = pneg %p151
      $region22: #{tpu_custom_call.1} parent=5 // pred_check_branch
        %154 = sbr.rel (%p152) target = $region24
      $region23: #{tpu_custom_call.1} parent=5 // pred_region
        // Predicated region
        $region25: #{tpu_custom_call.1} parent=23 // pred_check
          %p155 = pneg %p36
        $region26: #{tpu_custom_call.1} parent=23 // pred_check_branch
          %157 = sbr.rel (%p155) target = $region28
        $region27: #{tpu_custom_call.1} parent=23 // pred_region
          %s158 = sand.u32 %s26, 1
          %s159 = scalar_lea.sflag [#allocation3], %s158
          %s160 = sand.u32 %s26, 1
          %s161 = smul.addr %s160, 128
          %s162 = scalar_lea.vmem [#allocation2], %s161
          %s163 = smul.u32 32, %s16
          %s165 = ssub.s32 2048, 2048
          %166 = vsyncadd %s159, %s165
          %s167 = smul.addr %s163, 64
          %s168 = scalar_lea.hbm %s0, %s167
          %s169 = sshll.u32 %s162, 4
          %s170 = int_to_ptr.vmem [resolvable:$true] %s169
          %175 = dma.hbm_to_vmem [thread:$0]  %s168, 2048, %s170, %s159, 64, 64, 4
        $region28: #{tpu_custom_call.1} parent=23 // pred_fallthru
          _
      $region24: #{tpu_custom_call.1} parent=5 // pred_fallthru
        _
      %p176 = scmp.le.s32.totalorder 1, %s16
      %p177 = scmp.lt.s32.totalorder %s16, 3
      %p178 = pnand %p176, %p177
      %p179 = pneg %p178
      // Predicated region
      $region29: #{tpu_custom_call.1} parent=5 // pred_check
        _
      $region30: #{tpu_custom_call.1} parent=5 // pred_check_branch
        %181 = sbr.rel (%p178) target = $region32
      $region31: #{tpu_custom_call.1} parent=5 // pred_region
        %s182 = ssub.s32 %s16, 1
        %s183 = sand.u32 %s29, 1
        %s184 = scalar_lea.sflag [#allocation3], %s183
        %s185 = sand.u32 %s29, 1
        %s186 = smul.addr %s185, 128
        %s187 = scalar_lea.vmem [#allocation2], %s186
        // Predicated region
        $region33: #{tpu_custom_call.1} parent=31 // pred_check
          %p188 = pneg %p42
        $region34: #{tpu_custom_call.1} parent=31 // pred_check_branch
          %190 = sbr.rel (%p188) target = $region36
        $region35: #{tpu_custom_call.1} parent=31 // pred_region
          %191 = dma.done %s184, 2048
        $region36: #{tpu_custom_call.1} parent=31 // pred_fallthru
          _
        // Predicated region
        $region37: #{tpu_custom_call.1} parent=31 // pred_check
          %p192 = pneg %p63
        $region38: #{tpu_custom_call.1} parent=31 // pred_check_branch
          %194 = sbr.rel (%p192) target = $region40
        $region39: #{tpu_custom_call.1} parent=31 // pred_region
          %195 = dma.done [#allocation6], 14336
        $region40: #{tpu_custom_call.1} parent=31 // pred_fallthru
          _
        // Predicated region
        $region41: #{tpu_custom_call.1} parent=31 // pred_check
          %p196 = pneg %p84
        $region42: #{tpu_custom_call.1} parent=31 // pred_check_branch
          %198 = sbr.rel (%p196) target = $region44
        $region43: #{tpu_custom_call.1} parent=31 // pred_region
          %199 = dma.done [#allocation6], 256
        $region44: #{tpu_custom_call.1} parent=31 // pred_fallthru
          _
        %s200 = sand.u32 %s29, 1
        %s201 = scalar_lea.sflag [#allocation3], %s200
        %s202 = sand.u32 %s29, 1
        %s203 = smul.addr %s202, 128
        %s204 = scalar_lea.vmem [#allocation2], %s203
        %p205 = pneg %p42
        %p206 = pneg %p39
        %p207 = pneg %p63
        %p208 = pneg %p60
        %p209 = pneg %p84
        %p210 = pneg %p81
        %p211 = pneg %p110
        %p212 = pneg %p107
        %s213 = sand.u32 %s97, 1
        %s214 = scalar_lea.sflag [#allocation4], %s213
        %s215 = sand.u32 %s97, 1
        %s216 = smul.addr %s215, 256
        %s217 = scalar_lea.vmem [#allocation8], %s216
        %s218 = smul.u32 32, %s21
        %s219 = smul.u32 32, %s21
        %v221 = vld [vmem:[%s187] sm:$0xf]
        %v222 = vld [vmem:[%s187 + $0x4] sm:$0xf]
        %v223 = vld [vmem:[%s187 + $0x8] sm:$0xf]
        %v224 = vld [vmem:[%s187 + $0xc] sm:$0xf]
        %v225 = vld [vmem:[%s187 + $0x10] sm:$0xf]
        %v226 = vld [vmem:[%s187 + $0x14] sm:$0xf]
        %v227 = vld [vmem:[%s187 + $0x18] sm:$0xf]
        %v228 = vld [vmem:[%s187 + $0x1c] sm:$0xf]
        %v229 = vld [vmem:[%s187 + $0x20] sm:$0xf]
        %v230 = vld [vmem:[%s187 + $0x24] sm:$0xf]
        %v231 = vld [vmem:[%s187 + $0x28] sm:$0xf]
        %v232 = vld [vmem:[%s187 + $0x2c] sm:$0xf]
        %v233 = vld [vmem:[%s187 + $0x30] sm:$0xf]
        %v234 = vld [vmem:[%s187 + $0x34] sm:$0xf]
        %v235 = vld [vmem:[%s187 + $0x38] sm:$0xf]
        %v236 = vld [vmem:[%s187 + $0x3c] sm:$0xf]
        %v237 = vld [vmem:[%s187 + $0x40] sm:$0xf]
        %v238 = vld [vmem:[%s187 + $0x44] sm:$0xf]
        %v239 = vld [vmem:[%s187 + $0x48] sm:$0xf]
        %v240 = vld [vmem:[%s187 + $0x4c] sm:$0xf]
        %v241 = vld [vmem:[%s187 + $0x50] sm:$0xf]
        %v242 = vld [vmem:[%s187 + $0x54] sm:$0xf]
        %v243 = vld [vmem:[%s187 + $0x58] sm:$0xf]
        %v244 = vld [vmem:[%s187 + $0x5c] sm:$0xf]
        %v245 = vld [vmem:[%s187 + $0x60] sm:$0xf]
        %v246 = vld [vmem:[%s187 + $0x64] sm:$0xf]
        %v247 = vld [vmem:[%s187 + $0x68] sm:$0xf]
        %v248 = vld [vmem:[%s187 + $0x6c] sm:$0xf]
        %v249 = vld [vmem:[%s187 + $0x70] sm:$0xf]
        %v250 = vld [vmem:[%s187 + $0x74] sm:$0xf]
        %v251 = vld [vmem:[%s187 + $0x78] sm:$0xf]
        %v252 = vld [vmem:[%s187 + $0x7c] sm:$0xf]
        %v253 = vld [vmem:[#allocation5] sm:$0xf]
        %v254 = vld [vmem:[#allocation5 + $0x4] sm:$0xf]
        %v255 = vld [vmem:[#allocation5 + $0x8] sm:$0xf]
        %v256 = vld [vmem:[#allocation5 + $0xc] sm:$0xf]
        %v257 = vld [vmem:[#allocation5 + $0x10] sm:$0xf]
        %v258 = vld [vmem:[#allocation5 + $0x14] sm:$0xf]
        %v259 = vld [vmem:[#allocation5 + $0x18] sm:$0xf]
        %v260 = vld [vmem:[#allocation5 + $0x1c] sm:$0xf]
        %v261 = vld [vmem:[#allocation5 + $0x20] sm:$0xf]
        %v262 = vld [vmem:[#allocation5 + $0x24] sm:$0xf]
        %v263 = vld [vmem:[#allocation5 + $0x28] sm:$0xf]
        %v264 = vld [vmem:[#allocation5 + $0x2c] sm:$0xf]
        %v265 = vld [vmem:[#allocation5 + $0x30] sm:$0xf]
        %v266 = vld [vmem:[#allocation5 + $0x34] sm:$0xf]
        %v267 = vld [vmem:[#allocation5 + $0x38] sm:$0xf]
        %v268 = vld [vmem:[#allocation5 + $0x3c] sm:$0xf]
        %v269 = vld [vmem:[#allocation7] sm:$0x1]
        %v270 = vlaneseq
        %v271 = vshrl.u32 %v270, 7
        %v272 = vsub.s32 0, %v271
        %v273 = vrot.slane %v269, %v272
        %v306 = vunpack.c.l.b16 %v221
        %v307 = vunpack.c.l.b16 %v222
        %v308 = vunpack.c.l.b16 %v223
        %v309 = vunpack.c.l.b16 %v224
        %v310 = vunpack.c.l.b16 %v225
        %v311 = vunpack.c.l.b16 %v226
        %v312 = vunpack.c.l.b16 %v227
        %v313 = vunpack.c.l.b16 %v228
        %v314 = vunpack.c.l.b16 %v229
        %v315 = vunpack.c.l.b16 %v230
        %v316 = vunpack.c.l.b16 %v231
        %v317 = vunpack.c.l.b16 %v232
        %v318 = vunpack.c.l.b16 %v233
        %v319 = vunpack.c.l.b16 %v234
        %v320 = vunpack.c.l.b16 %v235
        %v321 = vunpack.c.l.b16 %v236
        %v322 = vunpack.c.l.b16 %v237
        %v323 = vunpack.c.l.b16 %v238
        %v324 = vunpack.c.l.b16 %v239
        %v325 = vunpack.c.l.b16 %v240
        %v326 = vunpack.c.l.b16 %v241
        %v327 = vunpack.c.l.b16 %v242
        %v328 = vunpack.c.l.b16 %v243
        %v329 = vunpack.c.l.b16 %v244
        %v330 = vunpack.c.l.b16 %v245
        %v331 = vunpack.c.l.b16 %v246
        %v332 = vunpack.c.l.b16 %v247
        %v333 = vunpack.c.l.b16 %v248
        %v334 = vunpack.c.l.b16 %v249
        %v335 = vunpack.c.l.b16 %v250
        %v336 = vunpack.c.l.b16 %v251
        %v337 = vunpack.c.l.b16 %v252
        %v338 = vpack.c.b16 %v307, %v306
        %v339 = vpack.c.b16 %v309, %v308
        %v340 = vpack.c.b16 %v311, %v310
        %v341 = vpack.c.b16 %v313, %v312
        %v342 = vpack.c.b16 %v315, %v314
        %v343 = vpack.c.b16 %v317, %v316
        %v344 = vpack.c.b16 %v319, %v318
        %v345 = vpack.c.b16 %v321, %v320
        %v346 = vpack.c.b16 %v323, %v322
        %v347 = vpack.c.b16 %v325, %v324
        %v348 = vpack.c.b16 %v327, %v326
        %v349 = vpack.c.b16 %v329, %v328
        %v350 = vpack.c.b16 %v331, %v330
        %v351 = vpack.c.b16 %v333, %v332
        %v352 = vpack.c.b16 %v335, %v334
        %v353 = vpack.c.b16 %v337, %v336
        %v386 = vunpack.c.l.b16 %v253
        %v387 = vunpack.c.l.b16 %v254
        %v388 = vunpack.c.l.b16 %v255
        %v389 = vunpack.c.l.b16 %v256
        %v390 = vunpack.c.l.b16 %v257
        %v391 = vunpack.c.l.b16 %v258
        %v392 = vunpack.c.l.b16 %v259
        %v393 = vunpack.c.l.b16 %v260
        %v394 = vunpack.c.l.b16 %v261
        %v395 = vunpack.c.l.b16 %v262
        %v396 = vunpack.c.l.b16 %v263
        %v397 = vunpack.c.l.b16 %v264
        %v398 = vunpack.c.l.b16 %v265
        %v399 = vunpack.c.l.b16 %v266
        %v400 = vunpack.c.l.b16 %v267
        %v401 = vunpack.c.l.b16 %v268
        %v402 = vpack.c.b16 %v387, %v386
        %v403 = vpack.c.b16 %v389, %v388
        %v404 = vpack.c.b16 %v391, %v390
        %v405 = vpack.c.b16 %v393, %v392
        %v406 = vpack.c.b16 %v395, %v394
        %v407 = vpack.c.b16 %v397, %v396
        %v408 = vpack.c.b16 %v399, %v398
        %v409 = vpack.c.b16 %v401, %v400
        %418 = vmatprep.subr.bf16.mxu0 0
        %419 = vmatpush1.bf16.msra.mxu0 %v402
        %420 = vmatprep.subr.bf16.mxu0 0
        %421 = vmatpush1.bf16.msra.mxu0 %v403
        %422 = vmatprep.subr.bf16.mxu0 0
        %423 = vmatpush1.bf16.msra.mxu0 %v404
        %424 = vmatprep.subr.bf16.mxu0 0
        %425 = vmatpush1.bf16.msra.mxu0 %v405
        %426 = vmatprep.subr.bf16.mxu0 0
        %427 = vmatpush1.bf16.msra.mxu0 %v406
        %428 = vmatprep.subr.bf16.mxu0 0
        %429 = vmatpush1.bf16.msra.mxu0 %v407
        %430 = vmatprep.subr.bf16.mxu0 0
        %431 = vmatpush1.bf16.msra.mxu0 %v408
        %432 = vmatprep.subr.bf16.mxu0 0
        %433 = vmatpush1.bf16.msra.mxu0 %v409
        %434 = vmatprep.subr.bf16.mxu0 0
        %435 = vmatpush1.bf16.msra.mxu0 0
        %436 = vmatprep.subr.bf16.mxu0 0
        %437 = vmatpush1.bf16.msra.mxu0 0
        %438 = vmatprep.subr.bf16.mxu0 0
        %439 = vmatpush1.bf16.msra.mxu0 0
        %440 = vmatprep.subr.bf16.mxu0 0
        %441 = vmatpush1.bf16.msra.mxu0 0
        %442 = vmatprep.subr.bf16.mxu0 0
        %443 = vmatpush1.bf16.msra.mxu0 0
        %444 = vmatprep.subr.bf16.mxu0 0
        %445 = vmatpush1.bf16.msra.mxu0 0
        %446 = vmatprep.subr.bf16.mxu0 0
        %447 = vmatpush1.bf16.msra.mxu0 0
        %448 = vmatprep.subr.bf16.mxu0 0
        %449 = vmatpush1.bf16.msra.mxu0 0
        %450 = vmatprep.mubr.bf16.mxu0 0
        %451 = vmatmul.mubr.bf16.gmra.mrb[0].mxu0 %v338
        %v452 = vpop.f32.mrb[0].mxu0
        %v453 = vadd.f32 %v273, %v452
        %v454 = vpop.f32.mrb[0].mxu0
        %v455 = vpop.f32.mrb[0].mxu0
        %v456 = vadd.f32 %v273, %v455
        %v457 = vpop.f32.mrb[0].mxu0
        %458 = vmatprep.mubr.bf16.mxu0 0
        %459 = vmatmul.mubr.bf16.gmra.mrb[0].mxu0 %v339
        %v460 = vpop.f32.mrb[0].mxu0
        %v461 = vadd.f32 %v273, %v460
        %v462 = vpop.f32.mrb[0].mxu0
        %v463 = vpop.f32.mrb[0].mxu0
        %v464 = vadd.f32 %v273, %v463
        %v465 = vpop.f32.mrb[0].mxu0
        %466 = vmatprep.mubr.bf16.mxu0 0
        %467 = vmatmul.mubr.bf16.gmra.mrb[0].mxu0 %v340
        %v468 = vpop.f32.mrb[0].mxu0
        %v469 = vadd.f32 %v273, %v468
        %v470 = vpop.f32.mrb[0].mxu0
        %v471 = vpop.f32.mrb[0].mxu0
        %v472 = vadd.f32 %v273, %v471
        %v473 = vpop.f32.mrb[0].mxu0
        %474 = vmatprep.mubr.bf16.mxu0 0
        %475 = vmatmul.mubr.bf16.gmra.mrb[0].mxu0 %v341
        %v476 = vpop.f32.mrb[0].mxu0
        %v477 = vadd.f32 %v273, %v476
        %v478 = vpop.f32.mrb[0].mxu0
        %v479 = vpop.f32.mrb[0].mxu0
        %v480 = vadd.f32 %v273, %v479
        %v481 = vpop.f32.mrb[0].mxu0
        %482 = vmatprep.mubr.bf16.mxu0 0
        %483 = vmatmul.mubr.bf16.gmra.mrb[0].mxu0 %v342
        %v484 = vpop.f32.mrb[0].mxu0
        %v485 = vadd.f32 %v273, %v484
        %v486 = vpop.f32.mrb[0].mxu0
        %v487 = vpop.f32.mrb[0].mxu0
        %v488 = vadd.f32 %v273, %v487
        %v489 = vpop.f32.mrb[0].mxu0
        %490 = vmatprep.mubr.bf16.mxu0 0
        %491 = vmatmul.mubr.bf16.gmra.mrb[0].mxu0 %v343
        %v492 = vpop.f32.mrb[0].mxu0
        %v493 = vadd.f32 %v273, %v492
        %v494 = vpop.f32.mrb[0].mxu0
        %v495 = vpop.f32.mrb[0].mxu0
        %v496 = vadd.f32 %v273, %v495
        %v497 = vpop.f32.mrb[0].mxu0
        %498 = vmatprep.mubr.bf16.mxu0 0
        %499 = vmatmul.mubr.bf16.gmra.mrb[0].mxu0 %v344
        %v500 = vpop.f32.mrb[0].mxu0
        %v501 = vadd.f32 %v273, %v500
        %v502 = vpop.f32.mrb[0].mxu0
        %v503 = vpop.f32.mrb[0].mxu0
        %v504 = vadd.f32 %v273, %v503
        %v505 = vpop.f32.mrb[0].mxu0
        %506 = vmatprep.mubr.bf16.mxu0 0
        %507 = vmatmul.mubr.bf16.gmra.mrb[0].mxu0 %v345
        %v508 = vpop.f32.mrb[0].mxu0
        %v509 = vadd.f32 %v273, %v508
        %v510 = vpop.f32.mrb[0].mxu0
        %v511 = vpop.f32.mrb[0].mxu0
        %v512 = vadd.f32 %v273, %v511
        %v513 = vpop.f32.mrb[0].mxu0
        %514 = vmatprep.mubr.bf16.mxu0 0
        %515 = vmatmul.mubr.bf16.gmra.mrb[0].mxu0 %v346
        %v516 = vpop.f32.mrb[0].mxu0
        %v517 = vadd.f32 %v273, %v516
        %v518 = vpop.f32.mrb[0].mxu0
        %v519 = vpop.f32.mrb[0].mxu0
        %v520 = vadd.f32 %v273, %v519
        %v521 = vpop.f32.mrb[0].mxu0
        %522 = vmatprep.mubr.bf16.mxu0 0
        %523 = vmatmul.mubr.bf16.gmra.mrb[0].mxu0 %v347
        %v524 = vpop.f32.mrb[0].mxu0
        %v525 = vadd.f32 %v273, %v524
        %v526 = vpop.f32.mrb[0].mxu0
        %v527 = vpop.f32.mrb[0].mxu0
        %v528 = vadd.f32 %v273, %v527
        %v529 = vpop.f32.mrb[0].mxu0
        %530 = vmatprep.mubr.bf16.mxu0 0
        %531 = vmatmul.mubr.bf16.gmra.mrb[0].mxu0 %v348
        %v532 = vpop.f32.mrb[0].mxu0
        %v533 = vadd.f32 %v273, %v532
        %v534 = vpop.f32.mrb[0].mxu0
        %v535 = vpop.f32.mrb[0].mxu0
        %v536 = vadd.f32 %v273, %v535
        %v537 = vpop.f32.mrb[0].mxu0
        %538 = vmatprep.mubr.bf16.mxu0 0
        %539 = vmatmul.mubr.bf16.gmra.mrb[0].mxu0 %v349
        %v540 = vpop.f32.mrb[0].mxu0
        %v541 = vadd.f32 %v273, %v540
        %v542 = vpop.f32.mrb[0].mxu0
        %v543 = vpop.f32.mrb[0].mxu0
        %v544 = vadd.f32 %v273, %v543
        %v545 = vpop.f32.mrb[0].mxu0
        %546 = vmatprep.mubr.bf16.mxu0 0
        %547 = vmatmul.mubr.bf16.gmra.mrb[0].mxu0 %v350
        %v548 = vpop.f32.mrb[0].mxu0
        %v549 = vadd.f32 %v273, %v548
        %v550 = vpop.f32.mrb[0].mxu0
        %v551 = vpop.f32.mrb[0].mxu0
        %v552 = vadd.f32 %v273, %v551
        %v553 = vpop.f32.mrb[0].mxu0
        %554 = vmatprep.mubr.bf16.mxu0 0
        %555 = vmatmul.mubr.bf16.gmra.mrb[0].mxu0 %v351
        %v556 = vpop.f32.mrb[0].mxu0
        %v557 = vadd.f32 %v273, %v556
        %v558 = vpop.f32.mrb[0].mxu0
        %v559 = vpop.f32.mrb[0].mxu0
        %v560 = vadd.f32 %v273, %v559
        %v561 = vpop.f32.mrb[0].mxu0
        %562 = vmatprep.mubr.bf16.mxu0 0
        %563 = vmatmul.mubr.bf16.gmra.mrb[0].mxu0 %v352
        %v564 = vpop.f32.mrb[0].mxu0
        %v565 = vadd.f32 %v273, %v564
        %v566 = vpop.f32.mrb[0].mxu0
        %v567 = vpop.f32.mrb[0].mxu0
        %v568 = vadd.f32 %v273, %v567
        %v569 = vpop.f32.mrb[0].mxu0
        %570 = vmatprep.mubr.bf16.mxu0 0
        %571 = vmatmul.mubr.bf16.gmra.mrb[0].mxu0 %v353
        %v572 = vpop.f32.mrb[0].mxu0
        %v573 = vadd.f32 %v273, %v572
        %v574 = vpop.f32.mrb[0].mxu0
        %v575 = vpop.f32.mrb[0].mxu0
        %v576 = vadd.f32 %v273, %v575
        %v577 = vpop.f32.mrb[0].mxu0
        %578 = vdwg.mxu0
        %v579 = vmax.f32 %v453, 0.0
        %v580 = vmax.f32 %v456, 0.0
        %v581 = vmax.f32 %v461, 0.0
        %v582 = vmax.f32 %v464, 0.0
        %v583 = vmax.f32 %v469, 0.0
        %v584 = vmax.f32 %v472, 0.0
        %v585 = vmax.f32 %v477, 0.0
        %v586 = vmax.f32 %v480, 0.0
        %v587 = vmax.f32 %v485, 0.0
        %v588 = vmax.f32 %v488, 0.0
        %v589 = vmax.f32 %v493, 0.0
        %v590 = vmax.f32 %v496, 0.0
        %v591 = vmax.f32 %v501, 0.0
        %v592 = vmax.f32 %v504, 0.0
        %v593 = vmax.f32 %v509, 0.0
        %v594 = vmax.f32 %v512, 0.0
        %v595 = vmax.f32 %v517, 0.0
        %v596 = vmax.f32 %v520, 0.0
        %v597 = vmax.f32 %v525, 0.0
        %v598 = vmax.f32 %v528, 0.0
        %v599 = vmax.f32 %v533, 0.0
        %v600 = vmax.f32 %v536, 0.0
        %v601 = vmax.f32 %v541, 0.0
        %v602 = vmax.f32 %v544, 0.0
        %v603 = vmax.f32 %v549, 0.0
        %v604 = vmax.f32 %v552, 0.0
        %v605 = vmax.f32 %v557, 0.0
        %v606 = vmax.f32 %v560, 0.0
        %v607 = vmax.f32 %v565, 0.0
        %v608 = vmax.f32 %v568, 0.0
        %v609 = vmax.f32 %v573, 0.0
        %v610 = vmax.f32 %v576, 0.0
        %v611 = vpack.c.bf16 %v580, %v579
        %v612 = vpack.c.bf16 %v582, %v581
        %v613 = vpack.c.bf16 %v584, %v583
        %v614 = vpack.c.bf16 %v586, %v585
        %v615 = vpack.c.bf16 %v588, %v587
        %v616 = vpack.c.bf16 %v590, %v589
        %v617 = vpack.c.bf16 %v592, %v591
        %v618 = vpack.c.bf16 %v594, %v593
        %v619 = vpack.c.bf16 %v596, %v595
        %v620 = vpack.c.bf16 %v598, %v597
        %v621 = vpack.c.bf16 %v600, %v599
        %v622 = vpack.c.bf16 %v602, %v601
        %v623 = vpack.c.bf16 %v604, %v603
        %v624 = vpack.c.bf16 %v606, %v605
        %v625 = vpack.c.bf16 %v608, %v607
        %v626 = vpack.c.bf16 %v610, %v609
        %v627 = vld [vmem:[#allocation5 + $0x40] sm:$0xf]
        %v628 = vld [vmem:[#allocation5 + $0x44] sm:$0xf]
        %v629 = vld [vmem:[#allocation5 + $0x48] sm:$0xf]
        %v630 = vld [vmem:[#allocation5 + $0x4c] sm:$0xf]
        %v631 = vld [vmem:[#allocation5 + $0x50] sm:$0xf]
        %v632 = vld [vmem:[#allocation5 + $0x54] sm:$0xf]
        %v633 = vld [vmem:[#allocation5 + $0x58] sm:$0xf]
        %v634 = vld [vmem:[#allocation5 + $0x5c] sm:$0xf]
        %v635 = vld [vmem:[#allocation5 + $0x60] sm:$0xf]
        %v636 = vld [vmem:[#allocation5 + $0x64] sm:$0xf]
        %v637 = vld [vmem:[#allocation5 + $0x68] sm:$0xf]
        %v638 = vld [vmem:[#allocation5 + $0x6c] sm:$0xf]
        %v639 = vld [vmem:[#allocation5 + $0x70] sm:$0xf]
        %v640 = vld [vmem:[#allocation5 + $0x74] sm:$0xf]
        %v641 = vld [vmem:[#allocation5 + $0x78] sm:$0xf]
        %v642 = vld [vmem:[#allocation5 + $0x7c] sm:$0xf]
        %v643 = vld [vmem:[#allocation7 + $0x1] sm:$0x1]
        %v644 = vlaneseq
        %v645 = vshrl.u32 %v644, 7
        %v646 = vsub.s32 0, %v645
        %v647 = vrot.slane %v643, %v646
        %v664 = vunpack.c.l.b16 %v627
        %v665 = vunpack.c.l.b16 %v628
        %v666 = vunpack.c.l.b16 %v629
        %v667 = vunpack.c.l.b16 %v630
        %v668 = vunpack.c.l.b16 %v631
        %v669 = vunpack.c.l.b16 %v632
        %v670 = vunpack.c.l.b16 %v633
        %v671 = vunpack.c.l.b16 %v634
        %v672 = vunpack.c.l.b16 %v635
        %v673 = vunpack.c.l.b16 %v636
        %v674 = vunpack.c.l.b16 %v637
        %v675 = vunpack.c.l.b16 %v638
        %v676 = vunpack.c.l.b16 %v639
        %v677 = vunpack.c.l.b16 %v640
        %v678 = vunpack.c.l.b16 %v641
        %v679 = vunpack.c.l.b16 %v642
        %v680 = vpack.c.b16 %v665, %v664
        %v681 = vpack.c.b16 %v667, %v666
        %v682 = vpack.c.b16 %v669, %v668
        %v683 = vpack.c.b16 %v671, %v670
        %v684 = vpack.c.b16 %v673, %v672
        %v685 = vpack.c.b16 %v675, %v674
        %v686 = vpack.c.b16 %v677, %v676
        %v687 = vpack.c.b16 %v679, %v678
        %696 = vmatprep.subr.bf16.mxu0 0
        %697 = vmatpush1.bf16.msra.mxu0 %v680
        %698 = vmatprep.subr.bf16.mxu0 0
        %699 = vmatpush1.bf16.msra.mxu0 %v681
        %700 = vmatprep.subr.bf16.mxu0 0
        %701 = vmatpush1.bf16.msra.mxu0 %v682
        %702 = vmatprep.subr.bf16.mxu0 0
        %703 = vmatpush1.bf16.msra.mxu0 %v683
        %704 = vmatprep.subr.bf16.mxu0 0
        %705 = vmatpush1.bf16.msra.mxu0 %v684
        %706 = vmatprep.subr.bf16.mxu0 0
        %707 = vmatpush1.bf16.msra.mxu0 %v685
        %708 = vmatprep.subr.bf16.mxu0 0
        %709 = vmatpush1.bf16.msra.mxu0 %v686
        %710 = vmatprep.subr.bf16.mxu0 0
        %711 = vmatpush1.bf16.msra.mxu0 %v687
        %712 = vmatprep.subr.bf16.mxu0 0
        %713 = vmatpush1.bf16.msra.mxu0 0
        %714 = vmatprep.subr.bf16.mxu0 0
        %715 = vmatpush1.bf16.msra.mxu0 0
        %716 = vmatprep.subr.bf16.mxu0 0
        %717 = vmatpush1.bf16.msra.mxu0 0
        %718 = vmatprep.subr.bf16.mxu0 0
        %719 = vmatpush1.bf16.msra.mxu0 0
        %720 = vmatprep.subr.bf16.mxu0 0
        %721 = vmatpush1.bf16.msra.mxu0 0
        %722 = vmatprep.subr.bf16.mxu0 0
        %723 = vmatpush1.bf16.msra.mxu0 0
        %724 = vmatprep.subr.bf16.mxu0 0
        %725 = vmatpush1.bf16.msra.mxu0 0
        %726 = vmatprep.subr.bf16.mxu0 0
        %727 = vmatpush1.bf16.msra.mxu0 0
        %728 = vmatprep.mubr.bf16.mxu0 0
        %729 = vmatmul.mubr.bf16.gmra.mrb[0].mxu0 %v611
        %v730 = vpop.f32.mrb[0].mxu0
        %v731 = vadd.f32 %v647, %v730
        %v732 = vpop.f32.mrb[0].mxu0
        %v733 = vpop.f32.mrb[0].mxu0
        %v734 = vadd.f32 %v647, %v733
        %v735 = vpop.f32.mrb[0].mxu0
        %736 = vmatprep.mubr.bf16.mxu0 0
        %737 = vmatmul.mubr.bf16.gmra.mrb[0].mxu0 %v612
        %v738 = vpop.f32.mrb[0].mxu0
        %v739 = vadd.f32 %v647, %v738
        %v740 = vpop.f32.mrb[0].mxu0
        %v741 = vpop.f32.mrb[0].mxu0
        %v742 = vadd.f32 %v647, %v741
        %v743 = vpop.f32.mrb[0].mxu0
        %744 = vmatprep.mubr.bf16.mxu0 0
        %745 = vmatmul.mubr.bf16.gmra.mrb[0].mxu0 %v613
        %v746 = vpop.f32.mrb[0].mxu0
        %v747 = vadd.f32 %v647, %v746
        %v748 = vpop.f32.mrb[0].mxu0
        %v749 = vpop.f32.mrb[0].mxu0
        %v750 = vadd.f32 %v647, %v749
        %v751 = vpop.f32.mrb[0].mxu0
        %752 = vmatprep.mubr.bf16.mxu0 0
        %753 = vmatmul.mubr.bf16.gmra.mrb[0].mxu0 %v614
        %v754 = vpop.f32.mrb[0].mxu0
        %v755 = vadd.f32 %v647, %v754
        %v756 = vpop.f32.mrb[0].mxu0
        %v757 = vpop.f32.mrb[0].mxu0
        %v758 = vadd.f32 %v647, %v757
        %v759 = vpop.f32.mrb[0].mxu0
        %760 = vmatprep.mubr.bf16.mxu0 0
        %761 = vmatmul.mubr.bf16.gmra.mrb[0].mxu0 %v615
        %v762 = vpop.f32.mrb[0].mxu0
        %v763 = vadd.f32 %v647, %v762
        %v764 = vpop.f32.mrb[0].mxu0
        %v765 = vpop.f32.mrb[0].mxu0
        %v766 = vadd.f32 %v647, %v765
        %v767 = vpop.f32.mrb[0].mxu0
        %768 = vmatprep.mubr.bf16.mxu0 0
        %769 = vmatmul.mubr.bf16.gmra.mrb[0].mxu0 %v616
        %v770 = vpop.f32.mrb[0].mxu0
        %v771 = vadd.f32 %v647, %v770
        %v772 = vpop.f32.mrb[0].mxu0
        %v773 = vpop.f32.mrb[0].mxu0
        %v774 = vadd.f32 %v647, %v773
        %v775 = vpop.f32.mrb[0].mxu0
        %776 = vmatprep.mubr.bf16.mxu0 0
        %777 = vmatmul.mubr.bf16.gmra.mrb[0].mxu0 %v617
        %v778 = vpop.f32.mrb[0].mxu0
        %v779 = vadd.f32 %v647, %v778
        %v780 = vpop.f32.mrb[0].mxu0
        %v781 = vpop.f32.mrb[0].mxu0
        %v782 = vadd.f32 %v647, %v781
        %v783 = vpop.f32.mrb[0].mxu0
        %784 = vmatprep.mubr.bf16.mxu0 0
        %785 = vmatmul.mubr.bf16.gmra.mrb[0].mxu0 %v618
        %v786 = vpop.f32.mrb[0].mxu0
        %v787 = vadd.f32 %v647, %v786
        %v788 = vpop.f32.mrb[0].mxu0
        %v789 = vpop.f32.mrb[0].mxu0
        %v790 = vadd.f32 %v647, %v789
        %v791 = vpop.f32.mrb[0].mxu0
        %792 = vmatprep.mubr.bf16.mxu0 0
        %793 = vmatmul.mubr.bf16.gmra.mrb[0].mxu0 %v619
        %v794 = vpop.f32.mrb[0].mxu0
        %v795 = vadd.f32 %v647, %v794
        %v796 = vpop.f32.mrb[0].mxu0
        %v797 = vpop.f32.mrb[0].mxu0
        %v798 = vadd.f32 %v647, %v797
        %v799 = vpop.f32.mrb[0].mxu0
        %800 = vmatprep.mubr.bf16.mxu0 0
        %801 = vmatmul.mubr.bf16.gmra.mrb[0].mxu0 %v620
        %v802 = vpop.f32.mrb[0].mxu0
        %v803 = vadd.f32 %v647, %v802
        %v804 = vpop.f32.mrb[0].mxu0
        %v805 = vpop.f32.mrb[0].mxu0
        %v806 = vadd.f32 %v647, %v805
        %v807 = vpop.f32.mrb[0].mxu0
        %808 = vmatprep.mubr.bf16.mxu0 0
        %809 = vmatmul.mubr.bf16.gmra.mrb[0].mxu0 %v621
        %v810 = vpop.f32.mrb[0].mxu0
        %v811 = vadd.f32 %v647, %v810
        %v812 = vpop.f32.mrb[0].mxu0
        %v813 = vpop.f32.mrb[0].mxu0
        %v814 = vadd.f32 %v647, %v813
        %v815 = vpop.f32.mrb[0].mxu0
        %816 = vmatprep.mubr.bf16.mxu0 0
        %817 = vmatmul.mubr.bf16.gmra.mrb[0].mxu0 %v622
        %v818 = vpop.f32.mrb[0].mxu0
        %v819 = vadd.f32 %v647, %v818
        %v820 = vpop.f32.mrb[0].mxu0
        %v821 = vpop.f32.mrb[0].mxu0
        %v822 = vadd.f32 %v647, %v821
        %v823 = vpop.f32.mrb[0].mxu0
        %824 = vmatprep.mubr.bf16.mxu0 0
        %825 = vmatmul.mubr.bf16.gmra.mrb[0].mxu0 %v623
        %v826 = vpop.f32.mrb[0].mxu0
        %v827 = vadd.f32 %v647, %v826
        %v828 = vpop.f32.mrb[0].mxu0
        %v829 = vpop.f32.mrb[0].mxu0
        %v830 = vadd.f32 %v647, %v829
        %v831 = vpop.f32.mrb[0].mxu0
        %832 = vmatprep.mubr.bf16.mxu0 0
        %833 = vmatmul.mubr.bf16.gmra.mrb[0].mxu0 %v624
        %v834 = vpop.f32.mrb[0].mxu0
        %v835 = vadd.f32 %v647, %v834
        %v836 = vpop.f32.mrb[0].mxu0
        %v837 = vpop.f32.mrb[0].mxu0
        %v838 = vadd.f32 %v647, %v837
        %v839 = vpop.f32.mrb[0].mxu0
        %840 = vmatprep.mubr.bf16.mxu0 0
        %841 = vmatmul.mubr.bf16.gmra.mrb[0].mxu0 %v625
        %v842 = vpop.f32.mrb[0].mxu0
        %v843 = vadd.f32 %v647, %v842
        %v844 = vpop.f32.mrb[0].mxu0
        %v845 = vpop.f32.mrb[0].mxu0
        %v846 = vadd.f32 %v647, %v845
        %v847 = vpop.f32.mrb[0].mxu0
        %848 = vmatprep.mubr.bf16.mxu0 0
        %849 = vmatmul.mubr.bf16.gmra.mrb[0].mxu0 %v626
        %v850 = vpop.f32.mrb[0].mxu0
        %v851 = vadd.f32 %v647, %v850
        %v852 = vpop.f32.mrb[0].mxu0
        %v853 = vpop.f32.mrb[0].mxu0
        %v854 = vadd.f32 %v647, %v853
        %v855 = vpop.f32.mrb[0].mxu0
        %856 = vdwg.mxu0
        %v857 = vmax.f32 %v731, 0.0
        %v858 = vmax.f32 %v734, 0.0
        %v859 = vmax.f32 %v739, 0.0
        %v860 = vmax.f32 %v742, 0.0
        %v861 = vmax.f32 %v747, 0.0
        %v862 = vmax.f32 %v750, 0.0
        %v863 = vmax.f32 %v755, 0.0
        %v864 = vmax.f32 %v758, 0.0
        %v865 = vmax.f32 %v763, 0.0
        %v866 = vmax.f32 %v766, 0.0
        %v867 = vmax.f32 %v771, 0.0
        %v868 = vmax.f32 %v774, 0.0
        %v869 = vmax.f32 %v779, 0.0
        %v870 = vmax.f32 %v782, 0.0
        %v871 = vmax.f32 %v787, 0.0
        %v872 = vmax.f32 %v790, 0.0
        %v873 = vmax.f32 %v795, 0.0
        %v874 = vmax.f32 %v798, 0.0
        %v875 = vmax.f32 %v803, 0.0
        %v876 = vmax.f32 %v806, 0.0
        %v877 = vmax.f32 %v811, 0.0
        %v878 = vmax.f32 %v814, 0.0
        %v879 = vmax.f32 %v819, 0.0
        %v880 = vmax.f32 %v822, 0.0
        %v881 = vmax.f32 %v827, 0.0
        %v882 = vmax.f32 %v830, 0.0
        %v883 = vmax.f32 %v835, 0.0
        %v884 = vmax.f32 %v838, 0.0
        %v885 = vmax.f32 %v843, 0.0
        %v886 = vmax.f32 %v846, 0.0
        %v887 = vmax.f32 %v851, 0.0
        %v888 = vmax.f32 %v854, 0.0
        %v889 = vpack.c.bf16 %v858, %v857
        %v890 = vpack.c.bf16 %v860, %v859
        %v891 = vpack.c.bf16 %v862, %v861
        %v892 = vpack.c.bf16 %v864, %v863
        %v893 = vpack.c.bf16 %v866, %v865
        %v894 = vpack.c.bf16 %v868, %v867
        %v895 = vpack.c.bf16 %v870, %v869
        %v896 = vpack.c.bf16 %v872, %v871
        %v897 = vpack.c.bf16 %v874, %v873
        %v898 = vpack.c.bf16 %v876, %v875
        %v899 = vpack.c.bf16 %v878, %v877
        %v900 = vpack.c.bf16 %v880, %v879
        %v901 = vpack.c.bf16 %v882, %v881
        %v902 = vpack.c.bf16 %v884, %v883
        %v903 = vpack.c.bf16 %v886, %v885
        %v904 = vpack.c.bf16 %v888, %v887
        %v905 = vld [vmem:[#allocation5 + $0x80] sm:$0xf]
        %v906 = vld [vmem:[#allocation5 + $0x84] sm:$0xf]
        %v907 = vld [vmem:[#allocation5 + $0x88] sm:$0xf]
        %v908 = vld [vmem:[#allocation5 + $0x8c] sm:$0xf]
        %v909 = vld [vmem:[#allocation5 + $0x90] sm:$0xf]
        %v910 = vld [vmem:[#allocation5 + $0x94] sm:$0xf]
        %v911 = vld [vmem:[#allocation5 + $0x98] sm:$0xf]
        %v912 = vld [vmem:[#allocation5 + $0x9c] sm:$0xf]
        %v913 = vld [vmem:[#allocation5 + $0xa0] sm:$0xf]
        %v914 = vld [vmem:[#allocation5 + $0xa4] sm:$0xf]
        %v915 = vld [vmem:[#allocation5 + $0xa8] sm:$0xf]
        %v916 = vld [vmem:[#allocation5 + $0xac] sm:$0xf]
        %v917 = vld [vmem:[#allocation5 + $0xb0] sm:$0xf]
        %v918 = vld [vmem:[#allocation5 + $0xb4] sm:$0xf]
        %v919 = vld [vmem:[#allocation5 + $0xb8] sm:$0xf]
        %v920 = vld [vmem:[#allocation5 + $0xbc] sm:$0xf]
        %v921 = vld [vmem:[#allocation7 + $0x2] sm:$0x1]
        %v922 = vlaneseq
        %v923 = vshrl.u32 %v922, 7
        %v924 = vsub.s32 0, %v923
        %v925 = vrot.slane %v921, %v924
        %v942 = vunpack.c.l.b16 %v905
        %v943 = vunpack.c.l.b16 %v906
        %v944 = vunpack.c.l.b16 %v907
        %v945 = vunpack.c.l.b16 %v908
        %v946 = vunpack.c.l.b16 %v909
        %v947 = vunpack.c.l.b16 %v910
        %v948 = vunpack.c.l.b16 %v911
        %v949 = vunpack.c.l.b16 %v912
        %v950 = vunpack.c.l.b16 %v913
        %v951 = vunpack.c.l.b16 %v914
        %v952 = vunpack.c.l.b16 %v915
        %v953 = vunpack.c.l.b16 %v916
        %v954 = vunpack.c.l.b16 %v917
        %v955 = vunpack.c.l.b16 %v918
        %v956 = vunpack.c.l.b16 %v919
        %v957 = vunpack.c.l.b16 %v920
        %v958 = vpack.c.b16 %v943, %v942
        %v959 = vpack.c.b16 %v945, %v944
        %v960 = vpack.c.b16 %v947, %v946
        %v961 = vpack.c.b16 %v949, %v948
        %v962 = vpack.c.b16 %v951, %v950
        %v963 = vpack.c.b16 %v953, %v952
        %v964 = vpack.c.b16 %v955, %v954
        %v965 = vpack.c.b16 %v957, %v956
        %974 = vmatprep.subr.bf16.mxu0 0
        %975 = vmatpush1.bf16.msra.mxu0 %v958
        %976 = vmatprep.subr.bf16.mxu0 0
        %977 = vmatpush1.bf16.msra.mxu0 %v959
        %978 = vmatprep.subr.bf16.mxu0 0
        %979 = vmatpush1.bf16.msra.mxu0 %v960
        %980 = vmatprep.subr.bf16.mxu0 0
        %981 = vmatpush1.bf16.msra.mxu0 %v961
        %982 = vmatprep.subr.bf16.mxu0 0
        %983 = vmatpush1.bf16.msra.mxu0 %v962
        %984 = vmatprep.subr.bf16.mxu0 0
        %985 = vmatpush1.bf16.msra.mxu0 %v963
        %986 = vmatprep.subr.bf16.mxu0 0
        %987 = vmatpush1.bf16.msra.mxu0 %v964
        %988 = vmatprep.subr.bf16.mxu0 0
        %989 = vmatpush1.bf16.msra.mxu0 %v965
        %990 = vmatprep.subr.bf16.mxu0 0
        %991 = vmatpush1.bf16.msra.mxu0 0
        %992 = vmatprep.subr.bf16.mxu0 0
        %993 = vmatpush1.bf16.msra.mxu0 0
        %994 = vmatprep.subr.bf16.mxu0 0
        %995 = vmatpush1.bf16.msra.mxu0 0
        %996 = vmatprep.subr.bf16.mxu0 0
        %997 = vmatpush1.bf16.msra.mxu0 0
        %998 = vmatprep.subr.bf16.mxu0 0
        %999 = vmatpush1.bf16.msra.mxu0 0
        %1000 = vmatprep.subr.bf16.mxu0 0
        %1001 = vmatpush1.bf16.msra.mxu0 0
        %1002 = vmatprep.subr.bf16.mxu0 0
        %1003 = vmatpush1.bf16.msra.mxu0 0
        %1004 = vmatprep.subr.bf16.mxu0 0
        %1005 = vmatpush1.bf16.msra.mxu0 0
        %1006 = vmatprep.mubr.bf16.mxu0 0
        %1007 = vmatmul.mubr.bf16.gmra.mrb[0].mxu0 %v889
        %v1008 = vpop.f32.mrb[0].mxu0
        %v1009 = vadd.f32 %v925, %v1008
        %v1010 = vpop.f32.mrb[0].mxu0
        %v1011 = vpop.f32.mrb[0].mxu0
        %v1012 = vadd.f32 %v925, %v1011
        %v1013 = vpop.f32.mrb[0].mxu0
        %1014 = vmatprep.mubr.bf16.mxu0 0
        %1015 = vmatmul.mubr.bf16.gmra.mrb[0].mxu0 %v890
        %v1016 = vpop.f32.mrb[0].mxu0
        %v1017 = vadd.f32 %v925, %v1016
        %v1018 = vpop.f32.mrb[0].mxu0
        %v1019 = vpop.f32.mrb[0].mxu0
        %v1020 = vadd.f32 %v925, %v1019
        %v1021 = vpop.f32.mrb[0].mxu0
        %1022 = vmatprep.mubr.bf16.mxu0 0
        %1023 = vmatmul.mubr.bf16.gmra.mrb[0].mxu0 %v891
        %v1024 = vpop.f32.mrb[0].mxu0
        %v1025 = vadd.f32 %v925, %v1024
        %v1026 = vpop.f32.mrb[0].mxu0
        %v1027 = vpop.f32.mrb[0].mxu0
        %v1028 = vadd.f32 %v925, %v1027
        %v1029 = vpop.f32.mrb[0].mxu0
        %1030 = vmatprep.mubr.bf16.mxu0 0
        %1031 = vmatmul.mubr.bf16.gmra.mrb[0].mxu0 %v892
        %v1032 = vpop.f32.mrb[0].mxu0
        %v1033 = vadd.f32 %v925, %v1032
        %v1034 = vpop.f32.mrb[0].mxu0
        %v1035 = vpop.f32.mrb[0].mxu0
        %v1036 = vadd.f32 %v925, %v1035
        %v1037 = vpop.f32.mrb[0].mxu0
        %1038 = vmatprep.mubr.bf16.mxu0 0
        %1039 = vmatmul.mubr.bf16.gmra.mrb[0].mxu0 %v893
        %v1040 = vpop.f32.mrb[0].mxu0
        %v1041 = vadd.f32 %v925, %v1040
        %v1042 = vpop.f32.mrb[0].mxu0
        %v1043 = vpop.f32.mrb[0].mxu0
        %v1044 = vadd.f32 %v925, %v1043
        %v1045 = vpop.f32.mrb[0].mxu0
        %1046 = vmatprep.mubr.bf16.mxu0 0
        %1047 = vmatmul.mubr.bf16.gmra.mrb[0].mxu0 %v894
        %v1048 = vpop.f32.mrb[0].mxu0
        %v1049 = vadd.f32 %v925, %v1048
        %v1050 = vpop.f32.mrb[0].mxu0
        %v1051 = vpop.f32.mrb[0].mxu0
        %v1052 = vadd.f32 %v925, %v1051
        %v1053 = vpop.f32.mrb[0].mxu0
        %1054 = vmatprep.mubr.bf16.mxu0 0
        %1055 = vmatmul.mubr.bf16.gmra.mrb[0].mxu0 %v895
        %v1056 = vpop.f32.mrb[0].mxu0
        %v1057 = vadd.f32 %v925, %v1056
        %v1058 = vpop.f32.mrb[0].mxu0
        %v1059 = vpop.f32.mrb[0].mxu0
        %v1060 = vadd.f32 %v925, %v1059
        %v1061 = vpop.f32.mrb[0].mxu0
        %1062 = vmatprep.mubr.bf16.mxu0 0
        %1063 = vmatmul.mubr.bf16.gmra.mrb[0].mxu0 %v896
        %v1064 = vpop.f32.mrb[0].mxu0
        %v1065 = vadd.f32 %v925, %v1064
        %v1066 = vpop.f32.mrb[0].mxu0
        %v1067 = vpop.f32.mrb[0].mxu0
        %v1068 = vadd.f32 %v925, %v1067
        %v1069 = vpop.f32.mrb[0].mxu0
        %1070 = vmatprep.mubr.bf16.mxu0 0
        %1071 = vmatmul.mubr.bf16.gmra.mrb[0].mxu0 %v897
        %v1072 = vpop.f32.mrb[0].mxu0
        %v1073 = vadd.f32 %v925, %v1072
        %v1074 = vpop.f32.mrb[0].mxu0
        %v1075 = vpop.f32.mrb[0].mxu0
        %v1076 = vadd.f32 %v925, %v1075
        %v1077 = vpop.f32.mrb[0].mxu0
        %1078 = vmatprep.mubr.bf16.mxu0 0
        %1079 = vmatmul.mubr.bf16.gmra.mrb[0].mxu0 %v898
        %v1080 = vpop.f32.mrb[0].mxu0
        %v1081 = vadd.f32 %v925, %v1080
        %v1082 = vpop.f32.mrb[0].mxu0
        %v1083 = vpop.f32.mrb[0].mxu0
        %v1084 = vadd.f32 %v925, %v1083
        %v1085 = vpop.f32.mrb[0].mxu0
        %1086 = vmatprep.mubr.bf16.mxu0 0
        %1087 = vmatmul.mubr.bf16.gmra.mrb[0].mxu0 %v899
        %v1088 = vpop.f32.mrb[0].mxu0
        %v1089 = vadd.f32 %v925, %v1088
        %v1090 = vpop.f32.mrb[0].mxu0
        %v1091 = vpop.f32.mrb[0].mxu0
        %v1092 = vadd.f32 %v925, %v1091
        %v1093 = vpop.f32.mrb[0].mxu0
        %1094 = vmatprep.mubr.bf16.mxu0 0
        %1095 = vmatmul.mubr.bf16.gmra.mrb[0].mxu0 %v900
        %v1096 = vpop.f32.mrb[0].mxu0
        %v1097 = vadd.f32 %v925, %v1096
        %v1098 = vpop.f32.mrb[0].mxu0
        %v1099 = vpop.f32.mrb[0].mxu0
        %v1100 = vadd.f32 %v925, %v1099
        %v1101 = vpop.f32.mrb[0].mxu0
        %1102 = vmatprep.mubr.bf16.mxu0 0
        %1103 = vmatmul.mubr.bf16.gmra.mrb[0].mxu0 %v901
        %v1104 = vpop.f32.mrb[0].mxu0
        %v1105 = vadd.f32 %v925, %v1104
        %v1106 = vpop.f32.mrb[0].mxu0
        %v1107 = vpop.f32.mrb[0].mxu0
        %v1108 = vadd.f32 %v925, %v1107
        %v1109 = vpop.f32.mrb[0].mxu0
        %1110 = vmatprep.mubr.bf16.mxu0 0
        %1111 = vmatmul.mubr.bf16.gmra.mrb[0].mxu0 %v902
        %v1112 = vpop.f32.mrb[0].mxu0
        %v1113 = vadd.f32 %v925, %v1112
        %v1114 = vpop.f32.mrb[0].mxu0
        %v1115 = vpop.f32.mrb[0].mxu0
        %v1116 = vadd.f32 %v925, %v1115
        %v1117 = vpop.f32.mrb[0].mxu0
        %1118 = vmatprep.mubr.bf16.mxu0 0
        %1119 = vmatmul.mubr.bf16.gmra.mrb[0].mxu0 %v903
        %v1120 = vpop.f32.mrb[0].mxu0
        %v1121 = vadd.f32 %v925, %v1120
        %v1122 = vpop.f32.mrb[0].mxu0
        %v1123 = vpop.f32.mrb[0].mxu0
        %v1124 = vadd.f32 %v925, %v1123
        %v1125 = vpop.f32.mrb[0].mxu0
        %1126 = vmatprep.mubr.bf16.mxu0 0
        %1127 = vmatmul.mubr.bf16.gmra.mrb[0].mxu0 %v904
        %v1128 = vpop.f32.mrb[0].mxu0
        %v1129 = vadd.f32 %v925, %v1128
        %v1130 = vpop.f32.mrb[0].mxu0
        %v1131 = vpop.f32.mrb[0].mxu0
        %v1132 = vadd.f32 %v925, %v1131
        %v1133 = vpop.f32.mrb[0].mxu0
        %1134 = vdwg.mxu0
        %v1135 = vmax.f32 %v1009, 0.0
        %v1136 = vmax.f32 %v1012, 0.0
        %v1137 = vmax.f32 %v1017, 0.0
        %v1138 = vmax.f32 %v1020, 0.0
        %v1139 = vmax.f32 %v1025, 0.0
        %v1140 = vmax.f32 %v1028, 0.0
        %v1141 = vmax.f32 %v1033, 0.0
        %v1142 = vmax.f32 %v1036, 0.0
        %v1143 = vmax.f32 %v1041, 0.0
        %v1144 = vmax.f32 %v1044, 0.0
        %v1145 = vmax.f32 %v1049, 0.0
        %v1146 = vmax.f32 %v1052, 0.0
        %v1147 = vmax.f32 %v1057, 0.0
        %v1148 = vmax.f32 %v1060, 0.0
        %v1149 = vmax.f32 %v1065, 0.0
        %v1150 = vmax.f32 %v1068, 0.0
        %v1151 = vmax.f32 %v1073, 0.0
        %v1152 = vmax.f32 %v1076, 0.0
        %v1153 = vmax.f32 %v1081, 0.0
        %v1154 = vmax.f32 %v1084, 0.0
        %v1155 = vmax.f32 %v1089, 0.0
        %v1156 = vmax.f32 %v1092, 0.0
        %v1157 = vmax.f32 %v1097, 0.0
        %v1158 = vmax.f32 %v1100, 0.0
        %v1159 = vmax.f32 %v1105, 0.0
        %v1160 = vmax.f32 %v1108, 0.0
        %v1161 = vmax.f32 %v1113, 0.0
        %v1162 = vmax.f32 %v1116, 0.0
        %v1163 = vmax.f32 %v1121, 0.0
        %v1164 = vmax.f32 %v1124, 0.0
        %v1165 = vmax.f32 %v1129, 0.0
        %v1166 = vmax.f32 %v1132, 0.0
        %v1167 = vpack.c.bf16 %v1136, %v1135
        %v1168 = vpack.c.bf16 %v1138, %v1137
        %v1169 = vpack.c.bf16 %v1140, %v1139
        %v1170 = vpack.c.bf16 %v1142, %v1141
        %v1171 = vpack.c.bf16 %v1144, %v1143
        %v1172 = vpack.c.bf16 %v1146, %v1145
        %v1173 = vpack.c.bf16 %v1148, %v1147
        %v1174 = vpack.c.bf16 %v1150, %v1149
        %v1175 = vpack.c.bf16 %v1152, %v1151
        %v1176 = vpack.c.bf16 %v1154, %v1153
        %v1177 = vpack.c.bf16 %v1156, %v1155
        %v1178 = vpack.c.bf16 %v1158, %v1157
        %v1179 = vpack.c.bf16 %v1160, %v1159
        %v1180 = vpack.c.bf16 %v1162, %v1161
        %v1181 = vpack.c.bf16 %v1164, %v1163
        %v1182 = vpack.c.bf16 %v1166, %v1165
        %v1183 = vld [vmem:[#allocation5 + $0xc0] sm:$0xf]
        %v1184 = vld [vmem:[#allocation5 + $0xc4] sm:$0xf]
        %v1185 = vld [vmem:[#allocation5 + $0xc8] sm:$0xf]
        %v1186 = vld [vmem:[#allocation5 + $0xcc] sm:$0xf]
        %v1187 = vld [vmem:[#allocation5 + $0xd0] sm:$0xf]
        %v1188 = vld [vmem:[#allocation5 + $0xd4] sm:$0xf]
        %v1189 = vld [vmem:[#allocation5 + $0xd8] sm:$0xf]
        %v1190 = vld [vmem:[#allocation5 + $0xdc] sm:$0xf]
        %v1191 = vld [vmem:[#allocation5 + $0xe0] sm:$0xf]
        %v1192 = vld [vmem:[#allocation5 + $0xe4] sm:$0xf]
        %v1193 = vld [vmem:[#allocation5 + $0xe8] sm:$0xf]
        %v1194 = vld [vmem:[#allocation5 + $0xec] sm:$0xf]
        %v1195 = vld [vmem:[#allocation5 + $0xf0] sm:$0xf]
        %v1196 = vld [vmem:[#allocation5 + $0xf4] sm:$0xf]
        %v1197 = vld [vmem:[#allocation5 + $0xf8] sm:$0xf]
        %v1198 = vld [vmem:[#allocation5 + $0xfc] sm:$0xf]
        %v1199 = vld [vmem:[#allocation7 + $0x3] sm:$0x1]
        %v1200 = vlaneseq
        %v1201 = vshrl.u32 %v1200, 7
        %v1202 = vsub.s32 0, %v1201
        %v1203 = vrot.slane %v1199, %v1202
        %v1220 = vunpack.c.l.b16 %v1183
        %v1221 = vunpack.c.l.b16 %v1184
        %v1222 = vunpack.c.l.b16 %v1185
        %v1223 = vunpack.c.l.b16 %v1186
        %v1224 = vunpack.c.l.b16 %v1187
        %v1225 = vunpack.c.l.b16 %v1188
        %v1226 = vunpack.c.l.b16 %v1189
        %v1227 = vunpack.c.l.b16 %v1190
        %v1228 = vunpack.c.l.b16 %v1191
        %v1229 = vunpack.c.l.b16 %v1192
        %v1230 = vunpack.c.l.b16 %v1193
        %v1231 = vunpack.c.l.b16 %v1194
        %v1232 = vunpack.c.l.b16 %v1195
        %v1233 = vunpack.c.l.b16 %v1196
        %v1234 = vunpack.c.l.b16 %v1197
        %v1235 = vunpack.c.l.b16 %v1198
        %v1236 = vpack.c.b16 %v1221, %v1220
        %v1237 = vpack.c.b16 %v1223, %v1222
        %v1238 = vpack.c.b16 %v1225, %v1224
        %v1239 = vpack.c.b16 %v1227, %v1226
        %v1240 = vpack.c.b16 %v1229, %v1228
        %v1241 = vpack.c.b16 %v1231, %v1230
        %v1242 = vpack.c.b16 %v1233, %v1232
        %v1243 = vpack.c.b16 %v1235, %v1234
        %1252 = vmatprep.subr.bf16.mxu0 0
        %1253 = vmatpush1.bf16.msra.mxu0 %v1236
        %1254 = vmatprep.subr.bf16.mxu0 0
        %1255 = vmatpush1.bf16.msra.mxu0 %v1237
        %1256 = vmatprep.subr.bf16.mxu0 0
        %1257 = vmatpush1.bf16.msra.mxu0 %v1238
        %1258 = vmatprep.subr.bf16.mxu0 0
        %1259 = vmatpush1.bf16.msra.mxu0 %v1239
        %1260 = vmatprep.subr.bf16.mxu0 0
        %1261 = vmatpush1.bf16.msra.mxu0 %v1240
        %1262 = vmatprep.subr.bf16.mxu0 0
        %1263 = vmatpush1.bf16.msra.mxu0 %v1241
        %1264 = vmatprep.subr.bf16.mxu0 0
        %1265 = vmatpush1.bf16.msra.mxu0 %v1242
        %1266 = vmatprep.subr.bf16.mxu0 0
        %1267 = vmatpush1.bf16.msra.mxu0 %v1243
        %1268 = vmatprep.subr.bf16.mxu0 0
        %1269 = vmatpush1.bf16.msra.mxu0 0
        %1270 = vmatprep.subr.bf16.mxu0 0
        %1271 = vmatpush1.bf16.msra.mxu0 0
        %1272 = vmatprep.subr.bf16.mxu0 0
        %1273 = vmatpush1.bf16.msra.mxu0 0
        %1274 = vmatprep.subr.bf16.mxu0 0
        %1275 = vmatpush1.bf16.msra.mxu0 0
        %1276 = vmatprep.subr.bf16.mxu0 0
        %1277 = vmatpush1.bf16.msra.mxu0 0
        %1278 = vmatprep.subr.bf16.mxu0 0
        %1279 = vmatpush1.bf16.msra.mxu0 0
        %1280 = vmatprep.subr.bf16.mxu0 0
        %1281 = vmatpush1.bf16.msra.mxu0 0
        %1282 = vmatprep.subr.bf16.mxu0 0
        %1283 = vmatpush1.bf16.msra.mxu0 0
        %1284 = vmatprep.mubr.bf16.mxu0 0
        %1285 = vmatmul.mubr.bf16.gmra.mrb[0].mxu0 %v1167
        %v1286 = vpop.f32.mrb[0].mxu0
        %v1287 = vadd.f32 %v1203, %v1286
        %v1288 = vpop.f32.mrb[0].mxu0
        %v1289 = vpop.f32.mrb[0].mxu0
        %v1290 = vadd.f32 %v1203, %v1289
        %v1291 = vpop.f32.mrb[0].mxu0
        %1292 = vmatprep.mubr.bf16.mxu0 0
        %1293 = vmatmul.mubr.bf16.gmra.mrb[0].mxu0 %v1168
        %v1294 = vpop.f32.mrb[0].mxu0
        %v1295 = vadd.f32 %v1203, %v1294
        %v1296 = vpop.f32.mrb[0].mxu0
        %v1297 = vpop.f32.mrb[0].mxu0
        %v1298 = vadd.f32 %v1203, %v1297
        %v1299 = vpop.f32.mrb[0].mxu0
        %1300 = vmatprep.mubr.bf16.mxu0 0
        %1301 = vmatmul.mubr.bf16.gmra.mrb[0].mxu0 %v1169
        %v1302 = vpop.f32.mrb[0].mxu0
        %v1303 = vadd.f32 %v1203, %v1302
        %v1304 = vpop.f32.mrb[0].mxu0
        %v1305 = vpop.f32.mrb[0].mxu0
        %v1306 = vadd.f32 %v1203, %v1305
        %v1307 = vpop.f32.mrb[0].mxu0
        %1308 = vmatprep.mubr.bf16.mxu0 0
        %1309 = vmatmul.mubr.bf16.gmra.mrb[0].mxu0 %v1170
        %v1310 = vpop.f32.mrb[0].mxu0
        %v1311 = vadd.f32 %v1203, %v1310
        %v1312 = vpop.f32.mrb[0].mxu0
        %v1313 = vpop.f32.mrb[0].mxu0
        %v1314 = vadd.f32 %v1203, %v1313
        %v1315 = vpop.f32.mrb[0].mxu0
        %1316 = vmatprep.mubr.bf16.mxu0 0
        %1317 = vmatmul.mubr.bf16.gmra.mrb[0].mxu0 %v1171
        %v1318 = vpop.f32.mrb[0].mxu0
        %v1319 = vadd.f32 %v1203, %v1318
        %v1320 = vpop.f32.mrb[0].mxu0
        %v1321 = vpop.f32.mrb[0].mxu0
        %v1322 = vadd.f32 %v1203, %v1321
        %v1323 = vpop.f32.mrb[0].mxu0
        %1324 = vmatprep.mubr.bf16.mxu0 0
        %1325 = vmatmul.mubr.bf16.gmra.mrb[0].mxu0 %v1172
        %v1326 = vpop.f32.mrb[0].mxu0
        %v1327 = vadd.f32 %v1203, %v1326
        %v1328 = vpop.f32.mrb[0].mxu0
        %v1329 = vpop.f32.mrb[0].mxu0
        %v1330 = vadd.f32 %v1203, %v1329
        %v1331 = vpop.f32.mrb[0].mxu0
        %1332 = vmatprep.mubr.bf16.mxu0 0
        %1333 = vmatmul.mubr.bf16.gmra.mrb[0].mxu0 %v1173
        %v1334 = vpop.f32.mrb[0].mxu0
        %v1335 = vadd.f32 %v1203, %v1334
        %v1336 = vpop.f32.mrb[0].mxu0
        %v1337 = vpop.f32.mrb[0].mxu0
        %v1338 = vadd.f32 %v1203, %v1337
        %v1339 = vpop.f32.mrb[0].mxu0
        %1340 = vmatprep.mubr.bf16.mxu0 0
        %1341 = vmatmul.mubr.bf16.gmra.mrb[0].mxu0 %v1174
        %v1342 = vpop.f32.mrb[0].mxu0
        %v1343 = vadd.f32 %v1203, %v1342
        %v1344 = vpop.f32.mrb[0].mxu0
        %v1345 = vpop.f32.mrb[0].mxu0
        %v1346 = vadd.f32 %v1203, %v1345
        %v1347 = vpop.f32.mrb[0].mxu0
        %1348 = vmatprep.mubr.bf16.mxu0 0
        %1349 = vmatmul.mubr.bf16.gmra.mrb[0].mxu0 %v1175
        %v1350 = vpop.f32.mrb[0].mxu0
        %v1351 = vadd.f32 %v1203, %v1350
        %v1352 = vpop.f32.mrb[0].mxu0
        %v1353 = vpop.f32.mrb[0].mxu0
        %v1354 = vadd.f32 %v1203, %v1353
        %v1355 = vpop.f32.mrb[0].mxu0
        %1356 = vmatprep.mubr.bf16.mxu0 0
        %1357 = vmatmul.mubr.bf16.gmra.mrb[0].mxu0 %v1176
        %v1358 = vpop.f32.mrb[0].mxu0
        %v1359 = vadd.f32 %v1203, %v1358
        %v1360 = vpop.f32.mrb[0].mxu0
        %v1361 = vpop.f32.mrb[0].mxu0
        %v1362 = vadd.f32 %v1203, %v1361
        %v1363 = vpop.f32.mrb[0].mxu0
        %1364 = vmatprep.mubr.bf16.mxu0 0
        %1365 = vmatmul.mubr.bf16.gmra.mrb[0].mxu0 %v1177
        %v1366 = vpop.f32.mrb[0].mxu0
        %v1367 = vadd.f32 %v1203, %v1366
        %v1368 = vpop.f32.mrb[0].mxu0
        %v1369 = vpop.f32.mrb[0].mxu0
        %v1370 = vadd.f32 %v1203, %v1369
        %v1371 = vpop.f32.mrb[0].mxu0
        %1372 = vmatprep.mubr.bf16.mxu0 0
        %1373 = vmatmul.mubr.bf16.gmra.mrb[0].mxu0 %v1178
        %v1374 = vpop.f32.mrb[0].mxu0
        %v1375 = vadd.f32 %v1203, %v1374
        %v1376 = vpop.f32.mrb[0].mxu0
        %v1377 = vpop.f32.mrb[0].mxu0
        %v1378 = vadd.f32 %v1203, %v1377
        %v1379 = vpop.f32.mrb[0].mxu0
        %1380 = vmatprep.mubr.bf16.mxu0 0
        %1381 = vmatmul.mubr.bf16.gmra.mrb[0].mxu0 %v1179
        %v1382 = vpop.f32.mrb[0].mxu0
        %v1383 = vadd.f32 %v1203, %v1382
        %v1384 = vpop.f32.mrb[0].mxu0
        %v1385 = vpop.f32.mrb[0].mxu0
        %v1386 = vadd.f32 %v1203, %v1385
        %v1387 = vpop.f32.mrb[0].mxu0
        %1388 = vmatprep.mubr.bf16.mxu0 0
        %1389 = vmatmul.mubr.bf16.gmra.mrb[0].mxu0 %v1180
        %v1390 = vpop.f32.mrb[0].mxu0
        %v1391 = vadd.f32 %v1203, %v1390
        %v1392 = vpop.f32.mrb[0].mxu0
        %v1393 = vpop.f32.mrb[0].mxu0
        %v1394 = vadd.f32 %v1203, %v1393
        %v1395 = vpop.f32.mrb[0].mxu0
        %1396 = vmatprep.mubr.bf16.mxu0 0
        %1397 = vmatmul.mubr.bf16.gmra.mrb[0].mxu0 %v1181
        %v1398 = vpop.f32.mrb[0].mxu0
        %v1399 = vadd.f32 %v1203, %v1398
        %v1400 = vpop.f32.mrb[0].mxu0
        %v1401 = vpop.f32.mrb[0].mxu0
        %v1402 = vadd.f32 %v1203, %v1401
        %v1403 = vpop.f32.mrb[0].mxu0
        %1404 = vmatprep.mubr.bf16.mxu0 0
        %1405 = vmatmul.mubr.bf16.gmra.mrb[0].mxu0 %v1182
        %v1406 = vpop.f32.mrb[0].mxu0
        %v1407 = vadd.f32 %v1203, %v1406
        %v1408 = vpop.f32.mrb[0].mxu0
        %v1409 = vpop.f32.mrb[0].mxu0
        %v1410 = vadd.f32 %v1203, %v1409
        %v1411 = vpop.f32.mrb[0].mxu0
        %1412 = vdwg.mxu0
        %v1413 = vmax.f32 %v1287, 0.0
        %v1414 = vmax.f32 %v1290, 0.0
        %v1415 = vmax.f32 %v1295, 0.0
        %v1416 = vmax.f32 %v1298, 0.0
        %v1417 = vmax.f32 %v1303, 0.0
        %v1418 = vmax.f32 %v1306, 0.0
        %v1419 = vmax.f32 %v1311, 0.0
        %v1420 = vmax.f32 %v1314, 0.0
        %v1421 = vmax.f32 %v1319, 0.0
        %v1422 = vmax.f32 %v1322, 0.0
        %v1423 = vmax.f32 %v1327, 0.0
        %v1424 = vmax.f32 %v1330, 0.0
        %v1425 = vmax.f32 %v1335, 0.0
        %v1426 = vmax.f32 %v1338, 0.0
        %v1427 = vmax.f32 %v1343, 0.0
        %v1428 = vmax.f32 %v1346, 0.0
        %v1429 = vmax.f32 %v1351, 0.0
        %v1430 = vmax.f32 %v1354, 0.0
        %v1431 = vmax.f32 %v1359, 0.0
        %v1432 = vmax.f32 %v1362, 0.0
        %v1433 = vmax.f32 %v1367, 0.0
        %v1434 = vmax.f32 %v1370, 0.0
        %v1435 = vmax.f32 %v1375, 0.0
        %v1436 = vmax.f32 %v1378, 0.0
        %v1437 = vmax.f32 %v1383, 0.0
        %v1438 = vmax.f32 %v1386, 0.0
        %v1439 = vmax.f32 %v1391, 0.0
        %v1440 = vmax.f32 %v1394, 0.0
        %v1441 = vmax.f32 %v1399, 0.0
        %v1442 = vmax.f32 %v1402, 0.0
        %v1443 = vmax.f32 %v1407, 0.0
        %v1444 = vmax.f32 %v1410, 0.0
        %v1445 = vpack.c.bf16 %v1414, %v1413
        %v1446 = vpack.c.bf16 %v1416, %v1415
        %v1447 = vpack.c.bf16 %v1418, %v1417
        %v1448 = vpack.c.bf16 %v1420, %v1419
        %v1449 = vpack.c.bf16 %v1422, %v1421
        %v1450 = vpack.c.bf16 %v1424, %v1423
        %v1451 = vpack.c.bf16 %v1426, %v1425
        %v1452 = vpack.c.bf16 %v1428, %v1427
        %v1453 = vpack.c.bf16 %v1430, %v1429
        %v1454 = vpack.c.bf16 %v1432, %v1431
        %v1455 = vpack.c.bf16 %v1434, %v1433
        %v1456 = vpack.c.bf16 %v1436, %v1435
        %v1457 = vpack.c.bf16 %v1438, %v1437
        %v1458 = vpack.c.bf16 %v1440, %v1439
        %v1459 = vpack.c.bf16 %v1442, %v1441
        %v1460 = vpack.c.bf16 %v1444, %v1443
        %v1461 = vld [vmem:[#allocation5 + $0x100] sm:$0xf]
        %v1462 = vld [vmem:[#allocation5 + $0x104] sm:$0xf]
        %v1463 = vld [vmem:[#allocation5 + $0x108] sm:$0xf]
        %v1464 = vld [vmem:[#allocation5 + $0x10c] sm:$0xf]
        %v1465 = vld [vmem:[#allocation5 + $0x110] sm:$0xf]
        %v1466 = vld [vmem:[#allocation5 + $0x114] sm:$0xf]
        %v1467 = vld [vmem:[#allocation5 + $0x118] sm:$0xf]
        %v1468 = vld [vmem:[#allocation5 + $0x11c] sm:$0xf]
        %v1469 = vld [vmem:[#allocation5 + $0x120] sm:$0xf]
        %v1470 = vld [vmem:[#allocation5 + $0x124] sm:$0xf]
        %v1471 = vld [vmem:[#allocation5 + $0x128] sm:$0xf]
        %v1472 = vld [vmem:[#allocation5 + $0x12c] sm:$0xf]
        %v1473 = vld [vmem:[#allocation5 + $0x130] sm:$0xf]
        %v1474 = vld [vmem:[#allocation5 + $0x134] sm:$0xf]
        %v1475 = vld [vmem:[#allocation5 + $0x138] sm:$0xf]
        %v1476 = vld [vmem:[#allocation5 + $0x13c] sm:$0xf]
        %v1477 = vld [vmem:[#allocation7 + $0x4] sm:$0x1]
        %v1478 = vlaneseq
        %v1479 = vshrl.u32 %v1478, 7
        %v1480 = vsub.s32 0, %v1479
        %v1481 = vrot.slane %v1477, %v1480
        %v1498 = vunpack.c.l.b16 %v1461
        %v1499 = vunpack.c.l.b16 %v1462
        %v1500 = vunpack.c.l.b16 %v1463
        %v1501 = vunpack.c.l.b16 %v1464
        %v1502 = vunpack.c.l.b16 %v1465
        %v1503 = vunpack.c.l.b16 %v1466
        %v1504 = vunpack.c.l.b16 %v1467
        %v1505 = vunpack.c.l.b16 %v1468
        %v1506 = vunpack.c.l.b16 %v1469
        %v1507 = vunpack.c.l.b16 %v1470
        %v1508 = vunpack.c.l.b16 %v1471
        %v1509 = vunpack.c.l.b16 %v1472
        %v1510 = vunpack.c.l.b16 %v1473
        %v1511 = vunpack.c.l.b16 %v1474
        %v1512 = vunpack.c.l.b16 %v1475
        %v1513 = vunpack.c.l.b16 %v1476
        %v1514 = vpack.c.b16 %v1499, %v1498
        %v1515 = vpack.c.b16 %v1501, %v1500
        %v1516 = vpack.c.b16 %v1503, %v1502
        %v1517 = vpack.c.b16 %v1505, %v1504
        %v1518 = vpack.c.b16 %v1507, %v1506
        %v1519 = vpack.c.b16 %v1509, %v1508
        %v1520 = vpack.c.b16 %v1511, %v1510
        %v1521 = vpack.c.b16 %v1513, %v1512
        %1530 = vmatprep.subr.bf16.mxu0 0
        %1531 = vmatpush1.bf16.msra.mxu0 %v1514
        %1532 = vmatprep.subr.bf16.mxu0 0
        %1533 = vmatpush1.bf16.msra.mxu0 %v1515
        %1534 = vmatprep.subr.bf16.mxu0 0
        %1535 = vmatpush1.bf16.msra.mxu0 %v1516
        %1536 = vmatprep.subr.bf16.mxu0 0
        %1537 = vmatpush1.bf16.msra.mxu0 %v1517
        %1538 = vmatprep.subr.bf16.mxu0 0
        %1539 = vmatpush1.bf16.msra.mxu0 %v1518
        %1540 = vmatprep.subr.bf16.mxu0 0
        %1541 = vmatpush1.bf16.msra.mxu0 %v1519
        %1542 = vmatprep.subr.bf16.mxu0 0
        %1543 = vmatpush1.bf16.msra.mxu0 %v1520
        %1544 = vmatprep.subr.bf16.mxu0 0
        %1545 = vmatpush1.bf16.msra.mxu0 %v1521
        %1546 = vmatprep.subr.bf16.mxu0 0
        %1547 = vmatpush1.bf16.msra.mxu0 0
        %1548 = vmatprep.subr.bf16.mxu0 0
        %1549 = vmatpush1.bf16.msra.mxu0 0
        %1550 = vmatprep.subr.bf16.mxu0 0
        %1551 = vmatpush1.bf16.msra.mxu0 0
        %1552 = vmatprep.subr.bf16.mxu0 0
        %1553 = vmatpush1.bf16.msra.mxu0 0
        %1554 = vmatprep.subr.bf16.mxu0 0
        %1555 = vmatpush1.bf16.msra.mxu0 0
        %1556 = vmatprep.subr.bf16.mxu0 0
        %1557 = vmatpush1.bf16.msra.mxu0 0
        %1558 = vmatprep.subr.bf16.mxu0 0
        %1559 = vmatpush1.bf16.msra.mxu0 0
        %1560 = vmatprep.subr.bf16.mxu0 0
        %1561 = vmatpush1.bf16.msra.mxu0 0
        %1562 = vmatprep.mubr.bf16.mxu0 0
        %1563 = vmatmul.mubr.bf16.gmra.mrb[0].mxu0 %v1445
        %v1564 = vpop.f32.mrb[0].mxu0
        %v1565 = vadd.f32 %v1481, %v1564
        %v1566 = vpop.f32.mrb[0].mxu0
        %v1567 = vpop.f32.mrb[0].mxu0
        %v1568 = vadd.f32 %v1481, %v1567
        %v1569 = vpop.f32.mrb[0].mxu0
        %1570 = vmatprep.mubr.bf16.mxu0 0
        %1571 = vmatmul.mubr.bf16.gmra.mrb[0].mxu0 %v1446
        %v1572 = vpop.f32.mrb[0].mxu0
        %v1573 = vadd.f32 %v1481, %v1572
        %v1574 = vpop.f32.mrb[0].mxu0
        %v1575 = vpop.f32.mrb[0].mxu0
        %v1576 = vadd.f32 %v1481, %v1575
        %v1577 = vpop.f32.mrb[0].mxu0
        %1578 = vmatprep.mubr.bf16.mxu0 0
        %1579 = vmatmul.mubr.bf16.gmra.mrb[0].mxu0 %v1447
        %v1580 = vpop.f32.mrb[0].mxu0
        %v1581 = vadd.f32 %v1481, %v1580
        %v1582 = vpop.f32.mrb[0].mxu0
        %v1583 = vpop.f32.mrb[0].mxu0
        %v1584 = vadd.f32 %v1481, %v1583
        %v1585 = vpop.f32.mrb[0].mxu0
        %1586 = vmatprep.mubr.bf16.mxu0 0
        %1587 = vmatmul.mubr.bf16.gmra.mrb[0].mxu0 %v1448
        %v1588 = vpop.f32.mrb[0].mxu0
        %v1589 = vadd.f32 %v1481, %v1588
        %v1590 = vpop.f32.mrb[0].mxu0
        %v1591 = vpop.f32.mrb[0].mxu0
        %v1592 = vadd.f32 %v1481, %v1591
        %v1593 = vpop.f32.mrb[0].mxu0
        %1594 = vmatprep.mubr.bf16.mxu0 0
        %1595 = vmatmul.mubr.bf16.gmra.mrb[0].mxu0 %v1449
        %v1596 = vpop.f32.mrb[0].mxu0
        %v1597 = vadd.f32 %v1481, %v1596
        %v1598 = vpop.f32.mrb[0].mxu0
        %v1599 = vpop.f32.mrb[0].mxu0
        %v1600 = vadd.f32 %v1481, %v1599
        %v1601 = vpop.f32.mrb[0].mxu0
        %1602 = vmatprep.mubr.bf16.mxu0 0
        %1603 = vmatmul.mubr.bf16.gmra.mrb[0].mxu0 %v1450
        %v1604 = vpop.f32.mrb[0].mxu0
        %v1605 = vadd.f32 %v1481, %v1604
        %v1606 = vpop.f32.mrb[0].mxu0
        %v1607 = vpop.f32.mrb[0].mxu0
        %v1608 = vadd.f32 %v1481, %v1607
        %v1609 = vpop.f32.mrb[0].mxu0
        %1610 = vmatprep.mubr.bf16.mxu0 0
        %1611 = vmatmul.mubr.bf16.gmra.mrb[0].mxu0 %v1451
        %v1612 = vpop.f32.mrb[0].mxu0
        %v1613 = vadd.f32 %v1481, %v1612
        %v1614 = vpop.f32.mrb[0].mxu0
        %v1615 = vpop.f32.mrb[0].mxu0
        %v1616 = vadd.f32 %v1481, %v1615
        %v1617 = vpop.f32.mrb[0].mxu0
        %1618 = vmatprep.mubr.bf16.mxu0 0
        %1619 = vmatmul.mubr.bf16.gmra.mrb[0].mxu0 %v1452
        %v1620 = vpop.f32.mrb[0].mxu0
        %v1621 = vadd.f32 %v1481, %v1620
        %v1622 = vpop.f32.mrb[0].mxu0
        %v1623 = vpop.f32.mrb[0].mxu0
        %v1624 = vadd.f32 %v1481, %v1623
        %v1625 = vpop.f32.mrb[0].mxu0
        %1626 = vmatprep.mubr.bf16.mxu0 0
        %1627 = vmatmul.mubr.bf16.gmra.mrb[0].mxu0 %v1453
        %v1628 = vpop.f32.mrb[0].mxu0
        %v1629 = vadd.f32 %v1481, %v1628
        %v1630 = vpop.f32.mrb[0].mxu0
        %v1631 = vpop.f32.mrb[0].mxu0
        %v1632 = vadd.f32 %v1481, %v1631
        %v1633 = vpop.f32.mrb[0].mxu0
        %1634 = vmatprep.mubr.bf16.mxu0 0
        %1635 = vmatmul.mubr.bf16.gmra.mrb[0].mxu0 %v1454
        %v1636 = vpop.f32.mrb[0].mxu0
        %v1637 = vadd.f32 %v1481, %v1636
        %v1638 = vpop.f32.mrb[0].mxu0
        %v1639 = vpop.f32.mrb[0].mxu0
        %v1640 = vadd.f32 %v1481, %v1639
        %v1641 = vpop.f32.mrb[0].mxu0
        %1642 = vmatprep.mubr.bf16.mxu0 0
        %1643 = vmatmul.mubr.bf16.gmra.mrb[0].mxu0 %v1455
        %v1644 = vpop.f32.mrb[0].mxu0
        %v1645 = vadd.f32 %v1481, %v1644
        %v1646 = vpop.f32.mrb[0].mxu0
        %v1647 = vpop.f32.mrb[0].mxu0
        %v1648 = vadd.f32 %v1481, %v1647
        %v1649 = vpop.f32.mrb[0].mxu0
        %1650 = vmatprep.mubr.bf16.mxu0 0
        %1651 = vmatmul.mubr.bf16.gmra.mrb[0].mxu0 %v1456
        %v1652 = vpop.f32.mrb[0].mxu0
        %v1653 = vadd.f32 %v1481, %v1652
        %v1654 = vpop.f32.mrb[0].mxu0
        %v1655 = vpop.f32.mrb[0].mxu0
        %v1656 = vadd.f32 %v1481, %v1655
        %v1657 = vpop.f32.mrb[0].mxu0
        %1658 = vmatprep.mubr.bf16.mxu0 0
        %1659 = vmatmul.mubr.bf16.gmra.mrb[0].mxu0 %v1457
        %v1660 = vpop.f32.mrb[0].mxu0
        %v1661 = vadd.f32 %v1481, %v1660
        %v1662 = vpop.f32.mrb[0].mxu0
        %v1663 = vpop.f32.mrb[0].mxu0
        %v1664 = vadd.f32 %v1481, %v1663
        %v1665 = vpop.f32.mrb[0].mxu0
        %1666 = vmatprep.mubr.bf16.mxu0 0
        %1667 = vmatmul.mubr.bf16.gmra.mrb[0].mxu0 %v1458
        %v1668 = vpop.f32.mrb[0].mxu0
        %v1669 = vadd.f32 %v1481, %v1668
        %v1670 = vpop.f32.mrb[0].mxu0
        %v1671 = vpop.f32.mrb[0].mxu0
        %v1672 = vadd.f32 %v1481, %v1671
        %v1673 = vpop.f32.mrb[0].mxu0
        %1674 = vmatprep.mubr.bf16.mxu0 0
        %1675 = vmatmul.mubr.bf16.gmra.mrb[0].mxu0 %v1459
        %v1676 = vpop.f32.mrb[0].mxu0
        %v1677 = vadd.f32 %v1481, %v1676
        %v1678 = vpop.f32.mrb[0].mxu0
        %v1679 = vpop.f32.mrb[0].mxu0
        %v1680 = vadd.f32 %v1481, %v1679
        %v1681 = vpop.f32.mrb[0].mxu0
        %1682 = vmatprep.mubr.bf16.mxu0 0
        %1683 = vmatmul.mubr.bf16.gmra.mrb[0].mxu0 %v1460
        %v1684 = vpop.f32.mrb[0].mxu0
        %v1685 = vadd.f32 %v1481, %v1684
        %v1686 = vpop.f32.mrb[0].mxu0
        %v1687 = vpop.f32.mrb[0].mxu0
        %v1688 = vadd.f32 %v1481, %v1687
        %v1689 = vpop.f32.mrb[0].mxu0
        %1690 = vdwg.mxu0
        %v1691 = vmax.f32 %v1565, 0.0
        %v1692 = vmax.f32 %v1568, 0.0
        %v1693 = vmax.f32 %v1573, 0.0
        %v1694 = vmax.f32 %v1576, 0.0
        %v1695 = vmax.f32 %v1581, 0.0
        %v1696 = vmax.f32 %v1584, 0.0
        %v1697 = vmax.f32 %v1589, 0.0
        %v1698 = vmax.f32 %v1592, 0.0
        %v1699 = vmax.f32 %v1597, 0.0
        %v1700 = vmax.f32 %v1600, 0.0
        %v1701 = vmax.f32 %v1605, 0.0
        %v1702 = vmax.f32 %v1608, 0.0
        %v1703 = vmax.f32 %v1613, 0.0
        %v1704 = vmax.f32 %v1616, 0.0
        %v1705 = vmax.f32 %v1621, 0.0
        %v1706 = vmax.f32 %v1624, 0.0
        %v1707 = vmax.f32 %v1629, 0.0
        %v1708 = vmax.f32 %v1632, 0.0
        %v1709 = vmax.f32 %v1637, 0.0
        %v1710 = vmax.f32 %v1640, 0.0
        %v1711 = vmax.f32 %v1645, 0.0
        %v1712 = vmax.f32 %v1648, 0.0
        %v1713 = vmax.f32 %v1653, 0.0
        %v1714 = vmax.f32 %v1656, 0.0
        %v1715 = vmax.f32 %v1661, 0.0
        %v1716 = vmax.f32 %v1664, 0.0
        %v1717 = vmax.f32 %v1669, 0.0
        %v1718 = vmax.f32 %v1672, 0.0
        %v1719 = vmax.f32 %v1677, 0.0
        %v1720 = vmax.f32 %v1680, 0.0
        %v1721 = vmax.f32 %v1685, 0.0
        %v1722 = vmax.f32 %v1688, 0.0
        %v1723 = vld [vmem:[#allocation5 + $0x140] sm:$0xf]
        %v1724 = vld [vmem:[#allocation5 + $0x144] sm:$0xf]
        %v1725 = vld [vmem:[#allocation5 + $0x148] sm:$0xf]
        %v1726 = vld [vmem:[#allocation5 + $0x14c] sm:$0xf]
        %v1727 = vld [vmem:[#allocation5 + $0x150] sm:$0xf]
        %v1728 = vld [vmem:[#allocation5 + $0x154] sm:$0xf]
        %v1729 = vld [vmem:[#allocation5 + $0x158] sm:$0xf]
        %v1730 = vld [vmem:[#allocation5 + $0x15c] sm:$0xf]
        %v1731 = vld [vmem:[#allocation5 + $0x160] sm:$0xf]
        %v1732 = vld [vmem:[#allocation5 + $0x164] sm:$0xf]
        %v1733 = vld [vmem:[#allocation5 + $0x168] sm:$0xf]
        %v1734 = vld [vmem:[#allocation5 + $0x16c] sm:$0xf]
        %v1735 = vld [vmem:[#allocation5 + $0x170] sm:$0xf]
        %v1736 = vld [vmem:[#allocation5 + $0x174] sm:$0xf]
        %v1737 = vld [vmem:[#allocation5 + $0x178] sm:$0xf]
        %v1738 = vld [vmem:[#allocation5 + $0x17c] sm:$0xf]
        %v1739 = vpack.c.bf16 %v1692, %v1691
        %v1740 = vpack.c.bf16 %v1694, %v1693
        %v1741 = vpack.c.bf16 %v1696, %v1695
        %v1742 = vpack.c.bf16 %v1698, %v1697
        %v1743 = vpack.c.bf16 %v1700, %v1699
        %v1744 = vpack.c.bf16 %v1702, %v1701
        %v1745 = vpack.c.bf16 %v1704, %v1703
        %v1746 = vpack.c.bf16 %v1706, %v1705
        %v1747 = vpack.c.bf16 %v1708, %v1707
        %v1748 = vpack.c.bf16 %v1710, %v1709
        %v1749 = vpack.c.bf16 %v1712, %v1711
        %v1750 = vpack.c.bf16 %v1714, %v1713
        %v1751 = vpack.c.bf16 %v1716, %v1715
        %v1752 = vpack.c.bf16 %v1718, %v1717
        %v1753 = vpack.c.bf16 %v1720, %v1719
        %v1754 = vpack.c.bf16 %v1722, %v1721
        %v1755 = vld [vmem:[#allocation5 + $0x180] sm:$0xf]
        %v1756 = vld [vmem:[#allocation5 + $0x184] sm:$0xf]
        %v1757 = vld [vmem:[#allocation5 + $0x188] sm:$0xf]
        %v1758 = vld [vmem:[#allocation5 + $0x18c] sm:$0xf]
        %v1759 = vld [vmem:[#allocation5 + $0x190] sm:$0xf]
        %v1760 = vld [vmem:[#allocation5 + $0x194] sm:$0xf]
        %v1761 = vld [vmem:[#allocation5 + $0x198] sm:$0xf]
        %v1762 = vld [vmem:[#allocation5 + $0x19c] sm:$0xf]
        %v1763 = vld [vmem:[#allocation5 + $0x1a0] sm:$0xf]
        %v1764 = vld [vmem:[#allocation5 + $0x1a4] sm:$0xf]
        %v1765 = vld [vmem:[#allocation5 + $0x1a8] sm:$0xf]
        %v1766 = vld [vmem:[#allocation5 + $0x1ac] sm:$0xf]
        %v1767 = vld [vmem:[#allocation5 + $0x1b0] sm:$0xf]
        %v1768 = vld [vmem:[#allocation5 + $0x1b4] sm:$0xf]
        %v1769 = vld [vmem:[#allocation5 + $0x1b8] sm:$0xf]
        %v1770 = vld [vmem:[#allocation5 + $0x1bc] sm:$0xf]
        %v1787 = vunpack.c.l.b16 %v1755
        %v1788 = vunpack.c.l.b16 %v1756
        %v1789 = vunpack.c.l.b16 %v1757
        %v1790 = vunpack.c.l.b16 %v1758
        %v1791 = vunpack.c.l.b16 %v1759
        %v1792 = vunpack.c.l.b16 %v1760
        %v1793 = vunpack.c.l.b16 %v1761
        %v1794 = vunpack.c.l.b16 %v1762
        %v1795 = vunpack.c.l.b16 %v1763
        %v1796 = vunpack.c.l.b16 %v1764
        %v1797 = vunpack.c.l.b16 %v1765
        %v1798 = vunpack.c.l.b16 %v1766
        %v1799 = vunpack.c.l.b16 %v1767
        %v1800 = vunpack.c.l.b16 %v1768
        %v1801 = vunpack.c.l.b16 %v1769
        %v1802 = vunpack.c.l.b16 %v1770
        %v1803 = vpack.c.b16 %v1788, %v1787
        %v1804 = vpack.c.b16 %v1790, %v1789
        %v1805 = vpack.c.b16 %v1792, %v1791
        %v1806 = vpack.c.b16 %v1794, %v1793
        %v1807 = vpack.c.b16 %v1796, %v1795
        %v1808 = vpack.c.b16 %v1798, %v1797
        %v1809 = vpack.c.b16 %v1800, %v1799
        %v1810 = vpack.c.b16 %v1802, %v1801
        %1819 = vmatprep.subr.bf16.mxu0 0
        %1820 = vmatpush1.bf16.msra.mxu0 %v1803
        %1821 = vmatprep.subr.bf16.mxu0 0
        %1822 = vmatpush1.bf16.msra.mxu0 %v1804
        %1823 = vmatprep.subr.bf16.mxu0 0
        %1824 = vmatpush1.bf16.msra.mxu0 %v1805
        %1825 = vmatprep.subr.bf16.mxu0 0
        %1826 = vmatpush1.bf16.msra.mxu0 %v1806
        %1827 = vmatprep.subr.bf16.mxu0 0
        %1828 = vmatpush1.bf16.msra.mxu0 %v1807
        %1829 = vmatprep.subr.bf16.mxu0 0
        %1830 = vmatpush1.bf16.msra.mxu0 %v1808
        %1831 = vmatprep.subr.bf16.mxu0 0
        %1832 = vmatpush1.bf16.msra.mxu0 %v1809
        %1833 = vmatprep.subr.bf16.mxu0 0
        %1834 = vmatpush1.bf16.msra.mxu0 %v1810
        %1835 = vmatprep.subr.bf16.mxu0 0
        %1836 = vmatpush1.bf16.msra.mxu0 0
        %1837 = vmatprep.subr.bf16.mxu0 0
        %1838 = vmatpush1.bf16.msra.mxu0 0
        %1839 = vmatprep.subr.bf16.mxu0 0
        %1840 = vmatpush1.bf16.msra.mxu0 0
        %1841 = vmatprep.subr.bf16.mxu0 0
        %1842 = vmatpush1.bf16.msra.mxu0 0
        %1843 = vmatprep.subr.bf16.mxu0 0
        %1844 = vmatpush1.bf16.msra.mxu0 0
        %1845 = vmatprep.subr.bf16.mxu0 0
        %1846 = vmatpush1.bf16.msra.mxu0 0
        %1847 = vmatprep.subr.bf16.mxu0 0
        %1848 = vmatpush1.bf16.msra.mxu0 0
        %1849 = vmatprep.subr.bf16.mxu0 0
        %1850 = vmatpush1.bf16.msra.mxu0 0
        %1851 = vmatprep.mubr.bf16.mxu0 0
        %1852 = vmatmul.mubr.bf16.gmra.mrb[0].mxu0 %v1739
        %v1853 = vpop.f32.mrb[0].mxu0
        %v1854 = vadd.f32 0.0, %v1853
        %v1855 = vpop.f32.mrb[0].mxu0
        %v1856 = vpop.f32.mrb[0].mxu0
        %v1857 = vadd.f32 0.0, %v1856
        %v1858 = vpop.f32.mrb[0].mxu0
        %1859 = vmatprep.mubr.bf16.mxu0 0
        %1860 = vmatmul.mubr.bf16.gmra.mrb[0].mxu0 %v1740
        %v1861 = vpop.f32.mrb[0].mxu0
        %v1862 = vadd.f32 0.0, %v1861
        %v1863 = vpop.f32.mrb[0].mxu0
        %v1864 = vpop.f32.mrb[0].mxu0
        %v1865 = vadd.f32 0.0, %v1864
        %v1866 = vpop.f32.mrb[0].mxu0
        %1867 = vmatprep.mubr.bf16.mxu0 0
        %1868 = vmatmul.mubr.bf16.gmra.mrb[0].mxu0 %v1741
        %v1869 = vpop.f32.mrb[0].mxu0
        %v1870 = vadd.f32 0.0, %v1869
        %v1871 = vpop.f32.mrb[0].mxu0
        %v1872 = vpop.f32.mrb[0].mxu0
        %v1873 = vadd.f32 0.0, %v1872
        %v1874 = vpop.f32.mrb[0].mxu0
        %1875 = vmatprep.mubr.bf16.mxu0 0
        %1876 = vmatmul.mubr.bf16.gmra.mrb[0].mxu0 %v1742
        %v1877 = vpop.f32.mrb[0].mxu0
        %v1878 = vadd.f32 0.0, %v1877
        %v1879 = vpop.f32.mrb[0].mxu0
        %v1880 = vpop.f32.mrb[0].mxu0
        %v1881 = vadd.f32 0.0, %v1880
        %v1882 = vpop.f32.mrb[0].mxu0
        %1883 = vmatprep.mubr.bf16.mxu0 0
        %1884 = vmatmul.mubr.bf16.gmra.mrb[0].mxu0 %v1743
        %v1885 = vpop.f32.mrb[0].mxu0
        %v1886 = vadd.f32 0.0, %v1885
        %v1887 = vpop.f32.mrb[0].mxu0
        %v1888 = vpop.f32.mrb[0].mxu0
        %v1889 = vadd.f32 0.0, %v1888
        %v1890 = vpop.f32.mrb[0].mxu0
        %1891 = vmatprep.mubr.bf16.mxu0 0
        %1892 = vmatmul.mubr.bf16.gmra.mrb[0].mxu0 %v1744
        %v1893 = vpop.f32.mrb[0].mxu0
        %v1894 = vadd.f32 0.0, %v1893
        %v1895 = vpop.f32.mrb[0].mxu0
        %v1896 = vpop.f32.mrb[0].mxu0
        %v1897 = vadd.f32 0.0, %v1896
        %v1898 = vpop.f32.mrb[0].mxu0
        %1899 = vmatprep.mubr.bf16.mxu0 0
        %1900 = vmatmul.mubr.bf16.gmra.mrb[0].mxu0 %v1745
        %v1901 = vpop.f32.mrb[0].mxu0
        %v1902 = vadd.f32 0.0, %v1901
        %v1903 = vpop.f32.mrb[0].mxu0
        %v1904 = vpop.f32.mrb[0].mxu0
        %v1905 = vadd.f32 0.0, %v1904
        %v1906 = vpop.f32.mrb[0].mxu0
        %1907 = vmatprep.mubr.bf16.mxu0 0
        %1908 = vmatmul.mubr.bf16.gmra.mrb[0].mxu0 %v1746
        %v1909 = vpop.f32.mrb[0].mxu0
        %v1910 = vadd.f32 0.0, %v1909
        %v1911 = vpop.f32.mrb[0].mxu0
        %v1912 = vpop.f32.mrb[0].mxu0
        %v1913 = vadd.f32 0.0, %v1912
        %v1914 = vpop.f32.mrb[0].mxu0
        %1915 = vmatprep.mubr.bf16.mxu0 0
        %1916 = vmatmul.mubr.bf16.gmra.mrb[0].mxu0 %v1747
        %v1917 = vpop.f32.mrb[0].mxu0
        %v1918 = vadd.f32 0.0, %v1917
        %v1919 = vpop.f32.mrb[0].mxu0
        %v1920 = vpop.f32.mrb[0].mxu0
        %v1921 = vadd.f32 0.0, %v1920
        %v1922 = vpop.f32.mrb[0].mxu0
        %1923 = vmatprep.mubr.bf16.mxu0 0
        %1924 = vmatmul.mubr.bf16.gmra.mrb[0].mxu0 %v1748
        %v1925 = vpop.f32.mrb[0].mxu0
        %v1926 = vadd.f32 0.0, %v1925
        %v1927 = vpop.f32.mrb[0].mxu0
        %v1928 = vpop.f32.mrb[0].mxu0
        %v1929 = vadd.f32 0.0, %v1928
        %v1930 = vpop.f32.mrb[0].mxu0
        %1931 = vmatprep.mubr.bf16.mxu0 0
        %1932 = vmatmul.mubr.bf16.gmra.mrb[0].mxu0 %v1749
        %v1933 = vpop.f32.mrb[0].mxu0
        %v1934 = vadd.f32 0.0, %v1933
        %v1935 = vpop.f32.mrb[0].mxu0
        %v1936 = vpop.f32.mrb[0].mxu0
        %v1937 = vadd.f32 0.0, %v1936
        %v1938 = vpop.f32.mrb[0].mxu0
        %1939 = vmatprep.mubr.bf16.mxu0 0
        %1940 = vmatmul.mubr.bf16.gmra.mrb[0].mxu0 %v1750
        %v1941 = vpop.f32.mrb[0].mxu0
        %v1942 = vadd.f32 0.0, %v1941
        %v1943 = vpop.f32.mrb[0].mxu0
        %v1944 = vpop.f32.mrb[0].mxu0
        %v1945 = vadd.f32 0.0, %v1944
        %v1946 = vpop.f32.mrb[0].mxu0
        %1947 = vmatprep.mubr.bf16.mxu0 0
        %1948 = vmatmul.mubr.bf16.gmra.mrb[0].mxu0 %v1751
        %v1949 = vpop.f32.mrb[0].mxu0
        %v1950 = vadd.f32 0.0, %v1949
        %v1951 = vpop.f32.mrb[0].mxu0
        %v1952 = vpop.f32.mrb[0].mxu0
        %v1953 = vadd.f32 0.0, %v1952
        %v1954 = vpop.f32.mrb[0].mxu0
        %1955 = vmatprep.mubr.bf16.mxu0 0
        %1956 = vmatmul.mubr.bf16.gmra.mrb[0].mxu0 %v1752
        %v1957 = vpop.f32.mrb[0].mxu0
        %v1958 = vadd.f32 0.0, %v1957
        %v1959 = vpop.f32.mrb[0].mxu0
        %v1960 = vpop.f32.mrb[0].mxu0
        %v1961 = vadd.f32 0.0, %v1960
        %v1962 = vpop.f32.mrb[0].mxu0
        %1963 = vmatprep.mubr.bf16.mxu0 0
        %1964 = vmatmul.mubr.bf16.gmra.mrb[0].mxu0 %v1753
        %v1965 = vpop.f32.mrb[0].mxu0
        %v1966 = vadd.f32 0.0, %v1965
        %v1967 = vpop.f32.mrb[0].mxu0
        %v1968 = vpop.f32.mrb[0].mxu0
        %v1969 = vadd.f32 0.0, %v1968
        %v1970 = vpop.f32.mrb[0].mxu0
        %1971 = vmatprep.mubr.bf16.mxu0 0
        %1972 = vmatmul.mubr.bf16.gmra.mrb[0].mxu0 %v1754
        %v1973 = vpop.f32.mrb[0].mxu0
        %v1974 = vadd.f32 0.0, %v1973
        %v1975 = vpop.f32.mrb[0].mxu0
        %v1976 = vpop.f32.mrb[0].mxu0
        %v1977 = vadd.f32 0.0, %v1976
        %v1978 = vpop.f32.mrb[0].mxu0
        %1979 = vdwg.mxu0
        %v1996 = vunpack.c.l.b16 %v1723
        %v1997 = vunpack.c.l.b16 %v1724
        %v1998 = vunpack.c.l.b16 %v1725
        %v1999 = vunpack.c.l.b16 %v1726
        %v2000 = vunpack.c.l.b16 %v1727
        %v2001 = vunpack.c.l.b16 %v1728
        %v2002 = vunpack.c.l.b16 %v1729
        %v2003 = vunpack.c.l.b16 %v1730
        %v2004 = vunpack.c.l.b16 %v1731
        %v2005 = vunpack.c.l.b16 %v1732
        %v2006 = vunpack.c.l.b16 %v1733
        %v2007 = vunpack.c.l.b16 %v1734
        %v2008 = vunpack.c.l.b16 %v1735
        %v2009 = vunpack.c.l.b16 %v1736
        %v2010 = vunpack.c.l.b16 %v1737
        %v2011 = vunpack.c.l.b16 %v1738
        %v2012 = vpack.c.b16 %v1997, %v1996
        %v2013 = vpack.c.b16 %v1999, %v1998
        %v2014 = vpack.c.b16 %v2001, %v2000
        %v2015 = vpack.c.b16 %v2003, %v2002
        %v2016 = vpack.c.b16 %v2005, %v2004
        %v2017 = vpack.c.b16 %v2007, %v2006
        %v2018 = vpack.c.b16 %v2009, %v2008
        %v2019 = vpack.c.b16 %v2011, %v2010
        %2028 = vmatprep.subr.bf16.mxu0 0
        %2029 = vmatpush1.bf16.msra.mxu0 %v2012
        %2030 = vmatprep.subr.bf16.mxu0 0
        %2031 = vmatpush1.bf16.msra.mxu0 %v2013
        %2032 = vmatprep.subr.bf16.mxu0 0
        %2033 = vmatpush1.bf16.msra.mxu0 %v2014
        %2034 = vmatprep.subr.bf16.mxu0 0
        %2035 = vmatpush1.bf16.msra.mxu0 %v2015
        %2036 = vmatprep.subr.bf16.mxu0 0
        %2037 = vmatpush1.bf16.msra.mxu0 %v2016
        %2038 = vmatprep.subr.bf16.mxu0 0
        %2039 = vmatpush1.bf16.msra.mxu0 %v2017
        %2040 = vmatprep.subr.bf16.mxu0 0
        %2041 = vmatpush1.bf16.msra.mxu0 %v2018
        %2042 = vmatprep.subr.bf16.mxu0 0
        %2043 = vmatpush1.bf16.msra.mxu0 %v2019
        %2044 = vmatprep.subr.bf16.mxu0 0
        %2045 = vmatpush1.bf16.msra.mxu0 0
        %2046 = vmatprep.subr.bf16.mxu0 0
        %2047 = vmatpush1.bf16.msra.mxu0 0
        %2048 = vmatprep.subr.bf16.mxu0 0
        %2049 = vmatpush1.bf16.msra.mxu0 0
        %2050 = vmatprep.subr.bf16.mxu0 0
        %2051 = vmatpush1.bf16.msra.mxu0 0
        %2052 = vmatprep.subr.bf16.mxu0 0
        %2053 = vmatpush1.bf16.msra.mxu0 0
        %2054 = vmatprep.subr.bf16.mxu0 0
        %2055 = vmatpush1.bf16.msra.mxu0 0
        %2056 = vmatprep.subr.bf16.mxu0 0
        %2057 = vmatpush1.bf16.msra.mxu0 0
        %2058 = vmatprep.subr.bf16.mxu0 0
        %2059 = vmatpush1.bf16.msra.mxu0 0
        %2060 = vmatprep.mubr.bf16.mxu0 0
        %2061 = vmatmul.mubr.bf16.gmra.mrb[0].mxu0 %v338
        %v2062 = vpop.f32.mrb[0].mxu0
        %v2063 = vadd.f32 %v1854, %v2062
        %v2064 = vpop.f32.mrb[0].mxu0
        %v2065 = vpop.f32.mrb[0].mxu0
        %v2066 = vadd.f32 %v1857, %v2065
        %v2067 = vpop.f32.mrb[0].mxu0
        %2068 = vmatprep.mubr.bf16.mxu0 0
        %2069 = vmatmul.mubr.bf16.gmra.mrb[0].mxu0 %v339
        %v2070 = vpop.f32.mrb[0].mxu0
        %v2071 = vadd.f32 %v1862, %v2070
        %v2072 = vpop.f32.mrb[0].mxu0
        %v2073 = vpop.f32.mrb[0].mxu0
        %v2074 = vadd.f32 %v1865, %v2073
        %v2075 = vpop.f32.mrb[0].mxu0
        %2076 = vmatprep.mubr.bf16.mxu0 0
        %2077 = vmatmul.mubr.bf16.gmra.mrb[0].mxu0 %v340
        %v2078 = vpop.f32.mrb[0].mxu0
        %v2079 = vadd.f32 %v1870, %v2078
        %v2080 = vpop.f32.mrb[0].mxu0
        %v2081 = vpop.f32.mrb[0].mxu0
        %v2082 = vadd.f32 %v1873, %v2081
        %v2083 = vpop.f32.mrb[0].mxu0
        %2084 = vmatprep.mubr.bf16.mxu0 0
        %2085 = vmatmul.mubr.bf16.gmra.mrb[0].mxu0 %v341
        %v2086 = vpop.f32.mrb[0].mxu0
        %v2087 = vadd.f32 %v1878, %v2086
        %v2088 = vpop.f32.mrb[0].mxu0
        %v2089 = vpop.f32.mrb[0].mxu0
        %v2090 = vadd.f32 %v1881, %v2089
        %v2091 = vpop.f32.mrb[0].mxu0
        %2092 = vmatprep.mubr.bf16.mxu0 0
        %2093 = vmatmul.mubr.bf16.gmra.mrb[0].mxu0 %v342
        %v2094 = vpop.f32.mrb[0].mxu0
        %v2095 = vadd.f32 %v1886, %v2094
        %v2096 = vpop.f32.mrb[0].mxu0
        %v2097 = vpop.f32.mrb[0].mxu0
        %v2098 = vadd.f32 %v1889, %v2097
        %v2099 = vpop.f32.mrb[0].mxu0
        %2100 = vmatprep.mubr.bf16.mxu0 0
        %2101 = vmatmul.mubr.bf16.gmra.mrb[0].mxu0 %v343
        %v2102 = vpop.f32.mrb[0].mxu0
        %v2103 = vadd.f32 %v1894, %v2102
        %v2104 = vpop.f32.mrb[0].mxu0
        %v2105 = vpop.f32.mrb[0].mxu0
        %v2106 = vadd.f32 %v1897, %v2105
        %v2107 = vpop.f32.mrb[0].mxu0
        %2108 = vmatprep.mubr.bf16.mxu0 0
        %2109 = vmatmul.mubr.bf16.gmra.mrb[0].mxu0 %v344
        %v2110 = vpop.f32.mrb[0].mxu0
        %v2111 = vadd.f32 %v1902, %v2110
        %v2112 = vpop.f32.mrb[0].mxu0
        %v2113 = vpop.f32.mrb[0].mxu0
        %v2114 = vadd.f32 %v1905, %v2113
        %v2115 = vpop.f32.mrb[0].mxu0
        %2116 = vmatprep.mubr.bf16.mxu0 0
        %2117 = vmatmul.mubr.bf16.gmra.mrb[0].mxu0 %v345
        %v2118 = vpop.f32.mrb[0].mxu0
        %v2119 = vadd.f32 %v1910, %v2118
        %v2120 = vpop.f32.mrb[0].mxu0
        %v2121 = vpop.f32.mrb[0].mxu0
        %v2122 = vadd.f32 %v1913, %v2121
        %v2123 = vpop.f32.mrb[0].mxu0
        %2124 = vmatprep.mubr.bf16.mxu0 0
        %2125 = vmatmul.mubr.bf16.gmra.mrb[0].mxu0 %v346
        %v2126 = vpop.f32.mrb[0].mxu0
        %v2127 = vadd.f32 %v1918, %v2126
        %v2128 = vpop.f32.mrb[0].mxu0
        %v2129 = vpop.f32.mrb[0].mxu0
        %v2130 = vadd.f32 %v1921, %v2129
        %v2131 = vpop.f32.mrb[0].mxu0
        %2132 = vmatprep.mubr.bf16.mxu0 0
        %2133 = vmatmul.mubr.bf16.gmra.mrb[0].mxu0 %v347
        %v2134 = vpop.f32.mrb[0].mxu0
        %v2135 = vadd.f32 %v1926, %v2134
        %v2136 = vpop.f32.mrb[0].mxu0
        %v2137 = vpop.f32.mrb[0].mxu0
        %v2138 = vadd.f32 %v1929, %v2137
        %v2139 = vpop.f32.mrb[0].mxu0
        %2140 = vmatprep.mubr.bf16.mxu0 0
        %2141 = vmatmul.mubr.bf16.gmra.mrb[0].mxu0 %v348
        %v2142 = vpop.f32.mrb[0].mxu0
        %v2143 = vadd.f32 %v1934, %v2142
        %v2144 = vpop.f32.mrb[0].mxu0
        %v2145 = vpop.f32.mrb[0].mxu0
        %v2146 = vadd.f32 %v1937, %v2145
        %v2147 = vpop.f32.mrb[0].mxu0
        %2148 = vmatprep.mubr.bf16.mxu0 0
        %2149 = vmatmul.mubr.bf16.gmra.mrb[0].mxu0 %v349
        %v2150 = vpop.f32.mrb[0].mxu0
        %v2151 = vadd.f32 %v1942, %v2150
        %v2152 = vpop.f32.mrb[0].mxu0
        %v2153 = vpop.f32.mrb[0].mxu0
        %v2154 = vadd.f32 %v1945, %v2153
        %v2155 = vpop.f32.mrb[0].mxu0
        %2156 = vmatprep.mubr.bf16.mxu0 0
        %2157 = vmatmul.mubr.bf16.gmra.mrb[0].mxu0 %v350
        %v2158 = vpop.f32.mrb[0].mxu0
        %v2159 = vadd.f32 %v1950, %v2158
        %v2160 = vpop.f32.mrb[0].mxu0
        %v2161 = vpop.f32.mrb[0].mxu0
        %v2162 = vadd.f32 %v1953, %v2161
        %v2163 = vpop.f32.mrb[0].mxu0
        %2164 = vmatprep.mubr.bf16.mxu0 0
        %2165 = vmatmul.mubr.bf16.gmra.mrb[0].mxu0 %v351
        %v2166 = vpop.f32.mrb[0].mxu0
        %v2167 = vadd.f32 %v1958, %v2166
        %v2168 = vpop.f32.mrb[0].mxu0
        %v2169 = vpop.f32.mrb[0].mxu0
        %v2170 = vadd.f32 %v1961, %v2169
        %v2171 = vpop.f32.mrb[0].mxu0
        %2172 = vmatprep.mubr.bf16.mxu0 0
        %2173 = vmatmul.mubr.bf16.gmra.mrb[0].mxu0 %v352
        %v2174 = vpop.f32.mrb[0].mxu0
        %v2175 = vadd.f32 %v1966, %v2174
        %v2176 = vpop.f32.mrb[0].mxu0
        %v2177 = vpop.f32.mrb[0].mxu0
        %v2178 = vadd.f32 %v1969, %v2177
        %v2179 = vpop.f32.mrb[0].mxu0
        %2180 = vmatprep.mubr.bf16.mxu0 0
        %2181 = vmatmul.mubr.bf16.gmra.mrb[0].mxu0 %v353
        %v2182 = vpop.f32.mrb[0].mxu0
        %v2183 = vadd.f32 %v1974, %v2182
        %v2184 = vpop.f32.mrb[0].mxu0
        %v2185 = vpop.f32.mrb[0].mxu0
        %v2186 = vadd.f32 %v1977, %v2185
        %v2187 = vpop.f32.mrb[0].mxu0
        %2188 = vdwg.mxu0
        %v2189 = vld [vmem:[#allocation7 + $0x5] sm:$0x1]
        %v2190 = vlaneseq
        %v2191 = vshrl.u32 %v2190, 7
        %v2192 = vsub.s32 0, %v2191
        %v2193 = vrot.slane %v2189, %v2192
        %v2194 = vadd.f32 %v2063, %v2193
        %v2195 = vadd.f32 %v2066, %v2193
        %v2196 = vadd.f32 %v2071, %v2193
        %v2197 = vadd.f32 %v2074, %v2193
        %v2198 = vadd.f32 %v2079, %v2193
        %v2199 = vadd.f32 %v2082, %v2193
        %v2200 = vadd.f32 %v2087, %v2193
        %v2201 = vadd.f32 %v2090, %v2193
        %v2202 = vadd.f32 %v2095, %v2193
        %v2203 = vadd.f32 %v2098, %v2193
        %v2204 = vadd.f32 %v2103, %v2193
        %v2205 = vadd.f32 %v2106, %v2193
        %v2206 = vadd.f32 %v2111, %v2193
        %v2207 = vadd.f32 %v2114, %v2193
        %v2208 = vadd.f32 %v2119, %v2193
        %v2209 = vadd.f32 %v2122, %v2193
        %v2210 = vadd.f32 %v2127, %v2193
        %v2211 = vadd.f32 %v2130, %v2193
        %v2212 = vadd.f32 %v2135, %v2193
        %v2213 = vadd.f32 %v2138, %v2193
        %v2214 = vadd.f32 %v2143, %v2193
        %v2215 = vadd.f32 %v2146, %v2193
        %v2216 = vadd.f32 %v2151, %v2193
        %v2217 = vadd.f32 %v2154, %v2193
        %v2218 = vadd.f32 %v2159, %v2193
        %v2219 = vadd.f32 %v2162, %v2193
        %v2220 = vadd.f32 %v2167, %v2193
        %v2221 = vadd.f32 %v2170, %v2193
        %v2222 = vadd.f32 %v2175, %v2193
        %v2223 = vadd.f32 %v2178, %v2193
        %v2224 = vadd.f32 %v2183, %v2193
        %v2225 = vadd.f32 %v2186, %v2193
        %v2226 = vmax.f32 %v2194, 0.0
        %v2227 = vmax.f32 %v2195, 0.0
        %v2228 = vmax.f32 %v2196, 0.0
        %v2229 = vmax.f32 %v2197, 0.0
        %v2230 = vmax.f32 %v2198, 0.0
        %v2231 = vmax.f32 %v2199, 0.0
        %v2232 = vmax.f32 %v2200, 0.0
        %v2233 = vmax.f32 %v2201, 0.0
        %v2234 = vmax.f32 %v2202, 0.0
        %v2235 = vmax.f32 %v2203, 0.0
        %v2236 = vmax.f32 %v2204, 0.0
        %v2237 = vmax.f32 %v2205, 0.0
        %v2238 = vmax.f32 %v2206, 0.0
        %v2239 = vmax.f32 %v2207, 0.0
        %v2240 = vmax.f32 %v2208, 0.0
        %v2241 = vmax.f32 %v2209, 0.0
        %v2242 = vmax.f32 %v2210, 0.0
        %v2243 = vmax.f32 %v2211, 0.0
        %v2244 = vmax.f32 %v2212, 0.0
        %v2245 = vmax.f32 %v2213, 0.0
        %v2246 = vmax.f32 %v2214, 0.0
        %v2247 = vmax.f32 %v2215, 0.0
        %v2248 = vmax.f32 %v2216, 0.0
        %v2249 = vmax.f32 %v2217, 0.0
        %v2250 = vmax.f32 %v2218, 0.0
        %v2251 = vmax.f32 %v2219, 0.0
        %v2252 = vmax.f32 %v2220, 0.0
        %v2253 = vmax.f32 %v2221, 0.0
        %v2254 = vmax.f32 %v2222, 0.0
        %v2255 = vmax.f32 %v2223, 0.0
        %v2256 = vmax.f32 %v2224, 0.0
        %v2257 = vmax.f32 %v2225, 0.0
        %v2258 = vpack.c.bf16 %v2227, %v2226
        %v2259 = vpack.c.bf16 %v2229, %v2228
        %v2260 = vpack.c.bf16 %v2231, %v2230
        %v2261 = vpack.c.bf16 %v2233, %v2232
        %v2262 = vpack.c.bf16 %v2235, %v2234
        %v2263 = vpack.c.bf16 %v2237, %v2236
        %v2264 = vpack.c.bf16 %v2239, %v2238
        %v2265 = vpack.c.bf16 %v2241, %v2240
        %v2266 = vpack.c.bf16 %v2243, %v2242
        %v2267 = vpack.c.bf16 %v2245, %v2244
        %v2268 = vpack.c.bf16 %v2247, %v2246
        %v2269 = vpack.c.bf16 %v2249, %v2248
        %v2270 = vpack.c.bf16 %v2251, %v2250
        %v2271 = vpack.c.bf16 %v2253, %v2252
        %v2272 = vpack.c.bf16 %v2255, %v2254
        %v2273 = vpack.c.bf16 %v2257, %v2256
        %v2274 = vld [vmem:[#allocation5 + $0x1c0] sm:$0xf]
        %v2275 = vld [vmem:[#allocation5 + $0x1c4] sm:$0xf]
        %v2276 = vld [vmem:[#allocation5 + $0x1c8] sm:$0xf]
        %v2277 = vld [vmem:[#allocation5 + $0x1cc] sm:$0xf]
        %v2278 = vld [vmem:[#allocation5 + $0x1d0] sm:$0xf]
        %v2279 = vld [vmem:[#allocation5 + $0x1d4] sm:$0xf]
        %v2280 = vld [vmem:[#allocation5 + $0x1d8] sm:$0xf]
        %v2281 = vld [vmem:[#allocation5 + $0x1dc] sm:$0xf]
        %v2282 = vld [vmem:[#allocation5 + $0x1e0] sm:$0xf]
        %v2283 = vld [vmem:[#allocation5 + $0x1e4] sm:$0xf]
        %v2284 = vld [vmem:[#allocation5 + $0x1e8] sm:$0xf]
        %v2285 = vld [vmem:[#allocation5 + $0x1ec] sm:$0xf]
        %v2286 = vld [vmem:[#allocation5 + $0x1f0] sm:$0xf]
        %v2287 = vld [vmem:[#allocation5 + $0x1f4] sm:$0xf]
        %v2288 = vld [vmem:[#allocation5 + $0x1f8] sm:$0xf]
        %v2289 = vld [vmem:[#allocation5 + $0x1fc] sm:$0xf]
        %v2290 = vld [vmem:[#allocation7 + $0x6] sm:$0x1]
        %v2291 = vlaneseq
        %v2292 = vshrl.u32 %v2291, 7
        %v2293 = vsub.s32 0, %v2292
        %v2294 = vrot.slane %v2290, %v2293
        %v2311 = vunpack.c.l.b16 %v2274
        %v2312 = vunpack.c.l.b16 %v2275
        %v2313 = vunpack.c.l.b16 %v2276
        %v2314 = vunpack.c.l.b16 %v2277
        %v2315 = vunpack.c.l.b16 %v2278
        %v2316 = vunpack.c.l.b16 %v2279
        %v2317 = vunpack.c.l.b16 %v2280
        %v2318 = vunpack.c.l.b16 %v2281
        %v2319 = vunpack.c.l.b16 %v2282
        %v2320 = vunpack.c.l.b16 %v2283
        %v2321 = vunpack.c.l.b16 %v2284
        %v2322 = vunpack.c.l.b16 %v2285
        %v2323 = vunpack.c.l.b16 %v2286
        %v2324 = vunpack.c.l.b16 %v2287
        %v2325 = vunpack.c.l.b16 %v2288
        %v2326 = vunpack.c.l.b16 %v2289
        %v2327 = vpack.c.b16 %v2312, %v2311
        %v2328 = vpack.c.b16 %v2314, %v2313
        %v2329 = vpack.c.b16 %v2316, %v2315
        %v2330 = vpack.c.b16 %v2318, %v2317
        %v2331 = vpack.c.b16 %v2320, %v2319
        %v2332 = vpack.c.b16 %v2322, %v2321
        %v2333 = vpack.c.b16 %v2324, %v2323
        %v2334 = vpack.c.b16 %v2326, %v2325
        %2343 = vmatprep.subr.bf16.mxu0 0
        %2344 = vmatpush1.bf16.msra.mxu0 %v2327
        %2345 = vmatprep.subr.bf16.mxu0 0
        %2346 = vmatpush1.bf16.msra.mxu0 %v2328
        %2347 = vmatprep.subr.bf16.mxu0 0
        %2348 = vmatpush1.bf16.msra.mxu0 %v2329
        %2349 = vmatprep.subr.bf16.mxu0 0
        %2350 = vmatpush1.bf16.msra.mxu0 %v2330
        %2351 = vmatprep.subr.bf16.mxu0 0
        %2352 = vmatpush1.bf16.msra.mxu0 %v2331
        %2353 = vmatprep.subr.bf16.mxu0 0
        %2354 = vmatpush1.bf16.msra.mxu0 %v2332
        %2355 = vmatprep.subr.bf16.mxu0 0
        %2356 = vmatpush1.bf16.msra.mxu0 %v2333
        %2357 = vmatprep.subr.bf16.mxu0 0
        %2358 = vmatpush1.bf16.msra.mxu0 %v2334
        %2359 = vmatprep.subr.bf16.mxu0 0
        %2360 = vmatpush1.bf16.msra.mxu0 0
        %2361 = vmatprep.subr.bf16.mxu0 0
        %2362 = vmatpush1.bf16.msra.mxu0 0
        %2363 = vmatprep.subr.bf16.mxu0 0
        %2364 = vmatpush1.bf16.msra.mxu0 0
        %2365 = vmatprep.subr.bf16.mxu0 0
        %2366 = vmatpush1.bf16.msra.mxu0 0
        %2367 = vmatprep.subr.bf16.mxu0 0
        %2368 = vmatpush1.bf16.msra.mxu0 0
        %2369 = vmatprep.subr.bf16.mxu0 0
        %2370 = vmatpush1.bf16.msra.mxu0 0
        %2371 = vmatprep.subr.bf16.mxu0 0
        %2372 = vmatpush1.bf16.msra.mxu0 0
        %2373 = vmatprep.subr.bf16.mxu0 0
        %2374 = vmatpush1.bf16.msra.mxu0 0
        %2375 = vmatprep.mubr.bf16.mxu0 0
        %2376 = vmatmul.mubr.bf16.gmra.mrb[0].mxu0 %v2258
        %v2377 = vpop.f32.mrb[0].mxu0
        %v2378 = vadd.f32 %v2294, %v2377
        %v2379 = vpop.f32.mrb[0].mxu0
        %v2380 = vpop.f32.mrb[0].mxu0
        %v2381 = vadd.f32 %v2294, %v2380
        %v2382 = vpop.f32.mrb[0].mxu0
        %2383 = vmatprep.mubr.bf16.mxu0 0
        %2384 = vmatmul.mubr.bf16.gmra.mrb[0].mxu0 %v2259
        %v2385 = vpop.f32.mrb[0].mxu0
        %v2386 = vadd.f32 %v2294, %v2385
        %v2387 = vpop.f32.mrb[0].mxu0
        %v2388 = vpop.f32.mrb[0].mxu0
        %v2389 = vadd.f32 %v2294, %v2388
        %v2390 = vpop.f32.mrb[0].mxu0
        %2391 = vmatprep.mubr.bf16.mxu0 0
        %2392 = vmatmul.mubr.bf16.gmra.mrb[0].mxu0 %v2260
        %v2393 = vpop.f32.mrb[0].mxu0
        %v2394 = vadd.f32 %v2294, %v2393
        %v2395 = vpop.f32.mrb[0].mxu0
        %v2396 = vpop.f32.mrb[0].mxu0
        %v2397 = vadd.f32 %v2294, %v2396
        %v2398 = vpop.f32.mrb[0].mxu0
        %2399 = vmatprep.mubr.bf16.mxu0 0
        %2400 = vmatmul.mubr.bf16.gmra.mrb[0].mxu0 %v2261
        %v2401 = vpop.f32.mrb[0].mxu0
        %v2402 = vadd.f32 %v2294, %v2401
        %v2403 = vpop.f32.mrb[0].mxu0
        %v2404 = vpop.f32.mrb[0].mxu0
        %v2405 = vadd.f32 %v2294, %v2404
        %v2406 = vpop.f32.mrb[0].mxu0
        %2407 = vmatprep.mubr.bf16.mxu0 0
        %2408 = vmatmul.mubr.bf16.gmra.mrb[0].mxu0 %v2262
        %v2409 = vpop.f32.mrb[0].mxu0
        %v2410 = vadd.f32 %v2294, %v2409
        %v2411 = vpop.f32.mrb[0].mxu0
        %v2412 = vpop.f32.mrb[0].mxu0
        %v2413 = vadd.f32 %v2294, %v2412
        %v2414 = vpop.f32.mrb[0].mxu0
        %2415 = vmatprep.mubr.bf16.mxu0 0
        %2416 = vmatmul.mubr.bf16.gmra.mrb[0].mxu0 %v2263
        %v2417 = vpop.f32.mrb[0].mxu0
        %v2418 = vadd.f32 %v2294, %v2417
        %v2419 = vpop.f32.mrb[0].mxu0
        %v2420 = vpop.f32.mrb[0].mxu0
        %v2421 = vadd.f32 %v2294, %v2420
        %v2422 = vpop.f32.mrb[0].mxu0
        %2423 = vmatprep.mubr.bf16.mxu0 0
        %2424 = vmatmul.mubr.bf16.gmra.mrb[0].mxu0 %v2264
        %v2425 = vpop.f32.mrb[0].mxu0
        %v2426 = vadd.f32 %v2294, %v2425
        %v2427 = vpop.f32.mrb[0].mxu0
        %v2428 = vpop.f32.mrb[0].mxu0
        %v2429 = vadd.f32 %v2294, %v2428
        %v2430 = vpop.f32.mrb[0].mxu0
        %2431 = vmatprep.mubr.bf16.mxu0 0
        %2432 = vmatmul.mubr.bf16.gmra.mrb[0].mxu0 %v2265
        %v2433 = vpop.f32.mrb[0].mxu0
        %v2434 = vadd.f32 %v2294, %v2433
        %v2435 = vpop.f32.mrb[0].mxu0
        %v2436 = vpop.f32.mrb[0].mxu0
        %v2437 = vadd.f32 %v2294, %v2436
        %v2438 = vpop.f32.mrb[0].mxu0
        %2439 = vmatprep.mubr.bf16.mxu0 0
        %2440 = vmatmul.mubr.bf16.gmra.mrb[0].mxu0 %v2266
        %v2441 = vpop.f32.mrb[0].mxu0
        %v2442 = vadd.f32 %v2294, %v2441
        %v2443 = vpop.f32.mrb[0].mxu0
        %v2444 = vpop.f32.mrb[0].mxu0
        %v2445 = vadd.f32 %v2294, %v2444
        %v2446 = vpop.f32.mrb[0].mxu0
        %2447 = vmatprep.mubr.bf16.mxu0 0
        %2448 = vmatmul.mubr.bf16.gmra.mrb[0].mxu0 %v2267
        %v2449 = vpop.f32.mrb[0].mxu0
        %v2450 = vadd.f32 %v2294, %v2449
        %v2451 = vpop.f32.mrb[0].mxu0
        %v2452 = vpop.f32.mrb[0].mxu0
        %v2453 = vadd.f32 %v2294, %v2452
        %v2454 = vpop.f32.mrb[0].mxu0
        %2455 = vmatprep.mubr.bf16.mxu0 0
        %2456 = vmatmul.mubr.bf16.gmra.mrb[0].mxu0 %v2268
        %v2457 = vpop.f32.mrb[0].mxu0
        %v2458 = vadd.f32 %v2294, %v2457
        %v2459 = vpop.f32.mrb[0].mxu0
        %v2460 = vpop.f32.mrb[0].mxu0
        %v2461 = vadd.f32 %v2294, %v2460
        %v2462 = vpop.f32.mrb[0].mxu0
        %2463 = vmatprep.mubr.bf16.mxu0 0
        %2464 = vmatmul.mubr.bf16.gmra.mrb[0].mxu0 %v2269
        %v2465 = vpop.f32.mrb[0].mxu0
        %v2466 = vadd.f32 %v2294, %v2465
        %v2467 = vpop.f32.mrb[0].mxu0
        %v2468 = vpop.f32.mrb[0].mxu0
        %v2469 = vadd.f32 %v2294, %v2468
        %v2470 = vpop.f32.mrb[0].mxu0
        %2471 = vmatprep.mubr.bf16.mxu0 0
        %2472 = vmatmul.mubr.bf16.gmra.mrb[0].mxu0 %v2270
        %v2473 = vpop.f32.mrb[0].mxu0
        %v2474 = vadd.f32 %v2294, %v2473
        %v2475 = vpop.f32.mrb[0].mxu0
        %v2476 = vpop.f32.mrb[0].mxu0
        %v2477 = vadd.f32 %v2294, %v2476
        %v2478 = vpop.f32.mrb[0].mxu0
        %2479 = vmatprep.mubr.bf16.mxu0 0
        %2480 = vmatmul.mubr.bf16.gmra.mrb[0].mxu0 %v2271
        %v2481 = vpop.f32.mrb[0].mxu0
        %v2482 = vadd.f32 %v2294, %v2481
        %v2483 = vpop.f32.mrb[0].mxu0
        %v2484 = vpop.f32.mrb[0].mxu0
        %v2485 = vadd.f32 %v2294, %v2484
        %v2486 = vpop.f32.mrb[0].mxu0
        %2487 = vmatprep.mubr.bf16.mxu0 0
        %2488 = vmatmul.mubr.bf16.gmra.mrb[0].mxu0 %v2272
        %v2489 = vpop.f32.mrb[0].mxu0
        %v2490 = vadd.f32 %v2294, %v2489
        %v2491 = vpop.f32.mrb[0].mxu0
        %v2492 = vpop.f32.mrb[0].mxu0
        %v2493 = vadd.f32 %v2294, %v2492
        %v2494 = vpop.f32.mrb[0].mxu0
        %2495 = vmatprep.mubr.bf16.mxu0 0
        %2496 = vmatmul.mubr.bf16.gmra.mrb[0].mxu0 %v2273
        %v2497 = vpop.f32.mrb[0].mxu0
        %v2498 = vadd.f32 %v2294, %v2497
        %v2499 = vpop.f32.mrb[0].mxu0
        %v2500 = vpop.f32.mrb[0].mxu0
        %v2501 = vadd.f32 %v2294, %v2500
        %v2502 = vpop.f32.mrb[0].mxu0
        %2503 = vdwg.mxu0
        %v2504 = vmax.f32 %v2378, 0.0
        %v2505 = vmax.f32 %v2381, 0.0
        %v2506 = vmax.f32 %v2386, 0.0
        %v2507 = vmax.f32 %v2389, 0.0
        %v2508 = vmax.f32 %v2394, 0.0
        %v2509 = vmax.f32 %v2397, 0.0
        %v2510 = vmax.f32 %v2402, 0.0
        %v2511 = vmax.f32 %v2405, 0.0
        %v2512 = vmax.f32 %v2410, 0.0
        %v2513 = vmax.f32 %v2413, 0.0
        %v2514 = vmax.f32 %v2418, 0.0
        %v2515 = vmax.f32 %v2421, 0.0
        %v2516 = vmax.f32 %v2426, 0.0
        %v2517 = vmax.f32 %v2429, 0.0
        %v2518 = vmax.f32 %v2434, 0.0
        %v2519 = vmax.f32 %v2437, 0.0
        %v2520 = vmax.f32 %v2442, 0.0
        %v2521 = vmax.f32 %v2445, 0.0
        %v2522 = vmax.f32 %v2450, 0.0
        %v2523 = vmax.f32 %v2453, 0.0
        %v2524 = vmax.f32 %v2458, 0.0
        %v2525 = vmax.f32 %v2461, 0.0
        %v2526 = vmax.f32 %v2466, 0.0
        %v2527 = vmax.f32 %v2469, 0.0
        %v2528 = vmax.f32 %v2474, 0.0
        %v2529 = vmax.f32 %v2477, 0.0
        %v2530 = vmax.f32 %v2482, 0.0
        %v2531 = vmax.f32 %v2485, 0.0
        %v2532 = vmax.f32 %v2490, 0.0
        %v2533 = vmax.f32 %v2493, 0.0
        %v2534 = vmax.f32 %v2498, 0.0
        %v2535 = vmax.f32 %v2501, 0.0
        %v2536 = vpack.c.bf16 %v2505, %v2504
        %v2537 = vpack.c.bf16 %v2507, %v2506
        %v2538 = vpack.c.bf16 %v2509, %v2508
        %v2539 = vpack.c.bf16 %v2511, %v2510
        %v2540 = vpack.c.bf16 %v2513, %v2512
        %v2541 = vpack.c.bf16 %v2515, %v2514
        %v2542 = vpack.c.bf16 %v2517, %v2516
        %v2543 = vpack.c.bf16 %v2519, %v2518
        %v2544 = vpack.c.bf16 %v2521, %v2520
        %v2545 = vpack.c.bf16 %v2523, %v2522
        %v2546 = vpack.c.bf16 %v2525, %v2524
        %v2547 = vpack.c.bf16 %v2527, %v2526
        %v2548 = vpack.c.bf16 %v2529, %v2528
        %v2549 = vpack.c.bf16 %v2531, %v2530
        %v2550 = vpack.c.bf16 %v2533, %v2532
        %v2551 = vpack.c.bf16 %v2535, %v2534
        %v2552 = vld [vmem:[#allocation5 + $0x200] sm:$0xf]
        %v2553 = vld [vmem:[#allocation5 + $0x204] sm:$0xf]
        %v2554 = vld [vmem:[#allocation5 + $0x208] sm:$0xf]
        %v2555 = vld [vmem:[#allocation5 + $0x20c] sm:$0xf]
        %v2556 = vld [vmem:[#allocation5 + $0x210] sm:$0xf]
        %v2557 = vld [vmem:[#allocation5 + $0x214] sm:$0xf]
        %v2558 = vld [vmem:[#allocation5 + $0x218] sm:$0xf]
        %v2559 = vld [vmem:[#allocation5 + $0x21c] sm:$0xf]
        %v2560 = vld [vmem:[#allocation5 + $0x220] sm:$0xf]
        %v2561 = vld [vmem:[#allocation5 + $0x224] sm:$0xf]
        %v2562 = vld [vmem:[#allocation5 + $0x228] sm:$0xf]
        %v2563 = vld [vmem:[#allocation5 + $0x22c] sm:$0xf]
        %v2564 = vld [vmem:[#allocation5 + $0x230] sm:$0xf]
        %v2565 = vld [vmem:[#allocation5 + $0x234] sm:$0xf]
        %v2566 = vld [vmem:[#allocation5 + $0x238] sm:$0xf]
        %v2567 = vld [vmem:[#allocation5 + $0x23c] sm:$0xf]
        %v2568 = vld [vmem:[#allocation7 + $0x7] sm:$0x1]
        %v2569 = vlaneseq
        %v2570 = vshrl.u32 %v2569, 7
        %v2571 = vsub.s32 0, %v2570
        %v2572 = vrot.slane %v2568, %v2571
        %v2589 = vunpack.c.l.b16 %v2552
        %v2590 = vunpack.c.l.b16 %v2553
        %v2591 = vunpack.c.l.b16 %v2554
        %v2592 = vunpack.c.l.b16 %v2555
        %v2593 = vunpack.c.l.b16 %v2556
        %v2594 = vunpack.c.l.b16 %v2557
        %v2595 = vunpack.c.l.b16 %v2558
        %v2596 = vunpack.c.l.b16 %v2559
        %v2597 = vunpack.c.l.b16 %v2560
        %v2598 = vunpack.c.l.b16 %v2561
        %v2599 = vunpack.c.l.b16 %v2562
        %v2600 = vunpack.c.l.b16 %v2563
        %v2601 = vunpack.c.l.b16 %v2564
        %v2602 = vunpack.c.l.b16 %v2565
        %v2603 = vunpack.c.l.b16 %v2566
        %v2604 = vunpack.c.l.b16 %v2567
        %v2605 = vpack.c.b16 %v2590, %v2589
        %v2606 = vpack.c.b16 %v2592, %v2591
        %v2607 = vpack.c.b16 %v2594, %v2593
        %v2608 = vpack.c.b16 %v2596, %v2595
        %v2609 = vpack.c.b16 %v2598, %v2597
        %v2610 = vpack.c.b16 %v2600, %v2599
        %v2611 = vpack.c.b16 %v2602, %v2601
        %v2612 = vpack.c.b16 %v2604, %v2603
        %2621 = vmatprep.subr.bf16.mxu0 0
        %2622 = vmatpush1.bf16.msra.mxu0 %v2605
        %2623 = vmatprep.subr.bf16.mxu0 0
        %2624 = vmatpush1.bf16.msra.mxu0 %v2606
        %2625 = vmatprep.subr.bf16.mxu0 0
        %2626 = vmatpush1.bf16.msra.mxu0 %v2607
        %2627 = vmatprep.subr.bf16.mxu0 0
        %2628 = vmatpush1.bf16.msra.mxu0 %v2608
        %2629 = vmatprep.subr.bf16.mxu0 0
        %2630 = vmatpush1.bf16.msra.mxu0 %v2609
        %2631 = vmatprep.subr.bf16.mxu0 0
        %2632 = vmatpush1.bf16.msra.mxu0 %v2610
        %2633 = vmatprep.subr.bf16.mxu0 0
        %2634 = vmatpush1.bf16.msra.mxu0 %v2611
        %2635 = vmatprep.subr.bf16.mxu0 0
        %2636 = vmatpush1.bf16.msra.mxu0 %v2612
        %2637 = vmatprep.subr.bf16.mxu0 0
        %2638 = vmatpush1.bf16.msra.mxu0 0
        %2639 = vmatprep.subr.bf16.mxu0 0
        %2640 = vmatpush1.bf16.msra.mxu0 0
        %2641 = vmatprep.subr.bf16.mxu0 0
        %2642 = vmatpush1.bf16.msra.mxu0 0
        %2643 = vmatprep.subr.bf16.mxu0 0
        %2644 = vmatpush1.bf16.msra.mxu0 0
        %2645 = vmatprep.subr.bf16.mxu0 0
        %2646 = vmatpush1.bf16.msra.mxu0 0
        %2647 = vmatprep.subr.bf16.mxu0 0
        %2648 = vmatpush1.bf16.msra.mxu0 0
        %2649 = vmatprep.subr.bf16.mxu0 0
        %2650 = vmatpush1.bf16.msra.mxu0 0
        %2651 = vmatprep.subr.bf16.mxu0 0
        %2652 = vmatpush1.bf16.msra.mxu0 0
        %2653 = vmatprep.mubr.bf16.mxu0 0
        %2654 = vmatmul.mubr.bf16.gmra.mrb[0].mxu0 %v2536
        %v2655 = vpop.f32.mrb[0].mxu0
        %v2656 = vadd.f32 %v2572, %v2655
        %v2657 = vpop.f32.mrb[0].mxu0
        %v2658 = vpop.f32.mrb[0].mxu0
        %v2659 = vadd.f32 %v2572, %v2658
        %v2660 = vpop.f32.mrb[0].mxu0
        %2661 = vmatprep.mubr.bf16.mxu0 0
        %2662 = vmatmul.mubr.bf16.gmra.mrb[0].mxu0 %v2537
        %v2663 = vpop.f32.mrb[0].mxu0
        %v2664 = vadd.f32 %v2572, %v2663
        %v2665 = vpop.f32.mrb[0].mxu0
        %v2666 = vpop.f32.mrb[0].mxu0
        %v2667 = vadd.f32 %v2572, %v2666
        %v2668 = vpop.f32.mrb[0].mxu0
        %2669 = vmatprep.mubr.bf16.mxu0 0
        %2670 = vmatmul.mubr.bf16.gmra.mrb[0].mxu0 %v2538
        %v2671 = vpop.f32.mrb[0].mxu0
        %v2672 = vadd.f32 %v2572, %v2671
        %v2673 = vpop.f32.mrb[0].mxu0
        %v2674 = vpop.f32.mrb[0].mxu0
        %v2675 = vadd.f32 %v2572, %v2674
        %v2676 = vpop.f32.mrb[0].mxu0
        %2677 = vmatprep.mubr.bf16.mxu0 0
        %2678 = vmatmul.mubr.bf16.gmra.mrb[0].mxu0 %v2539
        %v2679 = vpop.f32.mrb[0].mxu0
        %v2680 = vadd.f32 %v2572, %v2679
        %v2681 = vpop.f32.mrb[0].mxu0
        %v2682 = vpop.f32.mrb[0].mxu0
        %v2683 = vadd.f32 %v2572, %v2682
        %v2684 = vpop.f32.mrb[0].mxu0
        %2685 = vmatprep.mubr.bf16.mxu0 0
        %2686 = vmatmul.mubr.bf16.gmra.mrb[0].mxu0 %v2540
        %v2687 = vpop.f32.mrb[0].mxu0
        %v2688 = vadd.f32 %v2572, %v2687
        %v2689 = vpop.f32.mrb[0].mxu0
        %v2690 = vpop.f32.mrb[0].mxu0
        %v2691 = vadd.f32 %v2572, %v2690
        %v2692 = vpop.f32.mrb[0].mxu0
        %2693 = vmatprep.mubr.bf16.mxu0 0
        %2694 = vmatmul.mubr.bf16.gmra.mrb[0].mxu0 %v2541
        %v2695 = vpop.f32.mrb[0].mxu0
        %v2696 = vadd.f32 %v2572, %v2695
        %v2697 = vpop.f32.mrb[0].mxu0
        %v2698 = vpop.f32.mrb[0].mxu0
        %v2699 = vadd.f32 %v2572, %v2698
        %v2700 = vpop.f32.mrb[0].mxu0
        %2701 = vmatprep.mubr.bf16.mxu0 0
        %2702 = vmatmul.mubr.bf16.gmra.mrb[0].mxu0 %v2542
        %v2703 = vpop.f32.mrb[0].mxu0
        %v2704 = vadd.f32 %v2572, %v2703
        %v2705 = vpop.f32.mrb[0].mxu0
        %v2706 = vpop.f32.mrb[0].mxu0
        %v2707 = vadd.f32 %v2572, %v2706
        %v2708 = vpop.f32.mrb[0].mxu0
        %2709 = vmatprep.mubr.bf16.mxu0 0
        %2710 = vmatmul.mubr.bf16.gmra.mrb[0].mxu0 %v2543
        %v2711 = vpop.f32.mrb[0].mxu0
        %v2712 = vadd.f32 %v2572, %v2711
        %v2713 = vpop.f32.mrb[0].mxu0
        %v2714 = vpop.f32.mrb[0].mxu0
        %v2715 = vadd.f32 %v2572, %v2714
        %v2716 = vpop.f32.mrb[0].mxu0
        %2717 = vmatprep.mubr.bf16.mxu0 0
        %2718 = vmatmul.mubr.bf16.gmra.mrb[0].mxu0 %v2544
        %v2719 = vpop.f32.mrb[0].mxu0
        %v2720 = vadd.f32 %v2572, %v2719
        %v2721 = vpop.f32.mrb[0].mxu0
        %v2722 = vpop.f32.mrb[0].mxu0
        %v2723 = vadd.f32 %v2572, %v2722
        %v2724 = vpop.f32.mrb[0].mxu0
        %2725 = vmatprep.mubr.bf16.mxu0 0
        %2726 = vmatmul.mubr.bf16.gmra.mrb[0].mxu0 %v2545
        %v2727 = vpop.f32.mrb[0].mxu0
        %v2728 = vadd.f32 %v2572, %v2727
        %v2729 = vpop.f32.mrb[0].mxu0
        %v2730 = vpop.f32.mrb[0].mxu0
        %v2731 = vadd.f32 %v2572, %v2730
        %v2732 = vpop.f32.mrb[0].mxu0
        %2733 = vmatprep.mubr.bf16.mxu0 0
        %2734 = vmatmul.mubr.bf16.gmra.mrb[0].mxu0 %v2546
        %v2735 = vpop.f32.mrb[0].mxu0
        %v2736 = vadd.f32 %v2572, %v2735
        %v2737 = vpop.f32.mrb[0].mxu0
        %v2738 = vpop.f32.mrb[0].mxu0
        %v2739 = vadd.f32 %v2572, %v2738
        %v2740 = vpop.f32.mrb[0].mxu0
        %2741 = vmatprep.mubr.bf16.mxu0 0
        %2742 = vmatmul.mubr.bf16.gmra.mrb[0].mxu0 %v2547
        %v2743 = vpop.f32.mrb[0].mxu0
        %v2744 = vadd.f32 %v2572, %v2743
        %v2745 = vpop.f32.mrb[0].mxu0
        %v2746 = vpop.f32.mrb[0].mxu0
        %v2747 = vadd.f32 %v2572, %v2746
        %v2748 = vpop.f32.mrb[0].mxu0
        %2749 = vmatprep.mubr.bf16.mxu0 0
        %2750 = vmatmul.mubr.bf16.gmra.mrb[0].mxu0 %v2548
        %v2751 = vpop.f32.mrb[0].mxu0
        %v2752 = vadd.f32 %v2572, %v2751
        %v2753 = vpop.f32.mrb[0].mxu0
        %v2754 = vpop.f32.mrb[0].mxu0
        %v2755 = vadd.f32 %v2572, %v2754
        %v2756 = vpop.f32.mrb[0].mxu0
        %2757 = vmatprep.mubr.bf16.mxu0 0
        %2758 = vmatmul.mubr.bf16.gmra.mrb[0].mxu0 %v2549
        %v2759 = vpop.f32.mrb[0].mxu0
        %v2760 = vadd.f32 %v2572, %v2759
        %v2761 = vpop.f32.mrb[0].mxu0
        %v2762 = vpop.f32.mrb[0].mxu0
        %v2763 = vadd.f32 %v2572, %v2762
        %v2764 = vpop.f32.mrb[0].mxu0
        %2765 = vmatprep.mubr.bf16.mxu0 0
        %2766 = vmatmul.mubr.bf16.gmra.mrb[0].mxu0 %v2550
        %v2767 = vpop.f32.mrb[0].mxu0
        %v2768 = vadd.f32 %v2572, %v2767
        %v2769 = vpop.f32.mrb[0].mxu0
        %v2770 = vpop.f32.mrb[0].mxu0
        %v2771 = vadd.f32 %v2572, %v2770
        %v2772 = vpop.f32.mrb[0].mxu0
        %2773 = vmatprep.mubr.bf16.mxu0 0
        %2774 = vmatmul.mubr.bf16.gmra.mrb[0].mxu0 %v2551
        %v2775 = vpop.f32.mrb[0].mxu0
        %v2776 = vadd.f32 %v2572, %v2775
        %v2777 = vpop.f32.mrb[0].mxu0
        %v2778 = vpop.f32.mrb[0].mxu0
        %v2779 = vadd.f32 %v2572, %v2778
        %v2780 = vpop.f32.mrb[0].mxu0
        %2781 = vdwg.mxu0
        %v2782 = vmax.f32 %v2656, 0.0
        %v2783 = vmax.f32 %v2659, 0.0
        %v2784 = vmax.f32 %v2664, 0.0
        %v2785 = vmax.f32 %v2667, 0.0
        %v2786 = vmax.f32 %v2672, 0.0
        %v2787 = vmax.f32 %v2675, 0.0
        %v2788 = vmax.f32 %v2680, 0.0
        %v2789 = vmax.f32 %v2683, 0.0
        %v2790 = vmax.f32 %v2688, 0.0
        %v2791 = vmax.f32 %v2691, 0.0
        %v2792 = vmax.f32 %v2696, 0.0
        %v2793 = vmax.f32 %v2699, 0.0
        %v2794 = vmax.f32 %v2704, 0.0
        %v2795 = vmax.f32 %v2707, 0.0
        %v2796 = vmax.f32 %v2712, 0.0
        %v2797 = vmax.f32 %v2715, 0.0
        %v2798 = vmax.f32 %v2720, 0.0
        %v2799 = vmax.f32 %v2723, 0.0
        %v2800 = vmax.f32 %v2728, 0.0
        %v2801 = vmax.f32 %v2731, 0.0
        %v2802 = vmax.f32 %v2736, 0.0
        %v2803 = vmax.f32 %v2739, 0.0
        %v2804 = vmax.f32 %v2744, 0.0
        %v2805 = vmax.f32 %v2747, 0.0
        %v2806 = vmax.f32 %v2752, 0.0
        %v2807 = vmax.f32 %v2755, 0.0
        %v2808 = vmax.f32 %v2760, 0.0
        %v2809 = vmax.f32 %v2763, 0.0
        %v2810 = vmax.f32 %v2768, 0.0
        %v2811 = vmax.f32 %v2771, 0.0
        %v2812 = vmax.f32 %v2776, 0.0
        %v2813 = vmax.f32 %v2779, 0.0
        %v2814 = vpack.c.bf16 %v2783, %v2782
        %v2815 = vpack.c.bf16 %v2785, %v2784
        %v2816 = vpack.c.bf16 %v2787, %v2786
        %v2817 = vpack.c.bf16 %v2789, %v2788
        %v2818 = vpack.c.bf16 %v2791, %v2790
        %v2819 = vpack.c.bf16 %v2793, %v2792
        %v2820 = vpack.c.bf16 %v2795, %v2794
        %v2821 = vpack.c.bf16 %v2797, %v2796
        %v2822 = vpack.c.bf16 %v2799, %v2798
        %v2823 = vpack.c.bf16 %v2801, %v2800
        %v2824 = vpack.c.bf16 %v2803, %v2802
        %v2825 = vpack.c.bf16 %v2805, %v2804
        %v2826 = vpack.c.bf16 %v2807, %v2806
        %v2827 = vpack.c.bf16 %v2809, %v2808
        %v2828 = vpack.c.bf16 %v2811, %v2810
        %v2829 = vpack.c.bf16 %v2813, %v2812
        %v2830 = vld [vmem:[#allocation5 + $0x240] sm:$0xf]
        %v2831 = vld [vmem:[#allocation5 + $0x244] sm:$0xf]
        %v2832 = vld [vmem:[#allocation5 + $0x248] sm:$0xf]
        %v2833 = vld [vmem:[#allocation5 + $0x24c] sm:$0xf]
        %v2834 = vld [vmem:[#allocation5 + $0x250] sm:$0xf]
        %v2835 = vld [vmem:[#allocation5 + $0x254] sm:$0xf]
        %v2836 = vld [vmem:[#allocation5 + $0x258] sm:$0xf]
        %v2837 = vld [vmem:[#allocation5 + $0x25c] sm:$0xf]
        %v2838 = vld [vmem:[#allocation5 + $0x260] sm:$0xf]
        %v2839 = vld [vmem:[#allocation5 + $0x264] sm:$0xf]
        %v2840 = vld [vmem:[#allocation5 + $0x268] sm:$0xf]
        %v2841 = vld [vmem:[#allocation5 + $0x26c] sm:$0xf]
        %v2842 = vld [vmem:[#allocation5 + $0x270] sm:$0xf]
        %v2843 = vld [vmem:[#allocation5 + $0x274] sm:$0xf]
        %v2844 = vld [vmem:[#allocation5 + $0x278] sm:$0xf]
        %v2845 = vld [vmem:[#allocation5 + $0x27c] sm:$0xf]
        %v2846 = vld [vmem:[#allocation7 + $0x8] sm:$0x1]
        %v2847 = vlaneseq
        %v2848 = vshrl.u32 %v2847, 7
        %v2849 = vsub.s32 0, %v2848
        %v2850 = vrot.slane %v2846, %v2849
        %v2867 = vunpack.c.l.b16 %v2830
        %v2868 = vunpack.c.l.b16 %v2831
        %v2869 = vunpack.c.l.b16 %v2832
        %v2870 = vunpack.c.l.b16 %v2833
        %v2871 = vunpack.c.l.b16 %v2834
        %v2872 = vunpack.c.l.b16 %v2835
        %v2873 = vunpack.c.l.b16 %v2836
        %v2874 = vunpack.c.l.b16 %v2837
        %v2875 = vunpack.c.l.b16 %v2838
        %v2876 = vunpack.c.l.b16 %v2839
        %v2877 = vunpack.c.l.b16 %v2840
        %v2878 = vunpack.c.l.b16 %v2841
        %v2879 = vunpack.c.l.b16 %v2842
        %v2880 = vunpack.c.l.b16 %v2843
        %v2881 = vunpack.c.l.b16 %v2844
        %v2882 = vunpack.c.l.b16 %v2845
        %v2883 = vpack.c.b16 %v2868, %v2867
        %v2884 = vpack.c.b16 %v2870, %v2869
        %v2885 = vpack.c.b16 %v2872, %v2871
        %v2886 = vpack.c.b16 %v2874, %v2873
        %v2887 = vpack.c.b16 %v2876, %v2875
        %v2888 = vpack.c.b16 %v2878, %v2877
        %v2889 = vpack.c.b16 %v2880, %v2879
        %v2890 = vpack.c.b16 %v2882, %v2881
        %2899 = vmatprep.subr.bf16.mxu0 0
        %2900 = vmatpush1.bf16.msra.mxu0 %v2883
        %2901 = vmatprep.subr.bf16.mxu0 0
        %2902 = vmatpush1.bf16.msra.mxu0 %v2884
        %2903 = vmatprep.subr.bf16.mxu0 0
        %2904 = vmatpush1.bf16.msra.mxu0 %v2885
        %2905 = vmatprep.subr.bf16.mxu0 0
        %2906 = vmatpush1.bf16.msra.mxu0 %v2886
        %2907 = vmatprep.subr.bf16.mxu0 0
        %2908 = vmatpush1.bf16.msra.mxu0 %v2887
        %2909 = vmatprep.subr.bf16.mxu0 0
        %2910 = vmatpush1.bf16.msra.mxu0 %v2888
        %2911 = vmatprep.subr.bf16.mxu0 0
        %2912 = vmatpush1.bf16.msra.mxu0 %v2889
        %2913 = vmatprep.subr.bf16.mxu0 0
        %2914 = vmatpush1.bf16.msra.mxu0 %v2890
        %2915 = vmatprep.subr.bf16.mxu0 0
        %2916 = vmatpush1.bf16.msra.mxu0 0
        %2917 = vmatprep.subr.bf16.mxu0 0
        %2918 = vmatpush1.bf16.msra.mxu0 0
        %2919 = vmatprep.subr.bf16.mxu0 0
        %2920 = vmatpush1.bf16.msra.mxu0 0
        %2921 = vmatprep.subr.bf16.mxu0 0
        %2922 = vmatpush1.bf16.msra.mxu0 0
        %2923 = vmatprep.subr.bf16.mxu0 0
        %2924 = vmatpush1.bf16.msra.mxu0 0
        %2925 = vmatprep.subr.bf16.mxu0 0
        %2926 = vmatpush1.bf16.msra.mxu0 0
        %2927 = vmatprep.subr.bf16.mxu0 0
        %2928 = vmatpush1.bf16.msra.mxu0 0
        %2929 = vmatprep.subr.bf16.mxu0 0
        %2930 = vmatpush1.bf16.msra.mxu0 0
        %2931 = vmatprep.mubr.bf16.mxu0 0
        %2932 = vmatmul.mubr.bf16.gmra.mrb[0].mxu0 %v2814
        %v2933 = vpop.f32.mrb[0].mxu0
        %v2934 = vadd.f32 %v2850, %v2933
        %v2935 = vpop.f32.mrb[0].mxu0
        %v2936 = vpop.f32.mrb[0].mxu0
        %v2937 = vadd.f32 %v2850, %v2936
        %v2938 = vpop.f32.mrb[0].mxu0
        %2939 = vmatprep.mubr.bf16.mxu0 0
        %2940 = vmatmul.mubr.bf16.gmra.mrb[0].mxu0 %v2815
        %v2941 = vpop.f32.mrb[0].mxu0
        %v2942 = vadd.f32 %v2850, %v2941
        %v2943 = vpop.f32.mrb[0].mxu0
        %v2944 = vpop.f32.mrb[0].mxu0
        %v2945 = vadd.f32 %v2850, %v2944
        %v2946 = vpop.f32.mrb[0].mxu0
        %2947 = vmatprep.mubr.bf16.mxu0 0
        %2948 = vmatmul.mubr.bf16.gmra.mrb[0].mxu0 %v2816
        %v2949 = vpop.f32.mrb[0].mxu0
        %v2950 = vadd.f32 %v2850, %v2949
        %v2951 = vpop.f32.mrb[0].mxu0
        %v2952 = vpop.f32.mrb[0].mxu0
        %v2953 = vadd.f32 %v2850, %v2952
        %v2954 = vpop.f32.mrb[0].mxu0
        %2955 = vmatprep.mubr.bf16.mxu0 0
        %2956 = vmatmul.mubr.bf16.gmra.mrb[0].mxu0 %v2817
        %v2957 = vpop.f32.mrb[0].mxu0
        %v2958 = vadd.f32 %v2850, %v2957
        %v2959 = vpop.f32.mrb[0].mxu0
        %v2960 = vpop.f32.mrb[0].mxu0
        %v2961 = vadd.f32 %v2850, %v2960
        %v2962 = vpop.f32.mrb[0].mxu0
        %2963 = vmatprep.mubr.bf16.mxu0 0
        %2964 = vmatmul.mubr.bf16.gmra.mrb[0].mxu0 %v2818
        %v2965 = vpop.f32.mrb[0].mxu0
        %v2966 = vadd.f32 %v2850, %v2965
        %v2967 = vpop.f32.mrb[0].mxu0
        %v2968 = vpop.f32.mrb[0].mxu0
        %v2969 = vadd.f32 %v2850, %v2968
        %v2970 = vpop.f32.mrb[0].mxu0
        %2971 = vmatprep.mubr.bf16.mxu0 0
        %2972 = vmatmul.mubr.bf16.gmra.mrb[0].mxu0 %v2819
        %v2973 = vpop.f32.mrb[0].mxu0
        %v2974 = vadd.f32 %v2850, %v2973
        %v2975 = vpop.f32.mrb[0].mxu0
        %v2976 = vpop.f32.mrb[0].mxu0
        %v2977 = vadd.f32 %v2850, %v2976
        %v2978 = vpop.f32.mrb[0].mxu0
        %2979 = vmatprep.mubr.bf16.mxu0 0
        %2980 = vmatmul.mubr.bf16.gmra.mrb[0].mxu0 %v2820
        %v2981 = vpop.f32.mrb[0].mxu0
        %v2982 = vadd.f32 %v2850, %v2981
        %v2983 = vpop.f32.mrb[0].mxu0
        %v2984 = vpop.f32.mrb[0].mxu0
        %v2985 = vadd.f32 %v2850, %v2984
        %v2986 = vpop.f32.mrb[0].mxu0
        %2987 = vmatprep.mubr.bf16.mxu0 0
        %2988 = vmatmul.mubr.bf16.gmra.mrb[0].mxu0 %v2821
        %v2989 = vpop.f32.mrb[0].mxu0
        %v2990 = vadd.f32 %v2850, %v2989
        %v2991 = vpop.f32.mrb[0].mxu0
        %v2992 = vpop.f32.mrb[0].mxu0
        %v2993 = vadd.f32 %v2850, %v2992
        %v2994 = vpop.f32.mrb[0].mxu0
        %2995 = vmatprep.mubr.bf16.mxu0 0
        %2996 = vmatmul.mubr.bf16.gmra.mrb[0].mxu0 %v2822
        %v2997 = vpop.f32.mrb[0].mxu0
        %v2998 = vadd.f32 %v2850, %v2997
        %v2999 = vpop.f32.mrb[0].mxu0
        %v3000 = vpop.f32.mrb[0].mxu0
        %v3001 = vadd.f32 %v2850, %v3000
        %v3002 = vpop.f32.mrb[0].mxu0
        %3003 = vmatprep.mubr.bf16.mxu0 0
        %3004 = vmatmul.mubr.bf16.gmra.mrb[0].mxu0 %v2823
        %v3005 = vpop.f32.mrb[0].mxu0
        %v3006 = vadd.f32 %v2850, %v3005
        %v3007 = vpop.f32.mrb[0].mxu0
        %v3008 = vpop.f32.mrb[0].mxu0
        %v3009 = vadd.f32 %v2850, %v3008
        %v3010 = vpop.f32.mrb[0].mxu0
        %3011 = vmatprep.mubr.bf16.mxu0 0
        %3012 = vmatmul.mubr.bf16.gmra.mrb[0].mxu0 %v2824
        %v3013 = vpop.f32.mrb[0].mxu0
        %v3014 = vadd.f32 %v2850, %v3013
        %v3015 = vpop.f32.mrb[0].mxu0
        %v3016 = vpop.f32.mrb[0].mxu0
        %v3017 = vadd.f32 %v2850, %v3016
        %v3018 = vpop.f32.mrb[0].mxu0
        %3019 = vmatprep.mubr.bf16.mxu0 0
        %3020 = vmatmul.mubr.bf16.gmra.mrb[0].mxu0 %v2825
        %v3021 = vpop.f32.mrb[0].mxu0
        %v3022 = vadd.f32 %v2850, %v3021
        %v3023 = vpop.f32.mrb[0].mxu0
        %v3024 = vpop.f32.mrb[0].mxu0
        %v3025 = vadd.f32 %v2850, %v3024
        %v3026 = vpop.f32.mrb[0].mxu0
        %3027 = vmatprep.mubr.bf16.mxu0 0
        %3028 = vmatmul.mubr.bf16.gmra.mrb[0].mxu0 %v2826
        %v3029 = vpop.f32.mrb[0].mxu0
        %v3030 = vadd.f32 %v2850, %v3029
        %v3031 = vpop.f32.mrb[0].mxu0
        %v3032 = vpop.f32.mrb[0].mxu0
        %v3033 = vadd.f32 %v2850, %v3032
        %v3034 = vpop.f32.mrb[0].mxu0
        %3035 = vmatprep.mubr.bf16.mxu0 0
        %3036 = vmatmul.mubr.bf16.gmra.mrb[0].mxu0 %v2827
        %v3037 = vpop.f32.mrb[0].mxu0
        %v3038 = vadd.f32 %v2850, %v3037
        %v3039 = vpop.f32.mrb[0].mxu0
        %v3040 = vpop.f32.mrb[0].mxu0
        %v3041 = vadd.f32 %v2850, %v3040
        %v3042 = vpop.f32.mrb[0].mxu0
        %3043 = vmatprep.mubr.bf16.mxu0 0
        %3044 = vmatmul.mubr.bf16.gmra.mrb[0].mxu0 %v2828
        %v3045 = vpop.f32.mrb[0].mxu0
        %v3046 = vadd.f32 %v2850, %v3045
        %v3047 = vpop.f32.mrb[0].mxu0
        %v3048 = vpop.f32.mrb[0].mxu0
        %v3049 = vadd.f32 %v2850, %v3048
        %v3050 = vpop.f32.mrb[0].mxu0
        %3051 = vmatprep.mubr.bf16.mxu0 0
        %3052 = vmatmul.mubr.bf16.gmra.mrb[0].mxu0 %v2829
        %v3053 = vpop.f32.mrb[0].mxu0
        %v3054 = vadd.f32 %v2850, %v3053
        %v3055 = vpop.f32.mrb[0].mxu0
        %v3056 = vpop.f32.mrb[0].mxu0
        %v3057 = vadd.f32 %v2850, %v3056
        %v3058 = vpop.f32.mrb[0].mxu0
        %3059 = vdwg.mxu0
        %v3060 = vpack.c.bf16 %v2937, %v2934
        %v3061 = vpack.c.bf16 %v2945, %v2942
        %v3062 = vpack.c.bf16 %v2953, %v2950
        %v3063 = vpack.c.bf16 %v2961, %v2958
        %v3064 = vpack.c.bf16 %v2969, %v2966
        %v3065 = vpack.c.bf16 %v2977, %v2974
        %v3066 = vpack.c.bf16 %v2985, %v2982
        %v3067 = vpack.c.bf16 %v2993, %v2990
        %v3068 = vpack.c.bf16 %v3001, %v2998
        %v3069 = vpack.c.bf16 %v3009, %v3006
        %v3070 = vpack.c.bf16 %v3017, %v3014
        %v3071 = vpack.c.bf16 %v3025, %v3022
        %v3072 = vpack.c.bf16 %v3033, %v3030
        %v3073 = vpack.c.bf16 %v3041, %v3038
        %v3074 = vpack.c.bf16 %v3049, %v3046
        %v3075 = vpack.c.bf16 %v3057, %v3054
        %v3076 = vld [vmem:[#allocation5 + $0x280] sm:$0xf]
        %v3077 = vld [vmem:[#allocation5 + $0x284] sm:$0xf]
        %v3078 = vld [vmem:[#allocation5 + $0x288] sm:$0xf]
        %v3079 = vld [vmem:[#allocation5 + $0x28c] sm:$0xf]
        %v3080 = vld [vmem:[#allocation5 + $0x290] sm:$0xf]
        %v3081 = vld [vmem:[#allocation5 + $0x294] sm:$0xf]
        %v3082 = vld [vmem:[#allocation5 + $0x298] sm:$0xf]
        %v3083 = vld [vmem:[#allocation5 + $0x29c] sm:$0xf]
        %v3084 = vld [vmem:[#allocation5 + $0x2a0] sm:$0xf]
        %v3085 = vld [vmem:[#allocation5 + $0x2a4] sm:$0xf]
        %v3086 = vld [vmem:[#allocation5 + $0x2a8] sm:$0xf]
        %v3087 = vld [vmem:[#allocation5 + $0x2ac] sm:$0xf]
        %v3088 = vld [vmem:[#allocation5 + $0x2b0] sm:$0xf]
        %v3089 = vld [vmem:[#allocation5 + $0x2b4] sm:$0xf]
        %v3090 = vld [vmem:[#allocation5 + $0x2b8] sm:$0xf]
        %v3091 = vld [vmem:[#allocation5 + $0x2bc] sm:$0xf]
        %v3092 = vld [vmem:[#allocation5 + $0x2c0] sm:$0xf]
        %v3093 = vld [vmem:[#allocation5 + $0x2c4] sm:$0xf]
        %v3094 = vld [vmem:[#allocation5 + $0x2c8] sm:$0xf]
        %v3095 = vld [vmem:[#allocation5 + $0x2cc] sm:$0xf]
        %v3096 = vld [vmem:[#allocation5 + $0x2d0] sm:$0xf]
        %v3097 = vld [vmem:[#allocation5 + $0x2d4] sm:$0xf]
        %v3098 = vld [vmem:[#allocation5 + $0x2d8] sm:$0xf]
        %v3099 = vld [vmem:[#allocation5 + $0x2dc] sm:$0xf]
        %v3100 = vld [vmem:[#allocation5 + $0x2e0] sm:$0xf]
        %v3101 = vld [vmem:[#allocation5 + $0x2e4] sm:$0xf]
        %v3102 = vld [vmem:[#allocation5 + $0x2e8] sm:$0xf]
        %v3103 = vld [vmem:[#allocation5 + $0x2ec] sm:$0xf]
        %v3104 = vld [vmem:[#allocation5 + $0x2f0] sm:$0xf]
        %v3105 = vld [vmem:[#allocation5 + $0x2f4] sm:$0xf]
        %v3106 = vld [vmem:[#allocation5 + $0x2f8] sm:$0xf]
        %v3107 = vld [vmem:[#allocation5 + $0x2fc] sm:$0xf]
        %v3124 = vunpack.c.l.b16 %v3092
        %v3125 = vunpack.c.l.b16 %v3093
        %v3126 = vunpack.c.l.b16 %v3094
        %v3127 = vunpack.c.l.b16 %v3095
        %v3128 = vunpack.c.l.b16 %v3096
        %v3129 = vunpack.c.l.b16 %v3097
        %v3130 = vunpack.c.l.b16 %v3098
        %v3131 = vunpack.c.l.b16 %v3099
        %v3132 = vunpack.c.l.b16 %v3100
        %v3133 = vunpack.c.l.b16 %v3101
        %v3134 = vunpack.c.l.b16 %v3102
        %v3135 = vunpack.c.l.b16 %v3103
        %v3136 = vunpack.c.l.b16 %v3104
        %v3137 = vunpack.c.l.b16 %v3105
        %v3138 = vunpack.c.l.b16 %v3106
        %v3139 = vunpack.c.l.b16 %v3107
        %v3140 = vpack.c.b16 %v3125, %v3124
        %v3141 = vpack.c.b16 %v3127, %v3126
        %v3142 = vpack.c.b16 %v3129, %v3128
        %v3143 = vpack.c.b16 %v3131, %v3130
        %v3144 = vpack.c.b16 %v3133, %v3132
        %v3145 = vpack.c.b16 %v3135, %v3134
        %v3146 = vpack.c.b16 %v3137, %v3136
        %v3147 = vpack.c.b16 %v3139, %v3138
        %3156 = vmatprep.subr.bf16.mxu0 0
        %3157 = vmatpush1.bf16.msra.mxu0 %v3140
        %3158 = vmatprep.subr.bf16.mxu0 0
        %3159 = vmatpush1.bf16.msra.mxu0 %v3141
        %3160 = vmatprep.subr.bf16.mxu0 0
        %3161 = vmatpush1.bf16.msra.mxu0 %v3142
        %3162 = vmatprep.subr.bf16.mxu0 0
        %3163 = vmatpush1.bf16.msra.mxu0 %v3143
        %3164 = vmatprep.subr.bf16.mxu0 0
        %3165 = vmatpush1.bf16.msra.mxu0 %v3144
        %3166 = vmatprep.subr.bf16.mxu0 0
        %3167 = vmatpush1.bf16.msra.mxu0 %v3145
        %3168 = vmatprep.subr.bf16.mxu0 0
        %3169 = vmatpush1.bf16.msra.mxu0 %v3146
        %3170 = vmatprep.subr.bf16.mxu0 0
        %3171 = vmatpush1.bf16.msra.mxu0 %v3147
        %3172 = vmatprep.subr.bf16.mxu0 0
        %3173 = vmatpush1.bf16.msra.mxu0 0
        %3174 = vmatprep.subr.bf16.mxu0 0
        %3175 = vmatpush1.bf16.msra.mxu0 0
        %3176 = vmatprep.subr.bf16.mxu0 0
        %3177 = vmatpush1.bf16.msra.mxu0 0
        %3178 = vmatprep.subr.bf16.mxu0 0
        %3179 = vmatpush1.bf16.msra.mxu0 0
        %3180 = vmatprep.subr.bf16.mxu0 0
        %3181 = vmatpush1.bf16.msra.mxu0 0
        %3182 = vmatprep.subr.bf16.mxu0 0
        %3183 = vmatpush1.bf16.msra.mxu0 0
        %3184 = vmatprep.subr.bf16.mxu0 0
        %3185 = vmatpush1.bf16.msra.mxu0 0
        %3186 = vmatprep.subr.bf16.mxu0 0
        %3187 = vmatpush1.bf16.msra.mxu0 0
        %3188 = vmatprep.mubr.bf16.mxu0 0
        %3189 = vmatmul.mubr.bf16.gmra.mrb[0].mxu0 %v338
        %v3190 = vpop.f32.mrb[0].mxu0
        %v3191 = vadd.f32 0.0, %v3190
        %v3192 = vpop.f32.mrb[0].mxu0
        %v3193 = vpop.f32.mrb[0].mxu0
        %v3194 = vadd.f32 0.0, %v3193
        %v3195 = vpop.f32.mrb[0].mxu0
        %3196 = vmatprep.mubr.bf16.mxu0 0
        %3197 = vmatmul.mubr.bf16.gmra.mrb[0].mxu0 %v339
        %v3198 = vpop.f32.mrb[0].mxu0
        %v3199 = vadd.f32 0.0, %v3198
        %v3200 = vpop.f32.mrb[0].mxu0
        %v3201 = vpop.f32.mrb[0].mxu0
        %v3202 = vadd.f32 0.0, %v3201
        %v3203 = vpop.f32.mrb[0].mxu0
        %3204 = vmatprep.mubr.bf16.mxu0 0
        %3205 = vmatmul.mubr.bf16.gmra.mrb[0].mxu0 %v340
        %v3206 = vpop.f32.mrb[0].mxu0
        %v3207 = vadd.f32 0.0, %v3206
        %v3208 = vpop.f32.mrb[0].mxu0
        %v3209 = vpop.f32.mrb[0].mxu0
        %v3210 = vadd.f32 0.0, %v3209
        %v3211 = vpop.f32.mrb[0].mxu0
        %3212 = vmatprep.mubr.bf16.mxu0 0
        %3213 = vmatmul.mubr.bf16.gmra.mrb[0].mxu0 %v341
        %v3214 = vpop.f32.mrb[0].mxu0
        %v3215 = vadd.f32 0.0, %v3214
        %v3216 = vpop.f32.mrb[0].mxu0
        %v3217 = vpop.f32.mrb[0].mxu0
        %v3218 = vadd.f32 0.0, %v3217
        %v3219 = vpop.f32.mrb[0].mxu0
        %3220 = vmatprep.mubr.bf16.mxu0 0
        %3221 = vmatmul.mubr.bf16.gmra.mrb[0].mxu0 %v342
        %v3222 = vpop.f32.mrb[0].mxu0
        %v3223 = vadd.f32 0.0, %v3222
        %v3224 = vpop.f32.mrb[0].mxu0
        %v3225 = vpop.f32.mrb[0].mxu0
        %v3226 = vadd.f32 0.0, %v3225
        %v3227 = vpop.f32.mrb[0].mxu0
        %3228 = vmatprep.mubr.bf16.mxu0 0
        %3229 = vmatmul.mubr.bf16.gmra.mrb[0].mxu0 %v343
        %v3230 = vpop.f32.mrb[0].mxu0
        %v3231 = vadd.f32 0.0, %v3230
        %v3232 = vpop.f32.mrb[0].mxu0
        %v3233 = vpop.f32.mrb[0].mxu0
        %v3234 = vadd.f32 0.0, %v3233
        %v3235 = vpop.f32.mrb[0].mxu0
        %3236 = vmatprep.mubr.bf16.mxu0 0
        %3237 = vmatmul.mubr.bf16.gmra.mrb[0].mxu0 %v344
        %v3238 = vpop.f32.mrb[0].mxu0
        %v3239 = vadd.f32 0.0, %v3238
        %v3240 = vpop.f32.mrb[0].mxu0
        %v3241 = vpop.f32.mrb[0].mxu0
        %v3242 = vadd.f32 0.0, %v3241
        %v3243 = vpop.f32.mrb[0].mxu0
        %3244 = vmatprep.mubr.bf16.mxu0 0
        %3245 = vmatmul.mubr.bf16.gmra.mrb[0].mxu0 %v345
        %v3246 = vpop.f32.mrb[0].mxu0
        %v3247 = vadd.f32 0.0, %v3246
        %v3248 = vpop.f32.mrb[0].mxu0
        %v3249 = vpop.f32.mrb[0].mxu0
        %v3250 = vadd.f32 0.0, %v3249
        %v3251 = vpop.f32.mrb[0].mxu0
        %3252 = vmatprep.mubr.bf16.mxu0 0
        %3253 = vmatmul.mubr.bf16.gmra.mrb[0].mxu0 %v346
        %v3254 = vpop.f32.mrb[0].mxu0
        %v3255 = vadd.f32 0.0, %v3254
        %v3256 = vpop.f32.mrb[0].mxu0
        %v3257 = vpop.f32.mrb[0].mxu0
        %v3258 = vadd.f32 0.0, %v3257
        %v3259 = vpop.f32.mrb[0].mxu0
        %3260 = vmatprep.mubr.bf16.mxu0 0
        %3261 = vmatmul.mubr.bf16.gmra.mrb[0].mxu0 %v347
        %v3262 = vpop.f32.mrb[0].mxu0
        %v3263 = vadd.f32 0.0, %v3262
        %v3264 = vpop.f32.mrb[0].mxu0
        %v3265 = vpop.f32.mrb[0].mxu0
        %v3266 = vadd.f32 0.0, %v3265
        %v3267 = vpop.f32.mrb[0].mxu0
        %3268 = vmatprep.mubr.bf16.mxu0 0
        %3269 = vmatmul.mubr.bf16.gmra.mrb[0].mxu0 %v348
        %v3270 = vpop.f32.mrb[0].mxu0
        %v3271 = vadd.f32 0.0, %v3270
        %v3272 = vpop.f32.mrb[0].mxu0
        %v3273 = vpop.f32.mrb[0].mxu0
        %v3274 = vadd.f32 0.0, %v3273
        %v3275 = vpop.f32.mrb[0].mxu0
        %3276 = vmatprep.mubr.bf16.mxu0 0
        %3277 = vmatmul.mubr.bf16.gmra.mrb[0].mxu0 %v349
        %v3278 = vpop.f32.mrb[0].mxu0
        %v3279 = vadd.f32 0.0, %v3278
        %v3280 = vpop.f32.mrb[0].mxu0
        %v3281 = vpop.f32.mrb[0].mxu0
        %v3282 = vadd.f32 0.0, %v3281
        %v3283 = vpop.f32.mrb[0].mxu0
        %3284 = vmatprep.mubr.bf16.mxu0 0
        %3285 = vmatmul.mubr.bf16.gmra.mrb[0].mxu0 %v350
        %v3286 = vpop.f32.mrb[0].mxu0
        %v3287 = vadd.f32 0.0, %v3286
        %v3288 = vpop.f32.mrb[0].mxu0
        %v3289 = vpop.f32.mrb[0].mxu0
        %v3290 = vadd.f32 0.0, %v3289
        %v3291 = vpop.f32.mrb[0].mxu0
        %3292 = vmatprep.mubr.bf16.mxu0 0
        %3293 = vmatmul.mubr.bf16.gmra.mrb[0].mxu0 %v351
        %v3294 = vpop.f32.mrb[0].mxu0
        %v3295 = vadd.f32 0.0, %v3294
        %v3296 = vpop.f32.mrb[0].mxu0
        %v3297 = vpop.f32.mrb[0].mxu0
        %v3298 = vadd.f32 0.0, %v3297
        %v3299 = vpop.f32.mrb[0].mxu0
        %3300 = vmatprep.mubr.bf16.mxu0 0
        %3301 = vmatmul.mubr.bf16.gmra.mrb[0].mxu0 %v352
        %v3302 = vpop.f32.mrb[0].mxu0
        %v3303 = vadd.f32 0.0, %v3302
        %v3304 = vpop.f32.mrb[0].mxu0
        %v3305 = vpop.f32.mrb[0].mxu0
        %v3306 = vadd.f32 0.0, %v3305
        %v3307 = vpop.f32.mrb[0].mxu0
        %3308 = vmatprep.mubr.bf16.mxu0 0
        %3309 = vmatmul.mubr.bf16.gmra.mrb[0].mxu0 %v353
        %v3310 = vpop.f32.mrb[0].mxu0
        %v3311 = vadd.f32 0.0, %v3310
        %v3312 = vpop.f32.mrb[0].mxu0
        %v3313 = vpop.f32.mrb[0].mxu0
        %v3314 = vadd.f32 0.0, %v3313
        %v3315 = vpop.f32.mrb[0].mxu0
        %3316 = vdwg.mxu0
        %v3333 = vunpack.c.l.b16 %v3076
        %v3334 = vunpack.c.l.b16 %v3077
        %v3335 = vunpack.c.l.b16 %v3078
        %v3336 = vunpack.c.l.b16 %v3079
        %v3337 = vunpack.c.l.b16 %v3080
        %v3338 = vunpack.c.l.b16 %v3081
        %v3339 = vunpack.c.l.b16 %v3082
        %v3340 = vunpack.c.l.b16 %v3083
        %v3341 = vunpack.c.l.b16 %v3084
        %v3342 = vunpack.c.l.b16 %v3085
        %v3343 = vunpack.c.l.b16 %v3086
        %v3344 = vunpack.c.l.b16 %v3087
        %v3345 = vunpack.c.l.b16 %v3088
        %v3346 = vunpack.c.l.b16 %v3089
        %v3347 = vunpack.c.l.b16 %v3090
        %v3348 = vunpack.c.l.b16 %v3091
        %v3349 = vpack.c.b16 %v3334, %v3333
        %v3350 = vpack.c.b16 %v3336, %v3335
        %v3351 = vpack.c.b16 %v3338, %v3337
        %v3352 = vpack.c.b16 %v3340, %v3339
        %v3353 = vpack.c.b16 %v3342, %v3341
        %v3354 = vpack.c.b16 %v3344, %v3343
        %v3355 = vpack.c.b16 %v3346, %v3345
        %v3356 = vpack.c.b16 %v3348, %v3347
        %3365 = vmatprep.subr.bf16.mxu0 0
        %3366 = vmatpush1.bf16.msra.mxu0 %v3349
        %3367 = vmatprep.subr.bf16.mxu0 0
        %3368 = vmatpush1.bf16.msra.mxu0 %v3350
        %3369 = vmatprep.subr.bf16.mxu0 0
        %3370 = vmatpush1.bf16.msra.mxu0 %v3351
        %3371 = vmatprep.subr.bf16.mxu0 0
        %3372 = vmatpush1.bf16.msra.mxu0 %v3352
        %3373 = vmatprep.subr.bf16.mxu0 0
        %3374 = vmatpush1.bf16.msra.mxu0 %v3353
        %3375 = vmatprep.subr.bf16.mxu0 0
        %3376 = vmatpush1.bf16.msra.mxu0 %v3354
        %3377 = vmatprep.subr.bf16.mxu0 0
        %3378 = vmatpush1.bf16.msra.mxu0 %v3355
        %3379 = vmatprep.subr.bf16.mxu0 0
        %3380 = vmatpush1.bf16.msra.mxu0 %v3356
        %3381 = vmatprep.subr.bf16.mxu0 0
        %3382 = vmatpush1.bf16.msra.mxu0 0
        %3383 = vmatprep.subr.bf16.mxu0 0
        %3384 = vmatpush1.bf16.msra.mxu0 0
        %3385 = vmatprep.subr.bf16.mxu0 0
        %3386 = vmatpush1.bf16.msra.mxu0 0
        %3387 = vmatprep.subr.bf16.mxu0 0
        %3388 = vmatpush1.bf16.msra.mxu0 0
        %3389 = vmatprep.subr.bf16.mxu0 0
        %3390 = vmatpush1.bf16.msra.mxu0 0
        %3391 = vmatprep.subr.bf16.mxu0 0
        %3392 = vmatpush1.bf16.msra.mxu0 0
        %3393 = vmatprep.subr.bf16.mxu0 0
        %3394 = vmatpush1.bf16.msra.mxu0 0
        %3395 = vmatprep.subr.bf16.mxu0 0
        %3396 = vmatpush1.bf16.msra.mxu0 0
        %3397 = vmatprep.mubr.bf16.mxu0 0
        %3398 = vmatmul.mubr.bf16.gmra.mrb[0].mxu0 %v3060
        %v3399 = vpop.f32.mrb[0].mxu0
        %v3400 = vadd.f32 %v3191, %v3399
        %v3401 = vpop.f32.mrb[0].mxu0
        %v3402 = vpop.f32.mrb[0].mxu0
        %v3403 = vadd.f32 %v3194, %v3402
        %v3404 = vpop.f32.mrb[0].mxu0
        %3405 = vmatprep.mubr.bf16.mxu0 0
        %3406 = vmatmul.mubr.bf16.gmra.mrb[0].mxu0 %v3061
        %v3407 = vpop.f32.mrb[0].mxu0
        %v3408 = vadd.f32 %v3199, %v3407
        %v3409 = vpop.f32.mrb[0].mxu0
        %v3410 = vpop.f32.mrb[0].mxu0
        %v3411 = vadd.f32 %v3202, %v3410
        %v3412 = vpop.f32.mrb[0].mxu0
        %3413 = vmatprep.mubr.bf16.mxu0 0
        %3414 = vmatmul.mubr.bf16.gmra.mrb[0].mxu0 %v3062
        %v3415 = vpop.f32.mrb[0].mxu0
        %v3416 = vadd.f32 %v3207, %v3415
        %v3417 = vpop.f32.mrb[0].mxu0
        %v3418 = vpop.f32.mrb[0].mxu0
        %v3419 = vadd.f32 %v3210, %v3418
        %v3420 = vpop.f32.mrb[0].mxu0
        %3421 = vmatprep.mubr.bf16.mxu0 0
        %3422 = vmatmul.mubr.bf16.gmra.mrb[0].mxu0 %v3063
        %v3423 = vpop.f32.mrb[0].mxu0
        %v3424 = vadd.f32 %v3215, %v3423
        %v3425 = vpop.f32.mrb[0].mxu0
        %v3426 = vpop.f32.mrb[0].mxu0
        %v3427 = vadd.f32 %v3218, %v3426
        %v3428 = vpop.f32.mrb[0].mxu0
        %3429 = vmatprep.mubr.bf16.mxu0 0
        %3430 = vmatmul.mubr.bf16.gmra.mrb[0].mxu0 %v3064
        %v3431 = vpop.f32.mrb[0].mxu0
        %v3432 = vadd.f32 %v3223, %v3431
        %v3433 = vpop.f32.mrb[0].mxu0
        %v3434 = vpop.f32.mrb[0].mxu0
        %v3435 = vadd.f32 %v3226, %v3434
        %v3436 = vpop.f32.mrb[0].mxu0
        %3437 = vmatprep.mubr.bf16.mxu0 0
        %3438 = vmatmul.mubr.bf16.gmra.mrb[0].mxu0 %v3065
        %v3439 = vpop.f32.mrb[0].mxu0
        %v3440 = vadd.f32 %v3231, %v3439
        %v3441 = vpop.f32.mrb[0].mxu0
        %v3442 = vpop.f32.mrb[0].mxu0
        %v3443 = vadd.f32 %v3234, %v3442
        %v3444 = vpop.f32.mrb[0].mxu0
        %3445 = vmatprep.mubr.bf16.mxu0 0
        %3446 = vmatmul.mubr.bf16.gmra.mrb[0].mxu0 %v3066
        %v3447 = vpop.f32.mrb[0].mxu0
        %v3448 = vadd.f32 %v3239, %v3447
        %v3449 = vpop.f32.mrb[0].mxu0
        %v3450 = vpop.f32.mrb[0].mxu0
        %v3451 = vadd.f32 %v3242, %v3450
        %v3452 = vpop.f32.mrb[0].mxu0
        %3453 = vmatprep.mubr.bf16.mxu0 0
        %3454 = vmatmul.mubr.bf16.gmra.mrb[0].mxu0 %v3067
        %v3455 = vpop.f32.mrb[0].mxu0
        %v3456 = vadd.f32 %v3247, %v3455
        %v3457 = vpop.f32.mrb[0].mxu0
        %v3458 = vpop.f32.mrb[0].mxu0
        %v3459 = vadd.f32 %v3250, %v3458
        %v3460 = vpop.f32.mrb[0].mxu0
        %3461 = vmatprep.mubr.bf16.mxu0 0
        %3462 = vmatmul.mubr.bf16.gmra.mrb[0].mxu0 %v3068
        %v3463 = vpop.f32.mrb[0].mxu0
        %v3464 = vadd.f32 %v3255, %v3463
        %v3465 = vpop.f32.mrb[0].mxu0
        %v3466 = vpop.f32.mrb[0].mxu0
        %v3467 = vadd.f32 %v3258, %v3466
        %v3468 = vpop.f32.mrb[0].mxu0
        %3469 = vmatprep.mubr.bf16.mxu0 0
        %3470 = vmatmul.mubr.bf16.gmra.mrb[0].mxu0 %v3069
        %v3471 = vpop.f32.mrb[0].mxu0
        %v3472 = vadd.f32 %v3263, %v3471
        %v3473 = vpop.f32.mrb[0].mxu0
        %v3474 = vpop.f32.mrb[0].mxu0
        %v3475 = vadd.f32 %v3266, %v3474
        %v3476 = vpop.f32.mrb[0].mxu0
        %3477 = vmatprep.mubr.bf16.mxu0 0
        %3478 = vmatmul.mubr.bf16.gmra.mrb[0].mxu0 %v3070
        %v3479 = vpop.f32.mrb[0].mxu0
        %v3480 = vadd.f32 %v3271, %v3479
        %v3481 = vpop.f32.mrb[0].mxu0
        %v3482 = vpop.f32.mrb[0].mxu0
        %v3483 = vadd.f32 %v3274, %v3482
        %v3484 = vpop.f32.mrb[0].mxu0
        %3485 = vmatprep.mubr.bf16.mxu0 0
        %3486 = vmatmul.mubr.bf16.gmra.mrb[0].mxu0 %v3071
        %v3487 = vpop.f32.mrb[0].mxu0
        %v3488 = vadd.f32 %v3279, %v3487
        %v3489 = vpop.f32.mrb[0].mxu0
        %v3490 = vpop.f32.mrb[0].mxu0
        %v3491 = vadd.f32 %v3282, %v3490
        %v3492 = vpop.f32.mrb[0].mxu0
        %3493 = vmatprep.mubr.bf16.mxu0 0
        %3494 = vmatmul.mubr.bf16.gmra.mrb[0].mxu0 %v3072
        %v3495 = vpop.f32.mrb[0].mxu0
        %v3496 = vadd.f32 %v3287, %v3495
        %v3497 = vpop.f32.mrb[0].mxu0
        %v3498 = vpop.f32.mrb[0].mxu0
        %v3499 = vadd.f32 %v3290, %v3498
        %v3500 = vpop.f32.mrb[0].mxu0
        %3501 = vmatprep.mubr.bf16.mxu0 0
        %3502 = vmatmul.mubr.bf16.gmra.mrb[0].mxu0 %v3073
        %v3503 = vpop.f32.mrb[0].mxu0
        %v3504 = vadd.f32 %v3295, %v3503
        %v3505 = vpop.f32.mrb[0].mxu0
        %v3506 = vpop.f32.mrb[0].mxu0
        %v3507 = vadd.f32 %v3298, %v3506
        %v3508 = vpop.f32.mrb[0].mxu0
        %3509 = vmatprep.mubr.bf16.mxu0 0
        %3510 = vmatmul.mubr.bf16.gmra.mrb[0].mxu0 %v3074
        %v3511 = vpop.f32.mrb[0].mxu0
        %v3512 = vadd.f32 %v3303, %v3511
        %v3513 = vpop.f32.mrb[0].mxu0
        %v3514 = vpop.f32.mrb[0].mxu0
        %v3515 = vadd.f32 %v3306, %v3514
        %v3516 = vpop.f32.mrb[0].mxu0
        %3517 = vmatprep.mubr.bf16.mxu0 0
        %3518 = vmatmul.mubr.bf16.gmra.mrb[0].mxu0 %v3075
        %v3519 = vpop.f32.mrb[0].mxu0
        %v3520 = vadd.f32 %v3311, %v3519
        %v3521 = vpop.f32.mrb[0].mxu0
        %v3522 = vpop.f32.mrb[0].mxu0
        %v3523 = vadd.f32 %v3314, %v3522
        %v3524 = vpop.f32.mrb[0].mxu0
        %3525 = vdwg.mxu0
        %v3526 = vld [vmem:[#allocation7 + $0x9] sm:$0x1]
        %v3527 = vlaneseq
        %v3528 = vshrl.u32 %v3527, 7
        %v3529 = vsub.s32 0, %v3528
        %v3530 = vrot.slane %v3526, %v3529
        %v3531 = vadd.f32 %v3400, %v3530
        %v3532 = vadd.f32 %v3403, %v3530
        %v3533 = vadd.f32 %v3408, %v3530
        %v3534 = vadd.f32 %v3411, %v3530
        %v3535 = vadd.f32 %v3416, %v3530
        %v3536 = vadd.f32 %v3419, %v3530
        %v3537 = vadd.f32 %v3424, %v3530
        %v3538 = vadd.f32 %v3427, %v3530
        %v3539 = vadd.f32 %v3432, %v3530
        %v3540 = vadd.f32 %v3435, %v3530
        %v3541 = vadd.f32 %v3440, %v3530
        %v3542 = vadd.f32 %v3443, %v3530
        %v3543 = vadd.f32 %v3448, %v3530
        %v3544 = vadd.f32 %v3451, %v3530
        %v3545 = vadd.f32 %v3456, %v3530
        %v3546 = vadd.f32 %v3459, %v3530
        %v3547 = vadd.f32 %v3464, %v3530
        %v3548 = vadd.f32 %v3467, %v3530
        %v3549 = vadd.f32 %v3472, %v3530
        %v3550 = vadd.f32 %v3475, %v3530
        %v3551 = vadd.f32 %v3480, %v3530
        %v3552 = vadd.f32 %v3483, %v3530
        %v3553 = vadd.f32 %v3488, %v3530
        %v3554 = vadd.f32 %v3491, %v3530
        %v3555 = vadd.f32 %v3496, %v3530
        %v3556 = vadd.f32 %v3499, %v3530
        %v3557 = vadd.f32 %v3504, %v3530
        %v3558 = vadd.f32 %v3507, %v3530
        %v3559 = vadd.f32 %v3512, %v3530
        %v3560 = vadd.f32 %v3515, %v3530
        %v3561 = vadd.f32 %v3520, %v3530
        %v3562 = vadd.f32 %v3523, %v3530
        %v3563 = vmax.f32 %v3531, 0.0
        %v3564 = vmax.f32 %v3532, 0.0
        %v3565 = vmax.f32 %v3533, 0.0
        %v3566 = vmax.f32 %v3534, 0.0
        %v3567 = vmax.f32 %v3535, 0.0
        %v3568 = vmax.f32 %v3536, 0.0
        %v3569 = vmax.f32 %v3537, 0.0
        %v3570 = vmax.f32 %v3538, 0.0
        %v3571 = vmax.f32 %v3539, 0.0
        %v3572 = vmax.f32 %v3540, 0.0
        %v3573 = vmax.f32 %v3541, 0.0
        %v3574 = vmax.f32 %v3542, 0.0
        %v3575 = vmax.f32 %v3543, 0.0
        %v3576 = vmax.f32 %v3544, 0.0
        %v3577 = vmax.f32 %v3545, 0.0
        %v3578 = vmax.f32 %v3546, 0.0
        %v3579 = vmax.f32 %v3547, 0.0
        %v3580 = vmax.f32 %v3548, 0.0
        %v3581 = vmax.f32 %v3549, 0.0
        %v3582 = vmax.f32 %v3550, 0.0
        %v3583 = vmax.f32 %v3551, 0.0
        %v3584 = vmax.f32 %v3552, 0.0
        %v3585 = vmax.f32 %v3553, 0.0
        %v3586 = vmax.f32 %v3554, 0.0
        %v3587 = vmax.f32 %v3555, 0.0
        %v3588 = vmax.f32 %v3556, 0.0
        %v3589 = vmax.f32 %v3557, 0.0
        %v3590 = vmax.f32 %v3558, 0.0
        %v3591 = vmax.f32 %v3559, 0.0
        %v3592 = vmax.f32 %v3560, 0.0
        %v3593 = vmax.f32 %v3561, 0.0
        %v3594 = vmax.f32 %v3562, 0.0
        %v3595 = vpack.c.bf16 %v3564, %v3563
        %v3596 = vpack.c.bf16 %v3566, %v3565
        %v3597 = vpack.c.bf16 %v3568, %v3567
        %v3598 = vpack.c.bf16 %v3570, %v3569
        %v3599 = vpack.c.bf16 %v3572, %v3571
        %v3600 = vpack.c.bf16 %v3574, %v3573
        %v3601 = vpack.c.bf16 %v3576, %v3575
        %v3602 = vpack.c.bf16 %v3578, %v3577
        %v3603 = vpack.c.bf16 %v3580, %v3579
        %v3604 = vpack.c.bf16 %v3582, %v3581
        %v3605 = vpack.c.bf16 %v3584, %v3583
        %v3606 = vpack.c.bf16 %v3586, %v3585
        %v3607 = vpack.c.bf16 %v3588, %v3587
        %v3608 = vpack.c.bf16 %v3590, %v3589
        %v3609 = vpack.c.bf16 %v3592, %v3591
        %v3610 = vpack.c.bf16 %v3594, %v3593
        %v3611 = vld [vmem:[#allocation5 + $0x300] sm:$0xf]
        %v3612 = vld [vmem:[#allocation5 + $0x304] sm:$0xf]
        %v3613 = vld [vmem:[#allocation5 + $0x308] sm:$0xf]
        %v3614 = vld [vmem:[#allocation5 + $0x30c] sm:$0xf]
        %v3615 = vld [vmem:[#allocation5 + $0x310] sm:$0xf]
        %v3616 = vld [vmem:[#allocation5 + $0x314] sm:$0xf]
        %v3617 = vld [vmem:[#allocation5 + $0x318] sm:$0xf]
        %v3618 = vld [vmem:[#allocation5 + $0x31c] sm:$0xf]
        %v3619 = vld [vmem:[#allocation5 + $0x320] sm:$0xf]
        %v3620 = vld [vmem:[#allocation5 + $0x324] sm:$0xf]
        %v3621 = vld [vmem:[#allocation5 + $0x328] sm:$0xf]
        %v3622 = vld [vmem:[#allocation5 + $0x32c] sm:$0xf]
        %v3623 = vld [vmem:[#allocation5 + $0x330] sm:$0xf]
        %v3624 = vld [vmem:[#allocation5 + $0x334] sm:$0xf]
        %v3625 = vld [vmem:[#allocation5 + $0x338] sm:$0xf]
        %v3626 = vld [vmem:[#allocation5 + $0x33c] sm:$0xf]
        %v3627 = vld [vmem:[#allocation5 + $0x340] sm:$0xf]
        %v3628 = vld [vmem:[#allocation5 + $0x344] sm:$0xf]
        %v3629 = vld [vmem:[#allocation5 + $0x348] sm:$0xf]
        %v3630 = vld [vmem:[#allocation5 + $0x34c] sm:$0xf]
        %v3631 = vld [vmem:[#allocation5 + $0x350] sm:$0xf]
        %v3632 = vld [vmem:[#allocation5 + $0x354] sm:$0xf]
        %v3633 = vld [vmem:[#allocation5 + $0x358] sm:$0xf]
        %v3634 = vld [vmem:[#allocation5 + $0x35c] sm:$0xf]
        %v3635 = vld [vmem:[#allocation5 + $0x360] sm:$0xf]
        %v3636 = vld [vmem:[#allocation5 + $0x364] sm:$0xf]
        %v3637 = vld [vmem:[#allocation5 + $0x368] sm:$0xf]
        %v3638 = vld [vmem:[#allocation5 + $0x36c] sm:$0xf]
        %v3639 = vld [vmem:[#allocation5 + $0x370] sm:$0xf]
        %v3640 = vld [vmem:[#allocation5 + $0x374] sm:$0xf]
        %v3641 = vld [vmem:[#allocation5 + $0x378] sm:$0xf]
        %v3642 = vld [vmem:[#allocation5 + $0x37c] sm:$0xf]
        %v3659 = vunpack.c.l.b16 %v3627
        %v3660 = vunpack.c.l.b16 %v3628
        %v3661 = vunpack.c.l.b16 %v3629
        %v3662 = vunpack.c.l.b16 %v3630
        %v3663 = vunpack.c.l.b16 %v3631
        %v3664 = vunpack.c.l.b16 %v3632
        %v3665 = vunpack.c.l.b16 %v3633
        %v3666 = vunpack.c.l.b16 %v3634
        %v3667 = vunpack.c.l.b16 %v3635
        %v3668 = vunpack.c.l.b16 %v3636
        %v3669 = vunpack.c.l.b16 %v3637
        %v3670 = vunpack.c.l.b16 %v3638
        %v3671 = vunpack.c.l.b16 %v3639
        %v3672 = vunpack.c.l.b16 %v3640
        %v3673 = vunpack.c.l.b16 %v3641
        %v3674 = vunpack.c.l.b16 %v3642
        %v3675 = vpack.c.b16 %v3660, %v3659
        %v3676 = vpack.c.b16 %v3662, %v3661
        %v3677 = vpack.c.b16 %v3664, %v3663
        %v3678 = vpack.c.b16 %v3666, %v3665
        %v3679 = vpack.c.b16 %v3668, %v3667
        %v3680 = vpack.c.b16 %v3670, %v3669
        %v3681 = vpack.c.b16 %v3672, %v3671
        %v3682 = vpack.c.b16 %v3674, %v3673
        %3691 = vmatprep.subr.bf16.mxu0 0
        %3692 = vmatpush1.bf16.msra.mxu0 %v3675
        %3693 = vmatprep.subr.bf16.mxu0 0
        %3694 = vmatpush1.bf16.msra.mxu0 %v3676
        %3695 = vmatprep.subr.bf16.mxu0 0
        %3696 = vmatpush1.bf16.msra.mxu0 %v3677
        %3697 = vmatprep.subr.bf16.mxu0 0
        %3698 = vmatpush1.bf16.msra.mxu0 %v3678
        %3699 = vmatprep.subr.bf16.mxu0 0
        %3700 = vmatpush1.bf16.msra.mxu0 %v3679
        %3701 = vmatprep.subr.bf16.mxu0 0
        %3702 = vmatpush1.bf16.msra.mxu0 %v3680
        %3703 = vmatprep.subr.bf16.mxu0 0
        %3704 = vmatpush1.bf16.msra.mxu0 %v3681
        %3705 = vmatprep.subr.bf16.mxu0 0
        %3706 = vmatpush1.bf16.msra.mxu0 %v3682
        %3707 = vmatprep.subr.bf16.mxu0 0
        %3708 = vmatpush1.bf16.msra.mxu0 0
        %3709 = vmatprep.subr.bf16.mxu0 0
        %3710 = vmatpush1.bf16.msra.mxu0 0
        %3711 = vmatprep.subr.bf16.mxu0 0
        %3712 = vmatpush1.bf16.msra.mxu0 0
        %3713 = vmatprep.subr.bf16.mxu0 0
        %3714 = vmatpush1.bf16.msra.mxu0 0
        %3715 = vmatprep.subr.bf16.mxu0 0
        %3716 = vmatpush1.bf16.msra.mxu0 0
        %3717 = vmatprep.subr.bf16.mxu0 0
        %3718 = vmatpush1.bf16.msra.mxu0 0
        %3719 = vmatprep.subr.bf16.mxu0 0
        %3720 = vmatpush1.bf16.msra.mxu0 0
        %3721 = vmatprep.subr.bf16.mxu0 0
        %3722 = vmatpush1.bf16.msra.mxu0 0
        %3723 = vmatprep.mubr.bf16.mxu0 0
        %3724 = vmatmul.mubr.bf16.gmra.mrb[0].mxu0 %v2814
        %v3725 = vpop.f32.mrb[0].mxu0
        %v3726 = vadd.f32 0.0, %v3725
        %v3727 = vpop.f32.mrb[0].mxu0
        %v3728 = vpop.f32.mrb[0].mxu0
        %v3729 = vadd.f32 0.0, %v3728
        %v3730 = vpop.f32.mrb[0].mxu0
        %3731 = vmatprep.mubr.bf16.mxu0 0
        %3732 = vmatmul.mubr.bf16.gmra.mrb[0].mxu0 %v2815
        %v3733 = vpop.f32.mrb[0].mxu0
        %v3734 = vadd.f32 0.0, %v3733
        %v3735 = vpop.f32.mrb[0].mxu0
        %v3736 = vpop.f32.mrb[0].mxu0
        %v3737 = vadd.f32 0.0, %v3736
        %v3738 = vpop.f32.mrb[0].mxu0
        %3739 = vmatprep.mubr.bf16.mxu0 0
        %3740 = vmatmul.mubr.bf16.gmra.mrb[0].mxu0 %v2816
        %v3741 = vpop.f32.mrb[0].mxu0
        %v3742 = vadd.f32 0.0, %v3741
        %v3743 = vpop.f32.mrb[0].mxu0
        %v3744 = vpop.f32.mrb[0].mxu0
        %v3745 = vadd.f32 0.0, %v3744
        %v3746 = vpop.f32.mrb[0].mxu0
        %3747 = vmatprep.mubr.bf16.mxu0 0
        %3748 = vmatmul.mubr.bf16.gmra.mrb[0].mxu0 %v2817
        %v3749 = vpop.f32.mrb[0].mxu0
        %v3750 = vadd.f32 0.0, %v3749
        %v3751 = vpop.f32.mrb[0].mxu0
        %v3752 = vpop.f32.mrb[0].mxu0
        %v3753 = vadd.f32 0.0, %v3752
        %v3754 = vpop.f32.mrb[0].mxu0
        %3755 = vmatprep.mubr.bf16.mxu0 0
        %3756 = vmatmul.mubr.bf16.gmra.mrb[0].mxu0 %v2818
        %v3757 = vpop.f32.mrb[0].mxu0
        %v3758 = vadd.f32 0.0, %v3757
        %v3759 = vpop.f32.mrb[0].mxu0
        %v3760 = vpop.f32.mrb[0].mxu0
        %v3761 = vadd.f32 0.0, %v3760
        %v3762 = vpop.f32.mrb[0].mxu0
        %3763 = vmatprep.mubr.bf16.mxu0 0
        %3764 = vmatmul.mubr.bf16.gmra.mrb[0].mxu0 %v2819
        %v3765 = vpop.f32.mrb[0].mxu0
        %v3766 = vadd.f32 0.0, %v3765
        %v3767 = vpop.f32.mrb[0].mxu0
        %v3768 = vpop.f32.mrb[0].mxu0
        %v3769 = vadd.f32 0.0, %v3768
        %v3770 = vpop.f32.mrb[0].mxu0
        %3771 = vmatprep.mubr.bf16.mxu0 0
        %3772 = vmatmul.mubr.bf16.gmra.mrb[0].mxu0 %v2820
        %v3773 = vpop.f32.mrb[0].mxu0
        %v3774 = vadd.f32 0.0, %v3773
        %v3775 = vpop.f32.mrb[0].mxu0
        %v3776 = vpop.f32.mrb[0].mxu0
        %v3777 = vadd.f32 0.0, %v3776
        %v3778 = vpop.f32.mrb[0].mxu0
        %3779 = vmatprep.mubr.bf16.mxu0 0
        %3780 = vmatmul.mubr.bf16.gmra.mrb[0].mxu0 %v2821
        %v3781 = vpop.f32.mrb[0].mxu0
        %v3782 = vadd.f32 0.0, %v3781
        %v3783 = vpop.f32.mrb[0].mxu0
        %v3784 = vpop.f32.mrb[0].mxu0
        %v3785 = vadd.f32 0.0, %v3784
        %v3786 = vpop.f32.mrb[0].mxu0
        %3787 = vmatprep.mubr.bf16.mxu0 0
        %3788 = vmatmul.mubr.bf16.gmra.mrb[0].mxu0 %v2822
        %v3789 = vpop.f32.mrb[0].mxu0
        %v3790 = vadd.f32 0.0, %v3789
        %v3791 = vpop.f32.mrb[0].mxu0
        %v3792 = vpop.f32.mrb[0].mxu0
        %v3793 = vadd.f32 0.0, %v3792
        %v3794 = vpop.f32.mrb[0].mxu0
        %3795 = vmatprep.mubr.bf16.mxu0 0
        %3796 = vmatmul.mubr.bf16.gmra.mrb[0].mxu0 %v2823
        %v3797 = vpop.f32.mrb[0].mxu0
        %v3798 = vadd.f32 0.0, %v3797
        %v3799 = vpop.f32.mrb[0].mxu0
        %v3800 = vpop.f32.mrb[0].mxu0
        %v3801 = vadd.f32 0.0, %v3800
        %v3802 = vpop.f32.mrb[0].mxu0
        %3803 = vmatprep.mubr.bf16.mxu0 0
        %3804 = vmatmul.mubr.bf16.gmra.mrb[0].mxu0 %v2824
        %v3805 = vpop.f32.mrb[0].mxu0
        %v3806 = vadd.f32 0.0, %v3805
        %v3807 = vpop.f32.mrb[0].mxu0
        %v3808 = vpop.f32.mrb[0].mxu0
        %v3809 = vadd.f32 0.0, %v3808
        %v3810 = vpop.f32.mrb[0].mxu0
        %3811 = vmatprep.mubr.bf16.mxu0 0
        %3812 = vmatmul.mubr.bf16.gmra.mrb[0].mxu0 %v2825
        %v3813 = vpop.f32.mrb[0].mxu0
        %v3814 = vadd.f32 0.0, %v3813
        %v3815 = vpop.f32.mrb[0].mxu0
        %v3816 = vpop.f32.mrb[0].mxu0
        %v3817 = vadd.f32 0.0, %v3816
        %v3818 = vpop.f32.mrb[0].mxu0
        %3819 = vmatprep.mubr.bf16.mxu0 0
        %3820 = vmatmul.mubr.bf16.gmra.mrb[0].mxu0 %v2826
        %v3821 = vpop.f32.mrb[0].mxu0
        %v3822 = vadd.f32 0.0, %v3821
        %v3823 = vpop.f32.mrb[0].mxu0
        %v3824 = vpop.f32.mrb[0].mxu0
        %v3825 = vadd.f32 0.0, %v3824
        %v3826 = vpop.f32.mrb[0].mxu0
        %3827 = vmatprep.mubr.bf16.mxu0 0
        %3828 = vmatmul.mubr.bf16.gmra.mrb[0].mxu0 %v2827
        %v3829 = vpop.f32.mrb[0].mxu0
        %v3830 = vadd.f32 0.0, %v3829
        %v3831 = vpop.f32.mrb[0].mxu0
        %v3832 = vpop.f32.mrb[0].mxu0
        %v3833 = vadd.f32 0.0, %v3832
        %v3834 = vpop.f32.mrb[0].mxu0
        %3835 = vmatprep.mubr.bf16.mxu0 0
        %3836 = vmatmul.mubr.bf16.gmra.mrb[0].mxu0 %v2828
        %v3837 = vpop.f32.mrb[0].mxu0
        %v3838 = vadd.f32 0.0, %v3837
        %v3839 = vpop.f32.mrb[0].mxu0
        %v3840 = vpop.f32.mrb[0].mxu0
        %v3841 = vadd.f32 0.0, %v3840
        %v3842 = vpop.f32.mrb[0].mxu0
        %3843 = vmatprep.mubr.bf16.mxu0 0
        %3844 = vmatmul.mubr.bf16.gmra.mrb[0].mxu0 %v2829
        %v3845 = vpop.f32.mrb[0].mxu0
        %v3846 = vadd.f32 0.0, %v3845
        %v3847 = vpop.f32.mrb[0].mxu0
        %v3848 = vpop.f32.mrb[0].mxu0
        %v3849 = vadd.f32 0.0, %v3848
        %v3850 = vpop.f32.mrb[0].mxu0
        %3851 = vdwg.mxu0
        %v3868 = vunpack.c.l.b16 %v3611
        %v3869 = vunpack.c.l.b16 %v3612
        %v3870 = vunpack.c.l.b16 %v3613
        %v3871 = vunpack.c.l.b16 %v3614
        %v3872 = vunpack.c.l.b16 %v3615
        %v3873 = vunpack.c.l.b16 %v3616
        %v3874 = vunpack.c.l.b16 %v3617
        %v3875 = vunpack.c.l.b16 %v3618
        %v3876 = vunpack.c.l.b16 %v3619
        %v3877 = vunpack.c.l.b16 %v3620
        %v3878 = vunpack.c.l.b16 %v3621
        %v3879 = vunpack.c.l.b16 %v3622
        %v3880 = vunpack.c.l.b16 %v3623
        %v3881 = vunpack.c.l.b16 %v3624
        %v3882 = vunpack.c.l.b16 %v3625
        %v3883 = vunpack.c.l.b16 %v3626
        %v3884 = vpack.c.b16 %v3869, %v3868
        %v3885 = vpack.c.b16 %v3871, %v3870
        %v3886 = vpack.c.b16 %v3873, %v3872
        %v3887 = vpack.c.b16 %v3875, %v3874
        %v3888 = vpack.c.b16 %v3877, %v3876
        %v3889 = vpack.c.b16 %v3879, %v3878
        %v3890 = vpack.c.b16 %v3881, %v3880
        %v3891 = vpack.c.b16 %v3883, %v3882
        %3900 = vmatprep.subr.bf16.mxu0 0
        %3901 = vmatpush1.bf16.msra.mxu0 %v3884
        %3902 = vmatprep.subr.bf16.mxu0 0
        %3903 = vmatpush1.bf16.msra.mxu0 %v3885
        %3904 = vmatprep.subr.bf16.mxu0 0
        %3905 = vmatpush1.bf16.msra.mxu0 %v3886
        %3906 = vmatprep.subr.bf16.mxu0 0
        %3907 = vmatpush1.bf16.msra.mxu0 %v3887
        %3908 = vmatprep.subr.bf16.mxu0 0
        %3909 = vmatpush1.bf16.msra.mxu0 %v3888
        %3910 = vmatprep.subr.bf16.mxu0 0
        %3911 = vmatpush1.bf16.msra.mxu0 %v3889
        %3912 = vmatprep.subr.bf16.mxu0 0
        %3913 = vmatpush1.bf16.msra.mxu0 %v3890
        %3914 = vmatprep.subr.bf16.mxu0 0
        %3915 = vmatpush1.bf16.msra.mxu0 %v3891
        %3916 = vmatprep.subr.bf16.mxu0 0
        %3917 = vmatpush1.bf16.msra.mxu0 0
        %3918 = vmatprep.subr.bf16.mxu0 0
        %3919 = vmatpush1.bf16.msra.mxu0 0
        %3920 = vmatprep.subr.bf16.mxu0 0
        %3921 = vmatpush1.bf16.msra.mxu0 0
        %3922 = vmatprep.subr.bf16.mxu0 0
        %3923 = vmatpush1.bf16.msra.mxu0 0
        %3924 = vmatprep.subr.bf16.mxu0 0
        %3925 = vmatpush1.bf16.msra.mxu0 0
        %3926 = vmatprep.subr.bf16.mxu0 0
        %3927 = vmatpush1.bf16.msra.mxu0 0
        %3928 = vmatprep.subr.bf16.mxu0 0
        %3929 = vmatpush1.bf16.msra.mxu0 0
        %3930 = vmatprep.subr.bf16.mxu0 0
        %3931 = vmatpush1.bf16.msra.mxu0 0
        %3932 = vmatprep.mubr.bf16.mxu0 0
        %3933 = vmatmul.mubr.bf16.gmra.mrb[0].mxu0 %v3595
        %v3934 = vpop.f32.mrb[0].mxu0
        %v3935 = vadd.f32 %v3726, %v3934
        %v3936 = vpop.f32.mrb[0].mxu0
        %v3937 = vpop.f32.mrb[0].mxu0
        %v3938 = vadd.f32 %v3729, %v3937
        %v3939 = vpop.f32.mrb[0].mxu0
        %3940 = vmatprep.mubr.bf16.mxu0 0
        %3941 = vmatmul.mubr.bf16.gmra.mrb[0].mxu0 %v3596
        %v3942 = vpop.f32.mrb[0].mxu0
        %v3943 = vadd.f32 %v3734, %v3942
        %v3944 = vpop.f32.mrb[0].mxu0
        %v3945 = vpop.f32.mrb[0].mxu0
        %v3946 = vadd.f32 %v3737, %v3945
        %v3947 = vpop.f32.mrb[0].mxu0
        %3948 = vmatprep.mubr.bf16.mxu0 0
        %3949 = vmatmul.mubr.bf16.gmra.mrb[0].mxu0 %v3597
        %v3950 = vpop.f32.mrb[0].mxu0
        %v3951 = vadd.f32 %v3742, %v3950
        %v3952 = vpop.f32.mrb[0].mxu0
        %v3953 = vpop.f32.mrb[0].mxu0
        %v3954 = vadd.f32 %v3745, %v3953
        %v3955 = vpop.f32.mrb[0].mxu0
        %3956 = vmatprep.mubr.bf16.mxu0 0
        %3957 = vmatmul.mubr.bf16.gmra.mrb[0].mxu0 %v3598
        %v3958 = vpop.f32.mrb[0].mxu0
        %v3959 = vadd.f32 %v3750, %v3958
        %v3960 = vpop.f32.mrb[0].mxu0
        %v3961 = vpop.f32.mrb[0].mxu0
        %v3962 = vadd.f32 %v3753, %v3961
        %v3963 = vpop.f32.mrb[0].mxu0
        %3964 = vmatprep.mubr.bf16.mxu0 0
        %3965 = vmatmul.mubr.bf16.gmra.mrb[0].mxu0 %v3599
        %v3966 = vpop.f32.mrb[0].mxu0
        %v3967 = vadd.f32 %v3758, %v3966
        %v3968 = vpop.f32.mrb[0].mxu0
        %v3969 = vpop.f32.mrb[0].mxu0
        %v3970 = vadd.f32 %v3761, %v3969
        %v3971 = vpop.f32.mrb[0].mxu0
        %3972 = vmatprep.mubr.bf16.mxu0 0
        %3973 = vmatmul.mubr.bf16.gmra.mrb[0].mxu0 %v3600
        %v3974 = vpop.f32.mrb[0].mxu0
        %v3975 = vadd.f32 %v3766, %v3974
        %v3976 = vpop.f32.mrb[0].mxu0
        %v3977 = vpop.f32.mrb[0].mxu0
        %v3978 = vadd.f32 %v3769, %v3977
        %v3979 = vpop.f32.mrb[0].mxu0
        %3980 = vmatprep.mubr.bf16.mxu0 0
        %3981 = vmatmul.mubr.bf16.gmra.mrb[0].mxu0 %v3601
        %v3982 = vpop.f32.mrb[0].mxu0
        %v3983 = vadd.f32 %v3774, %v3982
        %v3984 = vpop.f32.mrb[0].mxu0
        %v3985 = vpop.f32.mrb[0].mxu0
        %v3986 = vadd.f32 %v3777, %v3985
        %v3987 = vpop.f32.mrb[0].mxu0
        %3988 = vmatprep.mubr.bf16.mxu0 0
        %3989 = vmatmul.mubr.bf16.gmra.mrb[0].mxu0 %v3602
        %v3990 = vpop.f32.mrb[0].mxu0
        %v3991 = vadd.f32 %v3782, %v3990
        %v3992 = vpop.f32.mrb[0].mxu0
        %v3993 = vpop.f32.mrb[0].mxu0
        %v3994 = vadd.f32 %v3785, %v3993
        %v3995 = vpop.f32.mrb[0].mxu0
        %3996 = vmatprep.mubr.bf16.mxu0 0
        %3997 = vmatmul.mubr.bf16.gmra.mrb[0].mxu0 %v3603
        %v3998 = vpop.f32.mrb[0].mxu0
        %v3999 = vadd.f32 %v3790, %v3998
        %v4000 = vpop.f32.mrb[0].mxu0
        %v4001 = vpop.f32.mrb[0].mxu0
        %v4002 = vadd.f32 %v3793, %v4001
        %v4003 = vpop.f32.mrb[0].mxu0
        %4004 = vmatprep.mubr.bf16.mxu0 0
        %4005 = vmatmul.mubr.bf16.gmra.mrb[0].mxu0 %v3604
        %v4006 = vpop.f32.mrb[0].mxu0
        %v4007 = vadd.f32 %v3798, %v4006
        %v4008 = vpop.f32.mrb[0].mxu0
        %v4009 = vpop.f32.mrb[0].mxu0
        %v4010 = vadd.f32 %v3801, %v4009
        %v4011 = vpop.f32.mrb[0].mxu0
        %4012 = vmatprep.mubr.bf16.mxu0 0
        %4013 = vmatmul.mubr.bf16.gmra.mrb[0].mxu0 %v3605
        %v4014 = vpop.f32.mrb[0].mxu0
        %v4015 = vadd.f32 %v3806, %v4014
        %v4016 = vpop.f32.mrb[0].mxu0
        %v4017 = vpop.f32.mrb[0].mxu0
        %v4018 = vadd.f32 %v3809, %v4017
        %v4019 = vpop.f32.mrb[0].mxu0
        %4020 = vmatprep.mubr.bf16.mxu0 0
        %4021 = vmatmul.mubr.bf16.gmra.mrb[0].mxu0 %v3606
        %v4022 = vpop.f32.mrb[0].mxu0
        %v4023 = vadd.f32 %v3814, %v4022
        %v4024 = vpop.f32.mrb[0].mxu0
        %v4025 = vpop.f32.mrb[0].mxu0
        %v4026 = vadd.f32 %v3817, %v4025
        %v4027 = vpop.f32.mrb[0].mxu0
        %4028 = vmatprep.mubr.bf16.mxu0 0
        %4029 = vmatmul.mubr.bf16.gmra.mrb[0].mxu0 %v3607
        %v4030 = vpop.f32.mrb[0].mxu0
        %v4031 = vadd.f32 %v3822, %v4030
        %v4032 = vpop.f32.mrb[0].mxu0
        %v4033 = vpop.f32.mrb[0].mxu0
        %v4034 = vadd.f32 %v3825, %v4033
        %v4035 = vpop.f32.mrb[0].mxu0
        %4036 = vmatprep.mubr.bf16.mxu0 0
        %4037 = vmatmul.mubr.bf16.gmra.mrb[0].mxu0 %v3608
        %v4038 = vpop.f32.mrb[0].mxu0
        %v4039 = vadd.f32 %v3830, %v4038
        %v4040 = vpop.f32.mrb[0].mxu0
        %v4041 = vpop.f32.mrb[0].mxu0
        %v4042 = vadd.f32 %v3833, %v4041
        %v4043 = vpop.f32.mrb[0].mxu0
        %4044 = vmatprep.mubr.bf16.mxu0 0
        %4045 = vmatmul.mubr.bf16.gmra.mrb[0].mxu0 %v3609
        %v4046 = vpop.f32.mrb[0].mxu0
        %v4047 = vadd.f32 %v3838, %v4046
        %v4048 = vpop.f32.mrb[0].mxu0
        %v4049 = vpop.f32.mrb[0].mxu0
        %v4050 = vadd.f32 %v3841, %v4049
        %v4051 = vpop.f32.mrb[0].mxu0
        %4052 = vmatprep.mubr.bf16.mxu0 0
        %4053 = vmatmul.mubr.bf16.gmra.mrb[0].mxu0 %v3610
        %v4054 = vpop.f32.mrb[0].mxu0
        %v4055 = vadd.f32 %v3846, %v4054
        %v4056 = vpop.f32.mrb[0].mxu0
        %v4057 = vpop.f32.mrb[0].mxu0
        %v4058 = vadd.f32 %v3849, %v4057
        %v4059 = vpop.f32.mrb[0].mxu0
        %4060 = vdwg.mxu0
        %v4061 = vld [vmem:[#allocation7 + $0xa] sm:$0x1]
        %v4062 = vlaneseq
        %v4063 = vshrl.u32 %v4062, 7
        %v4064 = vsub.s32 0, %v4063
        %v4065 = vrot.slane %v4061, %v4064
        %v4066 = vadd.f32 %v3935, %v4065
        %v4067 = vadd.f32 %v3938, %v4065
        %v4068 = vadd.f32 %v3943, %v4065
        %v4069 = vadd.f32 %v3946, %v4065
        %v4070 = vadd.f32 %v3951, %v4065
        %v4071 = vadd.f32 %v3954, %v4065
        %v4072 = vadd.f32 %v3959, %v4065
        %v4073 = vadd.f32 %v3962, %v4065
        %v4074 = vadd.f32 %v3967, %v4065
        %v4075 = vadd.f32 %v3970, %v4065
        %v4076 = vadd.f32 %v3975, %v4065
        %v4077 = vadd.f32 %v3978, %v4065
        %v4078 = vadd.f32 %v3983, %v4065
        %v4079 = vadd.f32 %v3986, %v4065
        %v4080 = vadd.f32 %v3991, %v4065
        %v4081 = vadd.f32 %v3994, %v4065
        %v4082 = vadd.f32 %v3999, %v4065
        %v4083 = vadd.f32 %v4002, %v4065
        %v4084 = vadd.f32 %v4007, %v4065
        %v4085 = vadd.f32 %v4010, %v4065
        %v4086 = vadd.f32 %v4015, %v4065
        %v4087 = vadd.f32 %v4018, %v4065
        %v4088 = vadd.f32 %v4023, %v4065
        %v4089 = vadd.f32 %v4026, %v4065
        %v4090 = vadd.f32 %v4031, %v4065
        %v4091 = vadd.f32 %v4034, %v4065
        %v4092 = vadd.f32 %v4039, %v4065
        %v4093 = vadd.f32 %v4042, %v4065
        %v4094 = vadd.f32 %v4047, %v4065
        %v4095 = vadd.f32 %v4050, %v4065
        %v4096 = vadd.f32 %v4055, %v4065
        %v4097 = vadd.f32 %v4058, %v4065
        %4098 = vst [vmem:[%s217] sm:$0xff] %v4066
        %4099 = vst [vmem:[%s217 + $0x8] sm:$0xff] %v4067
        %4100 = vst [vmem:[%s217 + $0x10] sm:$0xff] %v4068
        %4101 = vst [vmem:[%s217 + $0x18] sm:$0xff] %v4069
        %4102 = vst [vmem:[%s217 + $0x20] sm:$0xff] %v4070
        %4103 = vst [vmem:[%s217 + $0x28] sm:$0xff] %v4071
        %4104 = vst [vmem:[%s217 + $0x30] sm:$0xff] %v4072
        %4105 = vst [vmem:[%s217 + $0x38] sm:$0xff] %v4073
        %4106 = vst [vmem:[%s217 + $0x40] sm:$0xff] %v4074
        %4107 = vst [vmem:[%s217 + $0x48] sm:$0xff] %v4075
        %4108 = vst [vmem:[%s217 + $0x50] sm:$0xff] %v4076
        %4109 = vst [vmem:[%s217 + $0x58] sm:$0xff] %v4077
        %4110 = vst [vmem:[%s217 + $0x60] sm:$0xff] %v4078
        %4111 = vst [vmem:[%s217 + $0x68] sm:$0xff] %v4079
        %4112 = vst [vmem:[%s217 + $0x70] sm:$0xff] %v4080
        %4113 = vst [vmem:[%s217 + $0x78] sm:$0xff] %v4081
        %4114 = vst [vmem:[%s217 + $0x80] sm:$0xff] %v4082
        %4115 = vst [vmem:[%s217 + $0x88] sm:$0xff] %v4083
        %4116 = vst [vmem:[%s217 + $0x90] sm:$0xff] %v4084
        %4117 = vst [vmem:[%s217 + $0x98] sm:$0xff] %v4085
        %4118 = vst [vmem:[%s217 + $0xa0] sm:$0xff] %v4086
        %4119 = vst [vmem:[%s217 + $0xa8] sm:$0xff] %v4087
        %4120 = vst [vmem:[%s217 + $0xb0] sm:$0xff] %v4088
        %4121 = vst [vmem:[%s217 + $0xb8] sm:$0xff] %v4089
        %4122 = vst [vmem:[%s217 + $0xc0] sm:$0xff] %v4090
        %4123 = vst [vmem:[%s217 + $0xc8] sm:$0xff] %v4091
        %4124 = vst [vmem:[%s217 + $0xd0] sm:$0xff] %v4092
        %4125 = vst [vmem:[%s217 + $0xd8] sm:$0xff] %v4093
        %4126 = vst [vmem:[%s217 + $0xe0] sm:$0xff] %v4094
        %4127 = vst [vmem:[%s217 + $0xe8] sm:$0xff] %v4095
        %4128 = vst [vmem:[%s217 + $0xf0] sm:$0xff] %v4096
        %4129 = vst [vmem:[%s217 + $0xf8] sm:$0xff] %v4097
        %s4130 = sand.u32 %s97, 1
        %s4131 = scalar_lea.sflag [#allocation4], %s4130
        %s4132 = sand.u32 %s97, 1
        %s4133 = smul.addr %s4132, 256
        %s4134 = scalar_lea.vmem [#allocation8], %s4133
        // Predicated region
        $region45: #{tpu_custom_call.1} parent=31 // pred_check
          %p4135 = pneg %p107
        $region46: #{tpu_custom_call.1} parent=31 // pred_check_branch
          %4137 = sbr.rel (%p4135) target = $region48
        $region47: #{tpu_custom_call.1} parent=31 // pred_region
          %s4138 = smul.u32 32, %s21
          %s4140 = ssub.s32 4096, 4096
          %4141 = vsyncadd %s4131, %s4140
          %s4142 = smul.addr %s4138, 128
          %s4143 = scalar_lea.hbm %s3, %s4142
          %s4144 = sshll.u32 %s4134, 4
          %s4145 = int_to_ptr.vmem [resolvable:$true] %s4144
          %4150 = dma.vmem_to_hbm [thread:$0]  %s4145, 4096, %s4143, %s4131, 128, 128, 8
        $region48: #{tpu_custom_call.1} parent=31 // pred_fallthru
          _
      $region32: #{tpu_custom_call.1} parent=5 // pred_fallthru
        _
      %p4151 = scmp.le.s32.totalorder 2, %s16
      // Predicated region
      $region49: #{tpu_custom_call.1} parent=5 // pred_check
        %p4152 = pneg %p4151
      $region50: #{tpu_custom_call.1} parent=5 // pred_check_branch
        %4154 = sbr.rel (%p4152) target = $region52
      $region51: #{tpu_custom_call.1} parent=5 // pred_region
        %s4155 = ssub.s32 %s16, 2
        // Predicated region
        $region53: #{tpu_custom_call.1} parent=51 // pred_check
          %p4156 = pneg %p113
        $region54: #{tpu_custom_call.1} parent=51 // pred_check_branch
          %4158 = sbr.rel (%p4156) target = $region56
        $region55: #{tpu_custom_call.1} parent=51 // pred_region
          %s4159 = sand.u32 %s98, 1
          %s4160 = scalar_lea.sflag [#allocation4], %s4159
          %s4161 = sand.u32 %s98, 1
          %s4162 = smul.addr %s4161, 256
          %s4163 = scalar_lea.vmem [#allocation8], %s4162
          %4164 = dma.done %s4160, 4096
        $region56: #{tpu_custom_call.1} parent=51 // pred_fallthru
          _
      $region52: #{tpu_custom_call.1} parent=5 // pred_fallthru
        _
    $region6: #{tpu_custom_call.1} parent=1 // loop_footer
      %s20 = sadd.s32 1, %s16
    $region7: #{tpu_custom_call.1} parent=1 // loop_footer_branch
      %15 = sbr.rel target = $region3
    $region8: #{tpu_custom_call.1} parent=1 // loop_exit
      _
    %4165 = vsyncpa [#allocation3], 1
    %s4166 = scalar_lea.sflag [#allocation3], 1
    %4167 = vsyncpa %s4166, 1
    %4168 = vsyncpa [#allocation6], 1
    %4169 = vsyncpa [#allocation4], 1
    %s4170 = scalar_lea.sflag [#allocation4], 1
    %4171 = vsyncpa %s4170, 1

</llo_original>
